<compile_context>
chip_gen: v6e
topology: v6e:2x2x1
jax: 0.10.0
libtpu: 0.0.40
codegen_flags: <defaults>
</compile_context>

<pallas_src>
import jax
import jax.numpy as jnp
from jax.experimental import pallas as pl
from jax.experimental.pallas import tpu as pltpu

# ----------------------------- problem sizes (small, self-consistent) -----------------------------
NUM_NODES = 16          # nodes per graph
IN_CHANNELS = 8
HIDDEN_CHANNELS = 32
OUT_CHANNELS = 8
NUM_RELATIONS = 3
NUM_EDGES = 40          # edges per graph
NUM_GRAPHS = 64         # graphs per forward call (batch)

GRAPHS_PER_BLOCK = 8                                  # graphs packed per super-block
BGN = GRAPHS_PER_BLOCK * NUM_NODES                    # 128 rows per super-block -> full MXU M
SUPER_BLOCKS = 4                                      # super-blocks processed per grid step
OUT_PAD = 128                                         # lane-dense output width


# ----------------------------------------- Pallas kernel -----------------------------------------
def rgcn_net_kernel(x_ref, adj_ref, q_ref, w1w_ref, b1_ref, w2s_ref, b2_ref, out_ref):
    """One grid step = SUPER_BLOCKS super-blocks of GRAPHS_PER_BLOCK graphs each.

    x_ref   : [SB, BGN, Cin]            bf16  node features
    adj_ref : [SB, R, BGN, BGN]         bf16  per-relation normalized block-diag adjacency
    q_ref   : [SB, (R+1)*BG, BGN]       bf16  rows (k-major): [P ; P@A_1 ; ... ; P@A_R]
    w1w_ref : [Cin, (R+1)*H]            bf16  hstack([Wroot1, W1_0, ..., W1_{R-1}])
    b1_ref  : [1, H]                    f32
    w2s_ref : [(R+1)*H, OUT_PAD]        bf16  vstack([Wroot2, W2_0, ...]) zero-padded lanes
    b2_ref  : [1, OUT_PAD]              f32   bias, pad lanes hold -1e30
    out_ref : [SB, BG, OUT_PAD]         f32   per-graph log-softmax (pad lanes ~ -inf)
    """
    # Hoist weight / bias loads out of the super-block loop (JAX does not CSE them per-iter).
    w1w = w1w_ref[...]                     # [Cin, (R+1)*H]   bf16
    w2s = w2s_ref[...]                     # [(R+1)*H, OUT_PAD] bf16
    b1 = b1_ref[...]                       # [1, H]           f32
    b2 = b2_ref[...]                       # [1, OUT_PAD]     f32

    for sb in range(SUPER_BLOCKS):         # static unroll (SB = 4), constant indices
        x = x_ref[sb]                                                   # [BGN, Cin] bf16

        # ---- layer 1: transform-then-aggregate (no scratch, register accumulation) ----
        xw = jnp.dot(x, w1w, preferred_element_type=jnp.float32)       # [BGN, (R+1)*H]
        h = xw[:, 0:HIDDEN_CHANNELS] + b1                               # root slot
        for r in range(NUM_RELATIONS):                                  # static unroll, R = 3
            xwr = xw[:, (r + 1) * HIDDEN_CHANNELS:(r + 2) * HIDDEN_CHANNELS]
            h = h + jnp.dot(adj_ref[sb, r], xwr.astype(jnp.bfloat16),
                            preferred_element_type=jnp.float32)         # [BGN, H]
        h = jnp.maximum(h, 0.0).astype(jnp.bfloat16)                    # ReLU, bf16 for MXU

        # ---- pooling commuted before layer 2: q folds mean-pool with adjacency ----
        qh = jnp.dot(q_ref[sb], h, preferred_element_type=jnp.float32)  # [(R+1)*BG, H]

        # ---- layer 2: accumulate 4 lane-dense [BG,H]@[H,OUT_PAD] dots in registers ----
        logits = jnp.broadcast_to(b2, (GRAPHS_PER_BLOCK, OUT_PAD))
        for k in range(NUM_RELATIONS + 1):
            qk = qh[k * GRAPHS_PER_BLOCK:(k + 1) * GRAPHS_PER_BLOCK, :]
            wk = w2s[k * HIDDEN_CHANNELS:(k + 1) * HIDDEN_CHANNELS, :]
            logits = logits + jnp.dot(qk.astype(jnp.bfloat16), wk,
                                      preferred_element_type=jnp.float32)  # [BG, OUT_PAD]

        # ---- log_softmax over lanes (pad lanes have -1e30 bias -> ~zero probability) ----
        mx = jnp.max(logits, axis=1, keepdims=True)
        z = logits - mx
        lse = jnp.log(jnp.sum(jnp.exp(z), axis=1, keepdims=True))
        out_ref[sb] = (z - lse).astype(out_ref.dtype)


# --------------------------------------- preprocessing (XLA) ---------------------------------------
def build_block_adjacency(edge_index, edge_type):
    """Block-diagonal normalized adjacency [nb, R, BGN, BGN] built with a SINGLE scatter:
    node indices are offset by (graph_in_block * NUM_NODES); A[r, dst, src] = 1/deg_r(dst)
    (PyG RGCNConv mean aggregation; root weight & bias handled separately)."""
    B, _, E = edge_index.shape
    nb = B // GRAPHS_PER_BLOCK
    g = jnp.arange(B, dtype=jnp.int32)
    blk = jnp.broadcast_to((g // GRAPHS_PER_BLOCK)[:, None], (B, E))
    off = ((g % GRAPHS_PER_BLOCK) * NUM_NODES)[:, None]
    src = edge_index[:, 0, :] + off
    dst = edge_index[:, 1, :] + off
    a = jnp.zeros((nb, NUM_RELATIONS, BGN, BGN), jnp.float32)
    a = a.at[blk.ravel(), edge_type.ravel(), dst.ravel(), src.ravel()].add(1.0)
    deg = jnp.sum(a, axis=3, keepdims=True)
    return a / jnp.maximum(deg, 1.0)


def pack_inputs(x, adj_blk):
    """Pack node features per super-block and build the fused pooling operator
    q = [P ; P@A_1 ; ... ; P@A_R] (k-major rows)."""
    B = x.shape[0]
    nb = B // GRAPHS_PER_BLOCK

    # P[g, g*N + i] = 1/N  (per-graph mean pooling over the super-block's rows)
    pool = jnp.kron(jnp.eye(GRAPHS_PER_BLOCK, dtype=jnp.float32),
                    jnp.full((1, NUM_NODES), 1.0 / NUM_NODES, jnp.float32))     # [BG, BGN]
    pa = jnp.einsum("gj,nrjk->nrgk", pool, adj_blk)                    # [nb, R, BG, BGN]
    q = jnp.concatenate(
        [jnp.broadcast_to(pool, (nb, 1, GRAPHS_PER_BLOCK, BGN)), pa], axis=1)
    q = q.reshape(nb, (NUM_RELATIONS + 1) * GRAPHS_PER_BLOCK, BGN)

    x_blk = x.reshape(nb, BGN, IN_CHANNELS)
    return (x_blk.astype(jnp.bfloat16),
            adj_blk.astype(jnp.bfloat16),
            q.astype(jnp.bfloat16))


def stack_params(params):
    # layer 1: weights stacked along the OUTPUT dim -> [Cin, (R+1)*H] (lane-dense transform)
    w1 = jnp.concatenate([params["wroot1"][None], params["w1"]], axis=0)     # [R+1, Cin, H]
    w1_wide = jnp.transpose(w1, (1, 0, 2)).reshape(IN_CHANNELS,
                                                   (NUM_RELATIONS + 1) * HIDDEN_CHANNELS)

    # layer 2: weights stacked along the K dim -> [(R+1)*H, OUT_PAD] (zero-padded lanes)
    w2 = jnp.concatenate([params["wroot2"][None], params["w2"]], axis=0)     # [R+1, H, Cout]
    w2s = w2.reshape((NUM_RELATIONS + 1) * HIDDEN_CHANNELS, OUT_CHANNELS)
    w2s_pad = jnp.zeros(((NUM_RELATIONS + 1) * HIDDEN_CHANNELS, OUT_PAD), jnp.float32)
    w2s_pad = w2s_pad.at[:, :OUT_CHANNELS].set(w2s)

    b2_pad = jnp.full((1, OUT_PAD), -1e30, jnp.float32)
    b2_pad = b2_pad.at[:, :OUT_CHANNELS].set(params["b2"])

    return (w1_wide.astype(jnp.bfloat16), params["b1"].astype(jnp.float32),
            w2s_pad.astype(jnp.bfloat16), b2_pad)


# ------------------------------------------ JAX wrapper ------------------------------------------
@jax.jit
def rgcn_net_forward(x, edge_index, edge_type, params):
    B = x.shape[0]
    assert B % (GRAPHS_PER_BLOCK * SUPER_BLOCKS) == 0
    nb = B // GRAPHS_PER_BLOCK                       # super-blocks total
    grid_len = nb // SUPER_BLOCKS                    # >= 2 so v7x megacore gets both TCs

    adj_blk = build_block_adjacency(edge_index, edge_type)   # one scatter, stays in XLA
    x_blk, adj_blk_bf, q = pack_inputs(x, adj_blk)
    w1_wide, b1, w2s_pad, b2_pad = stack_params(params)

    KQ = (NUM_RELATIONS + 1) * GRAPHS_PER_BLOCK
    grid_spec = pltpu.PrefetchScalarGridSpec(
        num_scalar_prefetch=0,
        grid=(grid_len,),
        in_specs=[
            pl.BlockSpec((SUPER_BLOCKS, BGN, IN_CHANNELS), lambda i: (i, 0, 0)),
            pl.BlockSpec((SUPER_BLOCKS, NUM_RELATIONS, BGN, BGN), lambda i: (i, 0, 0, 0)),
            pl.BlockSpec((SUPER_BLOCKS, KQ, BGN), lambda i: (i, 0, 0)),
            pl.BlockSpec((IN_CHANNELS, (NUM_RELATIONS + 1) * HIDDEN_CHANNELS),
                         lambda i: (0, 0)),
            pl.BlockSpec((1, HIDDEN_CHANNELS), lambda i: (0, 0)),
            pl.BlockSpec(((NUM_RELATIONS + 1) * HIDDEN_CHANNELS, OUT_PAD),
                         lambda i: (0, 0)),
            pl.BlockSpec((1, OUT_PAD), lambda i: (0, 0)),
        ],
        out_specs=pl.BlockSpec((SUPER_BLOCKS, GRAPHS_PER_BLOCK, OUT_PAD),
                               lambda i: (i, 0, 0)),
    )

    flops_per_sb = (
        2 * BGN * IN_CHANNELS * (NUM_RELATIONS + 1) * HIDDEN_CHANNELS
        + NUM_RELATIONS * 2 * BGN * BGN * HIDDEN_CHANNELS
        + 2 * KQ * BGN * HIDDEN_CHANNELS
        + (NUM_RELATIONS + 1) * 2 * GRAPHS_PER_BLOCK * HIDDEN_CHANNELS * OUT_PAD)
    bytes_accessed = (x_blk.size * 2 + adj_blk_bf.size * 2 + q.size * 2
                      + w1_wide.size * 2 + b1.size * 4 + w2s_pad.size * 2 + b2_pad.size * 4
                      + nb * GRAPHS_PER_BLOCK * OUT_PAD * 4)

    out_pad = pl.pallas_call(
        rgcn_net_kernel,
        out_shape=jax.ShapeDtypeStruct((nb, GRAPHS_PER_BLOCK, OUT_PAD), jnp.float32),
        grid_spec=grid_spec,
        compiler_params=pltpu.CompilerParams(dimension_semantics=("parallel",)),
        cost_estimate=pl.CostEstimate(
            flops=nb * flops_per_sb,
            transcendentals=nb * GRAPHS_PER_BLOCK * (OUT_PAD + 1),
            bytes_accessed=bytes_accessed),
    )(x_blk, adj_blk_bf, q, w1_wide, b1, w2s_pad, b2_pad)

    return out_pad.reshape(B, OUT_PAD)[:, :OUT_CHANNELS]


# --------------------------------- pure-JAX reference (per graph) ---------------------------------
def build_adjacency_per_graph(edge_index, edge_type):
    def one(ei, et):
        a = jnp.zeros((NUM_RELATIONS, NUM_NODES, NUM_NODES), jnp.float32)
        a = a.at[et, ei[1], ei[0]].add(1.0)
        deg = jnp.sum(a, axis=2, keepdims=True)
        return a / jnp.maximum(deg, 1.0)
    return jax.vmap(one)(edge_index, edge_type)


def reference_forward(x, edge_index, edge_type, params):
    """Mirrors the PyTorch module (conv1 -> ReLU -> conv2 -> mean-pool -> log_softmax) in f32
    with bf16-rounded inputs/weights/adjacency and the kernel's bf16 hidden-state rounding,
    so the comparison tolerance can be tight."""
    rd = lambda a: a.astype(jnp.bfloat16).astype(jnp.float32)
    adj = rd(build_adjacency_per_graph(edge_index, edge_type))
    xb = rd(x)
    w1, wr1 = rd(params["w1"]), rd(params["wroot1"])
    w2, wr2 = rd(params["w2"]), rd(params["wroot2"])
    b1, b2 = params["b1"], params["b2"]

    def one(xg, ag):
        h = xg @ wr1 + b1
        for r in range(NUM_RELATIONS):
            h = h + ag[r] @ (xg @ w1[r])
        h = jnp.maximum(h, 0.0)
        h = rd(h)                                   # kernel stores h in bf16
        o = h @ wr2 + b2
        for r in range(NUM_RELATIONS):
            o = o + ag[r] @ (h @ w2[r])
        pooled = jnp.mean(o, axis=0)
        return jax.nn.log_softmax(pooled)

    return jax.vmap(one)(xb, adj)


def init_params(key):
    """Glorot-uniform init; shapes match RGCNConv(in, out, num_relations) with root weight + bias."""
    def glorot(k, shape):
        fan_in, fan_out = shape[-2], shape[-1]
        limit = jnp.sqrt(6.0 / (fan_in + fan_out))
        return jax.random.uniform(k, shape, jnp.float32, -limit, limit)

    k = jax.random.split(key, 4)
    return {
        "w1":     glorot(k[0], (NUM_RELATIONS, IN_CHANNELS, HIDDEN_CHANNELS)),
        "wroot1": glorot(k[1], (IN_CHANNELS, HIDDEN_CHANNELS)),
        "b1":     jnp.zeros((1, HIDDEN_CHANNELS), jnp.float32),
        "w2":     glorot(k[2], (NUM_RELATIONS, HIDDEN_CHANNELS, OUT_CHANNELS)),
        "wroot2": glorot(k[3], (HIDDEN_CHANNELS, OUT_CHANNELS)),
        "b2":     jnp.zeros((1, OUT_CHANNELS), jnp.float32),
    }


if __name__ == "__main__":
    key = jax.random.PRNGKey(0)
    kx, ke, kt, kp = jax.random.split(key, 4)

    # deterministic synthetic batch of graphs (each with NUM_NODES nodes, NUM_EDGES edges)
    x = jax.random.normal(kx, (NUM_GRAPHS, NUM_NODES, IN_CHANNELS), jnp.float32)
    edge_index = jax.random.randint(ke, (NUM_GRAPHS, 2, NUM_EDGES), 0, NUM_NODES, dtype=jnp.int32)
    edge_type = jax.random.randint(kt, (NUM_GRAPHS, NUM_EDGES), 0, NUM_RELATIONS, dtype=jnp.int32)
    params = init_params(kp)

    out = jax.block_until_ready(rgcn_net_forward(x, edge_index, edge_type, params))

    # sanity: per-graph log-probabilities over OUT_CHANNELS classes
    assert out.shape == (NUM_GRAPHS, OUT_CHANNELS)
    assert bool(jnp.isfinite(out).all())
    assert bool(jnp.allclose(jnp.sum(jnp.exp(out), axis=1), 1.0, atol=1e-4))

    ref = jax.block_until_ready(reference_forward(x, edge_index, edge_type, params))
    max_err = float(jnp.max(jnp.abs(out - ref)))
    assert max_err < 3e-2, max_err

    print("KERNEL_OK")
</pallas_src>

<mosaic_0001>
module attributes {stable_mosaic.version = 11 : i64} {
  func.func private @main(%arg0: i32) attributes {dimension_semantics = [#tpu.dimension_semantics<core_parallel>], iteration_bounds = array<i64: 2>, tpu.core_type = #tpu.core_type<sc_scalar_subcore>, window_params = []} {
    return
  }
}

module attributes {stable_mosaic.version = 11 : i64} {
  func.func private @main(%arg0: i32) attributes {dimension_semantics = [#tpu.dimension_semantics<core_parallel>], iteration_bounds = array<i64: 2>, tpu.core_type = #tpu.core_type<sc_scalar_subcore>, window_params = []} {
    return
  }
}

module attributes {stable_mosaic.version = 11 : i64} {
  func.func @rgcn_net_kernel(%arg0: i32, %arg1: memref<4x128x8xbf16, #tpu.memory_space<vmem>>, %arg2: memref<4x3x128x128xbf16, #tpu.memory_space<vmem>>, %arg3: memref<4x32x128xbf16, #tpu.memory_space<vmem>>, %arg4: memref<8x128xbf16, #tpu.memory_space<vmem>>, %arg5: memref<1x32xf32, #tpu.memory_space<vmem>>, %arg6: memref<128x128xbf16, #tpu.memory_space<vmem>>, %arg7: memref<1x128xf32, #tpu.memory_space<vmem>>, %arg8: memref<4x8x128xf32, #tpu.memory_space<vmem>>) attributes {dimension_semantics = [#tpu.dimension_semantics<parallel>], iteration_bounds = array<i64: 2>, scalar_prefetch = 0 : i64, scratch_operands = 0 : i64, tpu.core_type = #tpu.core_type<tc>, window_params = [{transform_indices = @transform_0, window_bounds = array<i64: 4, 128, 8>}, {transform_indices = @transform_1, window_bounds = array<i64: 4, 3, 128, 128>}, {transform_indices = @transform_2, window_bounds = array<i64: 4, 32, 128>}, {pipeline_mode = #tpu.pipeline_mode<synchronous>, transform_indices = @transform_3, window_bounds = array<i64: 8, 128>}, {pipeline_mode = #tpu.pipeline_mode<synchronous>, transform_indices = @transform_4, window_bounds = array<i64: 1, 32>}, {pipeline_mode = #tpu.pipeline_mode<synchronous>, transform_indices = @transform_5, window_bounds = array<i64: 128, 128>}, {pipeline_mode = #tpu.pipeline_mode<synchronous>, transform_indices = @transform_6, window_bounds = array<i64: 1, 128>}, {transform_indices = @transform_7, window_bounds = array<i64: 4, 8, 128>}]} {
    %c0 = arith.constant 0 : index
    %c0_0 = arith.constant 0 : index
    %0 = vector.load %arg4[%c0, %c0_0] : memref<8x128xbf16, #tpu.memory_space<vmem>>, vector<8x128xbf16>
    %c0_1 = arith.constant 0 : index
    %c0_2 = arith.constant 0 : index
    %1 = vector.load %arg6[%c0_1, %c0_2] : memref<128x128xbf16, #tpu.memory_space<vmem>>, vector<128x128xbf16>
    %c0_3 = arith.constant 0 : index
    %c0_4 = arith.constant 0 : index
    %2 = vector.load %arg5[%c0_3, %c0_4] : memref<1x32xf32, #tpu.memory_space<vmem>>, vector<1x32xf32>
    %c0_5 = arith.constant 0 : index
    %c0_6 = arith.constant 0 : index
    %3 = vector.load %arg7[%c0_5, %c0_6] : memref<1x128xf32, #tpu.memory_space<vmem>>, vector<1x128xf32>
    %c0_7 = arith.constant 0 : index
    %c0_8 = arith.constant 0 : index
    %c0_9 = arith.constant 0 : index
    %4 = vector.load %arg1[%c0_7, %c0_8, %c0_9] : memref<4x128x8xbf16, #tpu.memory_space<vmem>>, vector<1x128x8xbf16>
    %5 = vector.shape_cast %4 : vector<1x128x8xbf16> to vector<128x8xbf16>
    %cst = arith.constant dense<0.000000e+00> : vector<128x128xf32>
    %6 = tpu.matmul %5, %0, %cst {dimension_numbers = #tpu.dot_dimension_numbers<[1], [0], [0], [1], [0, 0, 1, 1], [], []>} : vector<128x8xbf16>, vector<8x128xbf16>, vector<128x128xf32> -> vector<128x128xf32>
    %7 = vector.extract_strided_slice %6 {offsets = [0, 0], sizes = [128, 32], strides = [1, 1]} : vector<128x128xf32> to vector<128x32xf32>
    %8 = vector.broadcast %2 : vector<1x32xf32> to vector<128x32xf32>
    %9 = arith.addf %7, %8 : vector<128x32xf32>
    %10 = vector.extract_strided_slice %6 {offsets = [0, 32], sizes = [128, 32], strides = [1, 1]} : vector<128x128xf32> to vector<128x32xf32>
    %c0_10 = arith.constant 0 : index
    %c0_11 = arith.constant 0 : index
    %c0_12 = arith.constant 0 : index
    %c0_13 = arith.constant 0 : index
    %11 = vector.load %arg2[%c0_10, %c0_11, %c0_12, %c0_13] : memref<4x3x128x128xbf16, #tpu.memory_space<vmem>>, vector<1x1x128x128xbf16>
    %12 = vector.shape_cast %11 : vector<1x1x128x128xbf16> to vector<128x128xbf16>
    %13 = arith.truncf %10 : vector<128x32xf32> to vector<128x32xbf16>
    %cst_14 = arith.constant dense<0.000000e+00> : vector<128x32xf32>
    %14 = tpu.matmul %12, %13, %cst_14 {dimension_numbers = #tpu.dot_dimension_numbers<[1], [0], [0], [1], [0, 0, 1, 1], [], []>} : vector<128x128xbf16>, vector<128x32xbf16>, vector<128x32xf32> -> vector<128x32xf32>
    %15 = arith.addf %9, %14 : vector<128x32xf32>
    %16 = vector.extract_strided_slice %6 {offsets = [0, 64], sizes = [128, 32], strides = [1, 1]} : vector<128x128xf32> to vector<128x32xf32>
    %c0_15 = arith.constant 0 : index
    %c1 = arith.constant 1 : index
    %c0_16 = arith.constant 0 : index
    %c0_17 = arith.constant 0 : index
    %17 = vector.load %arg2[%c0_15, %c1, %c0_16, %c0_17] : memref<4x3x128x128xbf16, #tpu.memory_space<vmem>>, vector<1x1x128x128xbf16>
    %18 = vector.shape_cast %17 : vector<1x1x128x128xbf16> to vector<128x128xbf16>
    %19 = arith.truncf %16 : vector<128x32xf32> to vector<128x32xbf16>
    %cst_18 = arith.constant dense<0.000000e+00> : vector<128x32xf32>
    %20 = tpu.matmul %18, %19, %cst_18 {dimension_numbers = #tpu.dot_dimension_numbers<[1], [0], [0], [1], [0, 0, 1, 1], [], []>} : vector<128x128xbf16>, vector<128x32xbf16>, vector<128x32xf32> -> vector<128x32xf32>
    %21 = arith.addf %15, %20 : vector<128x32xf32>
    %22 = vector.extract_strided_slice %6 {offsets = [0, 96], sizes = [128, 32], strides = [1, 1]} : vector<128x128xf32> to vector<128x32xf32>
    %c0_19 = arith.constant 0 : index
    %c2 = arith.constant 2 : index
    %c0_20 = arith.constant 0 : index
    %c0_21 = arith.constant 0 : index
    %23 = vector.load %arg2[%c0_19, %c2, %c0_20, %c0_21] : memref<4x3x128x128xbf16, #tpu.memory_space<vmem>>, vector<1x1x128x128xbf16>
    %24 = vector.shape_cast %23 : vector<1x1x128x128xbf16> to vector<128x128xbf16>
    %25 = arith.truncf %22 : vector<128x32xf32> to vector<128x32xbf16>
    %cst_22 = arith.constant dense<0.000000e+00> : vector<128x32xf32>
    %26 = tpu.matmul %24, %25, %cst_22 {dimension_numbers = #tpu.dot_dimension_numbers<[1], [0], [0], [1], [0, 0, 1, 1], [], []>} : vector<128x128xbf16>, vector<128x32xbf16>, vector<128x32xf32> -> vector<128x32xf32>
    %27 = arith.addf %21, %26 : vector<128x32xf32>
    %cst_23 = arith.constant 0.000000e+00 : f32
    %28 = vector.broadcast %cst_23 : f32 to vector<128x32xf32>
    %29 = arith.maximumf %27, %28 : vector<128x32xf32>
    %30 = arith.truncf %29 : vector<128x32xf32> to vector<128x32xbf16>
    %c0_24 = arith.constant 0 : index
    %c0_25 = arith.constant 0 : index
    %c0_26 = arith.constant 0 : index
    %31 = vector.load %arg3[%c0_24, %c0_25, %c0_26] : memref<4x32x128xbf16, #tpu.memory_space<vmem>>, vector<1x32x128xbf16>
    %32 = vector.shape_cast %31 : vector<1x32x128xbf16> to vector<32x128xbf16>
    %cst_27 = arith.constant dense<0.000000e+00> : vector<32x32xf32>
    %33 = tpu.matmul %32, %30, %cst_27 {dimension_numbers = #tpu.dot_dimension_numbers<[1], [0], [0], [1], [0, 0, 1, 1], [], []>} : vector<32x128xbf16>, vector<128x32xbf16>, vector<32x32xf32> -> vector<32x32xf32>
    %34 = vector.shape_cast %3 : vector<1x128xf32> to vector<1x128xf32>
    %35 = vector.broadcast %34 : vector<1x128xf32> to vector<8x128xf32>
    %36 = vector.extract_strided_slice %33 {offsets = [0, 0], sizes = [8, 32], strides = [1, 1]} : vector<32x32xf32> to vector<8x32xf32>
    %37 = vector.extract_strided_slice %1 {offsets = [0, 0], sizes = [32, 128], strides = [1, 1]} : vector<128x128xbf16> to vector<32x128xbf16>
    %38 = arith.truncf %36 : vector<8x32xf32> to vector<8x32xbf16>
    %cst_28 = arith.constant dense<0.000000e+00> : vector<8x128xf32>
    %39 = tpu.matmul %38, %37, %cst_28 {dimension_numbers = #tpu.dot_dimension_numbers<[1], [0], [0], [1], [0, 0, 1, 1], [], []>} : vector<8x32xbf16>, vector<32x128xbf16>, vector<8x128xf32> -> vector<8x128xf32>
    %40 = arith.addf %35, %39 : vector<8x128xf32>
    %41 = vector.extract_strided_slice %33 {offsets = [8, 0], sizes = [8, 32], strides = [1, 1]} : vector<32x32xf32> to vector<8x32xf32>
    %42 = vector.extract_strided_slice %1 {offsets = [32, 0], sizes = [32, 128], strides = [1, 1]} : vector<128x128xbf16> to vector<32x128xbf16>
    %43 = arith.truncf %41 : vector<8x32xf32> to vector<8x32xbf16>
    %cst_29 = arith.constant dense<0.000000e+00> : vector<8x128xf32>
    %44 = tpu.matmul %43, %42, %cst_29 {dimension_numbers = #tpu.dot_dimension_numbers<[1], [0], [0], [1], [0, 0, 1, 1], [], []>} : vector<8x32xbf16>, vector<32x128xbf16>, vector<8x128xf32> -> vector<8x128xf32>
    %45 = arith.addf %40, %44 : vector<8x128xf32>
    %46 = vector.extract_strided_slice %33 {offsets = [16, 0], sizes = [8, 32], strides = [1, 1]} : vector<32x32xf32> to vector<8x32xf32>
    %47 = vector.extract_strided_slice %1 {offsets = [64, 0], sizes = [32, 128], strides = [1, 1]} : vector<128x128xbf16> to vector<32x128xbf16>
    %48 = arith.truncf %46 : vector<8x32xf32> to vector<8x32xbf16>
    %cst_30 = arith.constant dense<0.000000e+00> : vector<8x128xf32>
    %49 = tpu.matmul %48, %47, %cst_30 {dimension_numbers = #tpu.dot_dimension_numbers<[1], [0], [0], [1], [0, 0, 1, 1], [], []>} : vector<8x32xbf16>, vector<32x128xbf16>, vector<8x128xf32> -> vector<8x128xf32>
    %50 = arith.addf %45, %49 : vector<8x128xf32>
    %51 = vector.extract_strided_slice %33 {offsets = [24, 0], sizes = [8, 32], strides = [1, 1]} : vector<32x32xf32> to vector<8x32xf32>
    %52 = vector.extract_strided_slice %1 {offsets = [96, 0], sizes = [32, 128], strides = [1, 1]} : vector<128x128xbf16> to vector<32x128xbf16>
    %53 = arith.truncf %51 : vector<8x32xf32> to vector<8x32xbf16>
    %cst_31 = arith.constant dense<0.000000e+00> : vector<8x128xf32>
    %54 = tpu.matmul %53, %52, %cst_31 {dimension_numbers = #tpu.dot_dimension_numbers<[1], [0], [0], [1], [0, 0, 1, 1], [], []>} : vector<8x32xbf16>, vector<32x128xbf16>, vector<8x128xf32> -> vector<8x128xf32>
    %55 = arith.addf %50, %54 : vector<8x128xf32>
    %cst_32 = arith.constant dense<0xFF800000> : vector<8xf32>
    %56 = vector.multi_reduction <maximumf>, %55, %cst_32 [1] : vector<8x128xf32> to vector<8xf32>
    %57 = vector.shape_cast %56 : vector<8xf32> to vector<8x1xf32>
    %58 = vector.broadcast %57 : vector<8x1xf32> to vector<8x128xf32>
    %59 = arith.subf %55, %58 : vector<8x128xf32>
    %60 = math.exp %59 : vector<8x128xf32>
    %cst_33 = arith.constant dense<0.000000e+00> : vector<8xf32>
    %61 = vector.multi_reduction <add>, %60, %cst_33 [1] : vector<8x128xf32> to vector<8xf32>
    %62 = vector.shape_cast %61 : vector<8xf32> to vector<8x1xf32>
    %63 = math.log %62 : vector<8x1xf32>
    %64 = vector.broadcast %63 : vector<8x1xf32> to vector<8x128xf32>
    %65 = arith.subf %59, %64 : vector<8x128xf32>
    %c0_34 = arith.constant 0 : index
    %c0_35 = arith.constant 0 : index
    %c0_36 = arith.constant 0 : index
    %66 = vector.load %arg8[%c0_34, %c0_35, %c0_36] : memref<4x8x128xf32, #tpu.memory_space<vmem>>, vector<1x8x128xf32>
    %67 = vector.shape_cast %66 : vector<1x8x128xf32> to vector<8x128xf32>
    %68 = vector.shape_cast %65 : vector<8x128xf32> to vector<1x8x128xf32>
    tpu.vector_store %arg8[%c0_34, %c0_35, %c0_36], %68 {strides = array<i32>} : memref<4x8x128xf32, #tpu.memory_space<vmem>>, vector<1x8x128xf32>,
    %c1_37 = arith.constant 1 : index
    %c0_38 = arith.constant 0 : index
    %c0_39 = arith.constant 0 : index
    %69 = vector.load %arg1[%c1_37, %c0_38, %c0_39] : memref<4x128x8xbf16, #tpu.memory_space<vmem>>, vector<1x128x8xbf16>
    %70 = vector.shape_cast %69 : vector<1x128x8xbf16> to vector<128x8xbf16>
    %cst_40 = arith.constant dense<0.000000e+00> : vector<128x128xf32>
    %71 = tpu.matmul %70, %0, %cst_40 {dimension_numbers = #tpu.dot_dimension_numbers<[1], [0], [0], [1], [0, 0, 1, 1], [], []>} : vector<128x8xbf16>, vector<8x128xbf16>, vector<128x128xf32> -> vector<128x128xf32>
    %72 = vector.extract_strided_slice %71 {offsets = [0, 0], sizes = [128, 32], strides = [1, 1]} : vector<128x128xf32> to vector<128x32xf32>
    %73 = vector.broadcast %2 : vector<1x32xf32> to vector<128x32xf32>
    %74 = arith.addf %72, %73 : vector<128x32xf32>
    %75 = vector.extract_strided_slice %71 {offsets = [0, 32], sizes = [128, 32], strides = [1, 1]} : vector<128x128xf32> to vector<128x32xf32>
    %c1_41 = arith.constant 1 : index
    %c0_42 = arith.constant 0 : index
    %c0_43 = arith.constant 0 : index
    %c0_44 = arith.constant 0 : index
    %76 = vector.load %arg2[%c1_41, %c0_42, %c0_43, %c0_44] : memref<4x3x128x128xbf16, #tpu.memory_space<vmem>>, vector<1x1x128x128xbf16>
    %77 = vector.shape_cast %76 : vector<1x1x128x128xbf16> to vector<128x128xbf16>
    %78 = arith.truncf %75 : vector<128x32xf32> to vector<128x32xbf16>
    %cst_45 = arith.constant dense<0.000000e+00> : vector<128x32xf32>
    %79 = tpu.matmul %77, %78, %cst_45 {dimension_numbers = #tpu.dot_dimension_numbers<[1], [0], [0], [1], [0, 0, 1, 1], [], []>} : vector<128x128xbf16>, vector<128x32xbf16>, vector<128x32xf32> -> vector<128x32xf32>
    %80 = arith.addf %74, %79 : vector<128x32xf32>
    %81 = vector.extract_strided_slice %71 {offsets = [0, 64], sizes = [128, 32], strides = [1, 1]} : vector<128x128xf32> to vector<128x32xf32>
    %c1_46 = arith.constant 1 : index
    %c1_47 = arith.constant 1 : index
    %c0_48 = arith.constant 0 : index
    %c0_49 = arith.constant 0 : index
    %82 = vector.load %arg2[%c1_46, %c1_47, %c0_48, %c0_49] : memref<4x3x128x128xbf16, #tpu.memory_space<vmem>>, vector<1x1x128x128xbf16>
    %83 = vector.shape_cast %82 : vector<1x1x128x128xbf16> to vector<128x128xbf16>
    %84 = arith.truncf %81 : vector<128x32xf32> to vector<128x32xbf16>
    %cst_50 = arith.constant dense<0.000000e+00> : vector<128x32xf32>
    %85 = tpu.matmul %83, %84, %cst_50 {dimension_numbers = #tpu.dot_dimension_numbers<[1], [0], [0], [1], [0, 0, 1, 1], [], []>} : vector<128x128xbf16>, vector<128x32xbf16>, vector<128x32xf32> -> vector<128x32xf32>
    %86 = arith.addf %80, %85 : vector<128x32xf32>
    %87 = vector.extract_strided_slice %71 {offsets = [0, 96], sizes = [128, 32], strides = [1, 1]} : vector<128x128xf32> to vector<128x32xf32>
    %c1_51 = arith.constant 1 : index
    %c2_52 = arith.constant 2 : index
    %c0_53 = arith.constant 0 : index
    %c0_54 = arith.constant 0 : index
    %88 = vector.load %arg2[%c1_51, %c2_52, %c0_53, %c0_54] : memref<4x3x128x128xbf16, #tpu.memory_space<vmem>>, vector<1x1x128x128xbf16>
    %89 = vector.shape_cast %88 : vector<1x1x128x128xbf16> to vector<128x128xbf16>
    %90 = arith.truncf %87 : vector<128x32xf32> to vector<128x32xbf16>
    %cst_55 = arith.constant dense<0.000000e+00> : vector<128x32xf32>
    %91 = tpu.matmul %89, %90, %cst_55 {dimension_numbers = #tpu.dot_dimension_numbers<[1], [0], [0], [1], [0, 0, 1, 1], [], []>} : vector<128x128xbf16>, vector<128x32xbf16>, vector<128x32xf32> -> vector<128x32xf32>
    %92 = arith.addf %86, %91 : vector<128x32xf32>
    %cst_56 = arith.constant 0.000000e+00 : f32
    %93 = vector.broadcast %cst_56 : f32 to vector<128x32xf32>
    %94 = arith.maximumf %92, %93 : vector<128x32xf32>
    %95 = arith.truncf %94 : vector<128x32xf32> to vector<128x32xbf16>
    %c1_57 = arith.constant 1 : index
    %c0_58 = arith.constant 0 : index
    %c0_59 = arith.constant 0 : index
    %96 = vector.load %arg3[%c1_57, %c0_58, %c0_59] : memref<4x32x128xbf16, #tpu.memory_space<vmem>>, vector<1x32x128xbf16>
    %97 = vector.shape_cast %96 : vector<1x32x128xbf16> to vector<32x128xbf16>
    %cst_60 = arith.constant dense<0.000000e+00> : vector<32x32xf32>
    %98 = tpu.matmul %97, %95, %cst_60 {dimension_numbers = #tpu.dot_dimension_numbers<[1], [0], [0], [1], [0, 0, 1, 1], [], []>} : vector<32x128xbf16>, vector<128x32xbf16>, vector<32x32xf32> -> vector<32x32xf32>
    %99 = vector.shape_cast %3 : vector<1x128xf32> to vector<1x128xf32>
    %100 = vector.broadcast %99 : vector<1x128xf32> to vector<8x128xf32>
    %101 = vector.extract_strided_slice %98 {offsets = [0, 0], sizes = [8, 32], strides = [1, 1]} : vector<32x32xf32> to vector<8x32xf32>
    %102 = vector.extract_strided_slice %1 {offsets = [0, 0], sizes = [32, 128], strides = [1, 1]} : vector<128x128xbf16> to vector<32x128xbf16>
    %103 = arith.truncf %101 : vector<8x32xf32> to vector<8x32xbf16>
    %cst_61 = arith.constant dense<0.000000e+00> : vector<8x128xf32>
    %104 = tpu.matmul %103, %102, %cst_61 {dimension_numbers = #tpu.dot_dimension_numbers<[1], [0], [0], [1], [0, 0, 1, 1], [], []>} : vector<8x32xbf16>, vector<32x128xbf16>, vector<8x128xf32> -> vector<8x128xf32>
    %105 = arith.addf %100, %104 : vector<8x128xf32>
    %106 = vector.extract_strided_slice %98 {offsets = [8, 0], sizes = [8, 32], strides = [1, 1]} : vector<32x32xf32> to vector<8x32xf32>
    %107 = vector.extract_strided_slice %1 {offsets = [32, 0], sizes = [32, 128], strides = [1, 1]} : vector<128x128xbf16> to vector<32x128xbf16>
    %108 = arith.truncf %106 : vector<8x32xf32> to vector<8x32xbf16>
    %cst_62 = arith.constant dense<0.000000e+00> : vector<8x128xf32>
    %109 = tpu.matmul %108, %107, %cst_62 {dimension_numbers = #tpu.dot_dimension_numbers<[1], [0], [0], [1], [0, 0, 1, 1], [], []>} : vector<8x32xbf16>, vector<32x128xbf16>, vector<8x128xf32> -> vector<8x128xf32>
    %110 = arith.addf %105, %109 : vector<8x128xf32>
    %111 = vector.extract_strided_slice %98 {offsets = [16, 0], sizes = [8, 32], strides = [1, 1]} : vector<32x32xf32> to vector<8x32xf32>
    %112 = vector.extract_strided_slice %1 {offsets = [64, 0], sizes = [32, 128], strides = [1, 1]} : vector<128x128xbf16> to vector<32x128xbf16>
    %113 = arith.truncf %111 : vector<8x32xf32> to vector<8x32xbf16>
    %cst_63 = arith.constant dense<0.000000e+00> : vector<8x128xf32>
    %114 = tpu.matmul %113, %112, %cst_63 {dimension_numbers = #tpu.dot_dimension_numbers<[1], [0], [0], [1], [0, 0, 1, 1], [], []>} : vector<8x32xbf16>, vector<32x128xbf16>, vector<8x128xf32> -> vector<8x128xf32>
    %115 = arith.addf %110, %114 : vector<8x128xf32>
    %116 = vector.extract_strided_slice %98 {offsets = [24, 0], sizes = [8, 32], strides = [1, 1]} : vector<32x32xf32> to vector<8x32xf32>
    %117 = vector.extract_strided_slice %1 {offsets = [96, 0], sizes = [32, 128], strides = [1, 1]} : vector<128x128xbf16> to vector<32x128xbf16>
    %118 = arith.truncf %116 : vector<8x32xf32> to vector<8x32xbf16>
    %cst_64 = arith.constant dense<0.000000e+00> : vector<8x128xf32>
    %119 = tpu.matmul %118, %117, %cst_64 {dimension_numbers = #tpu.dot_dimension_numbers<[1], [0], [0], [1], [0, 0, 1, 1], [], []>} : vector<8x32xbf16>, vector<32x128xbf16>, vector<8x128xf32> -> vector<8x128xf32>
    %120 = arith.addf %115, %119 : vector<8x128xf32>
    %cst_65 = arith.constant dense<0xFF800000> : vector<8xf32>
    %121 = vector.multi_reduction <maximumf>, %120, %cst_65 [1] : vector<8x128xf32> to vector<8xf32>
    %122 = vector.shape_cast %121 : vector<8xf32> to vector<8x1xf32>
    %123 = vector.broadcast %122 : vector<8x1xf32> to vector<8x128xf32>
    %124 = arith.subf %120, %123 : vector<8x128xf32>
    %125 = math.exp %124 : vector<8x128xf32>
    %cst_66 = arith.constant dense<0.000000e+00> : vector<8xf32>
    %126 = vector.multi_reduction <add>, %125, %cst_66 [1] : vector<8x128xf32> to vector<8xf32>
    %127 = vector.shape_cast %126 : vector<8xf32> to vector<8x1xf32>
    %128 = math.log %127 : vector<8x1xf32>
    %129 = vector.broadcast %128 : vector<8x1xf32> to vector<8x128xf32>
    %130 = arith.subf %124, %129 : vector<8x128xf32>
    %c1_67 = arith.constant 1 : index
    %c0_68 = arith.constant 0 : index
    %c0_69 = arith.constant 0 : index
    %131 = vector.load %arg8[%c1_67, %c0_68, %c0_69] : memref<4x8x128xf32, #tpu.memory_space<vmem>>, vector<1x8x128xf32>
    %132 = vector.shape_cast %131 : vector<1x8x128xf32> to vector<8x128xf32>
    %133 = vector.shape_cast %130 : vector<8x128xf32> to vector<1x8x128xf32>
    tpu.vector_store %arg8[%c1_67, %c0_68, %c0_69], %133 {strides = array<i32>} : memref<4x8x128xf32, #tpu.memory_space<vmem>>, vector<1x8x128xf32>,
    %c2_70 = arith.constant 2 : index
    %c0_71 = arith.constant 0 : index
    %c0_72 = arith.constant 0 : index
    %134 = vector.load %arg1[%c2_70, %c0_71, %c0_72] : memref<4x128x8xbf16, #tpu.memory_space<vmem>>, vector<1x128x8xbf16>
    %135 = vector.shape_cast %134 : vector<1x128x8xbf16> to vector<128x8xbf16>
    %cst_73 = arith.constant dense<0.000000e+00> : vector<128x128xf32>
    %136 = tpu.matmul %135, %0, %cst_73 {dimension_numbers = #tpu.dot_dimension_numbers<[1], [0], [0], [1], [0, 0, 1, 1], [], []>} : vector<128x8xbf16>, vector<8x128xbf16>, vector<128x128xf32> -> vector<128x128xf32>
    %137 = vector.extract_strided_slice %136 {offsets = [0, 0], sizes = [128, 32], strides = [1, 1]} : vector<128x128xf32> to vector<128x32xf32>
    %138 = vector.broadcast %2 : vector<1x32xf32> to vector<128x32xf32>
    %139 = arith.addf %137, %138 : vector<128x32xf32>
    %140 = vector.extract_strided_slice %136 {offsets = [0, 32], sizes = [128, 32], strides = [1, 1]} : vector<128x128xf32> to vector<128x32xf32>
    %c2_74 = arith.constant 2 : index
    %c0_75 = arith.constant 0 : index
    %c0_76 = arith.constant 0 : index
    %c0_77 = arith.constant 0 : index
    %141 = vector.load %arg2[%c2_74, %c0_75, %c0_76, %c0_77] : memref<4x3x128x128xbf16, #tpu.memory_space<vmem>>, vector<1x1x128x128xbf16>
    %142 = vector.shape_cast %141 : vector<1x1x128x128xbf16> to vector<128x128xbf16>
    %143 = arith.truncf %140 : vector<128x32xf32> to vector<128x32xbf16>
    %cst_78 = arith.constant dense<0.000000e+00> : vector<128x32xf32>
    %144 = tpu.matmul %142, %143, %cst_78 {dimension_numbers = #tpu.dot_dimension_numbers<[1], [0], [0], [1], [0, 0, 1, 1], [], []>} : vector<128x128xbf16>, vector<128x32xbf16>, vector<128x32xf32> -> vector<128x32xf32>
    %145 = arith.addf %139, %144 : vector<128x32xf32>
    %146 = vector.extract_strided_slice %136 {offsets = [0, 64], sizes = [128, 32], strides = [1, 1]} : vector<128x128xf32> to vector<128x32xf32>
    %c2_79 = arith.constant 2 : index
    %c1_80 = arith.constant 1 : index
    %c0_81 = arith.constant 0 : index
    %c0_82 = arith.constant 0 : index
    %147 = vector.load %arg2[%c2_79, %c1_80, %c0_81, %c0_82] : memref<4x3x128x128xbf16, #tpu.memory_space<vmem>>, vector<1x1x128x128xbf16>
    %148 = vector.shape_cast %147 : vector<1x1x128x128xbf16> to vector<128x128xbf16>
    %149 = arith.truncf %146 : vector<128x32xf32> to vector<128x32xbf16>
    %cst_83 = arith.constant dense<0.000000e+00> : vector<128x32xf32>
    %150 = tpu.matmul %148, %149, %cst_83 {dimension_numbers = #tpu.dot_dimension_numbers<[1], [0], [0], [1], [0, 0, 1, 1], [], []>} : vector<128x128xbf16>, vector<128x32xbf16>, vector<128x32xf32> -> vector<128x32xf32>
    %151 = arith.addf %145, %150 : vector<128x32xf32>
    %152 = vector.extract_strided_slice %136 {offsets = [0, 96], sizes = [128, 32], strides = [1, 1]} : vector<128x128xf32> to vector<128x32xf32>
    %c2_84 = arith.constant 2 : index
    %c2_85 = arith.constant 2 : index
    %c0_86 = arith.constant 0 : index
    %c0_87 = arith.constant 0 : index
    %153 = vector.load %arg2[%c2_84, %c2_85, %c0_86, %c0_87] : memref<4x3x128x128xbf16, #tpu.memory_space<vmem>>, vector<1x1x128x128xbf16>
    %154 = vector.shape_cast %153 : vector<1x1x128x128xbf16> to vector<128x128xbf16>
    %155 = arith.truncf %152 : vector<128x32xf32> to vector<128x32xbf16>
    %cst_88 = arith.constant dense<0.000000e+00> : vector<128x32xf32>
    %156 = tpu.matmul %154, %155, %cst_88 {dimension_numbers = #tpu.dot_dimension_numbers<[1], [0], [0], [1], [0, 0, 1, 1], [], []>} : vector<128x128xbf16>, vector<128x32xbf16>, vector<128x32xf32> -> vector<128x32xf32>
    %157 = arith.addf %151, %156 : vector<128x32xf32>
    %cst_89 = arith.constant 0.000000e+00 : f32
    %158 = vector.broadcast %cst_89 : f32 to vector<128x32xf32>
    %159 = arith.maximumf %157, %158 : vector<128x32xf32>
    %160 = arith.truncf %159 : vector<128x32xf32> to vector<128x32xbf16>
    %c2_90 = arith.constant 2 : index
    %c0_91 = arith.constant 0 : index
    %c0_92 = arith.constant 0 : index
    %161 = vector.load %arg3[%c2_90, %c0_91, %c0_92] : memref<4x32x128xbf16, #tpu.memory_space<vmem>>, vector<1x32x128xbf16>
    %162 = vector.shape_cast %161 : vector<1x32x128xbf16> to vector<32x128xbf16>
    %cst_93 = arith.constant dense<0.000000e+00> : vector<32x32xf32>
    %163 = tpu.matmul %162, %160, %cst_93 {dimension_numbers = #tpu.dot_dimension_numbers<[1], [0], [0], [1], [0, 0, 1, 1], [], []>} : vector<32x128xbf16>, vector<128x32xbf16>, vector<32x32xf32> -> vector<32x32xf32>
    %164 = vector.shape_cast %3 : vector<1x128xf32> to vector<1x128xf32>
    %165 = vector.broadcast %164 : vector<1x128xf32> to vector<8x128xf32>
    %166 = vector.extract_strided_slice %163 {offsets = [0, 0], sizes = [8, 32], strides = [1, 1]} : vector<32x32xf32> to vector<8x32xf32>
    %167 = vector.extract_strided_slice %1 {offsets = [0, 0], sizes = [32, 128], strides = [1, 1]} : vector<128x128xbf16> to vector<32x128xbf16>
    %168 = arith.truncf %166 : vector<8x32xf32> to vector<8x32xbf16>
    %cst_94 = arith.constant dense<0.000000e+00> : vector<8x128xf32>
    %169 = tpu.matmul %168, %167, %cst_94 {dimension_numbers = #tpu.dot_dimension_numbers<[1], [0], [0], [1], [0, 0, 1, 1], [], []>} : vector<8x32xbf16>, vector<32x128xbf16>, vector<8x128xf32> -> vector<8x128xf32>
    %170 = arith.addf %165, %169 : vector<8x128xf32>
    %171 = vector.extract_strided_slice %163 {offsets = [8, 0], sizes = [8, 32], strides = [1, 1]} : vector<32x32xf32> to vector<8x32xf32>
    %172 = vector.extract_strided_slice %1 {offsets = [32, 0], sizes = [32, 128], strides = [1, 1]} : vector<128x128xbf16> to vector<32x128xbf16>
    %173 = arith.truncf %171 : vector<8x32xf32> to vector<8x32xbf16>
    %cst_95 = arith.constant dense<0.000000e+00> : vector<8x128xf32>
    %174 = tpu.matmul %173, %172, %cst_95 {dimension_numbers = #tpu.dot_dimension_numbers<[1], [0], [0], [1], [0, 0, 1, 1], [], []>} : vector<8x32xbf16>, vector<32x128xbf16>, vector<8x128xf32> -> vector<8x128xf32>
    %175 = arith.addf %170, %174 : vector<8x128xf32>
    %176 = vector.extract_strided_slice %163 {offsets = [16, 0], sizes = [8, 32], strides = [1, 1]} : vector<32x32xf32> to vector<8x32xf32>
    %177 = vector.extract_strided_slice %1 {offsets = [64, 0], sizes = [32, 128], strides = [1, 1]} : vector<128x128xbf16> to vector<32x128xbf16>
    %178 = arith.truncf %176 : vector<8x32xf32> to vector<8x32xbf16>
    %cst_96 = arith.constant dense<0.000000e+00> : vector<8x128xf32>
    %179 = tpu.matmul %178, %177, %cst_96 {dimension_numbers = #tpu.dot_dimension_numbers<[1], [0], [0], [1], [0, 0, 1, 1], [], []>} : vector<8x32xbf16>, vector<32x128xbf16>, vector<8x128xf32> -> vector<8x128xf32>
    %180 = arith.addf %175, %179 : vector<8x128xf32>
    %181 = vector.extract_strided_slice %163 {offsets = [24, 0], sizes = [8, 32], strides = [1, 1]} : vector<32x32xf32> to vector<8x32xf32>
    %182 = vector.extract_strided_slice %1 {offsets = [96, 0], sizes = [32, 128], strides = [1, 1]} : vector<128x128xbf16> to vector<32x128xbf16>
    %183 = arith.truncf %181 : vector<8x32xf32> to vector<8x32xbf16>
    %cst_97 = arith.constant dense<0.000000e+00> : vector<8x128xf32>
    %184 = tpu.matmul %183, %182, %cst_97 {dimension_numbers = #tpu.dot_dimension_numbers<[1], [0], [0], [1], [0, 0, 1, 1], [], []>} : vector<8x32xbf16>, vector<32x128xbf16>, vector<8x128xf32> -> vector<8x128xf32>
    %185 = arith.addf %180, %184 : vector<8x128xf32>
    %cst_98 = arith.constant dense<0xFF800000> : vector<8xf32>
    %186 = vector.multi_reduction <maximumf>, %185, %cst_98 [1] : vector<8x128xf32> to vector<8xf32>
    %187 = vector.shape_cast %186 : vector<8xf32> to vector<8x1xf32>
    %188 = vector.broadcast %187 : vector<8x1xf32> to vector<8x128xf32>
    %189 = arith.subf %185, %188 : vector<8x128xf32>
    %190 = math.exp %189 : vector<8x128xf32>
    %cst_99 = arith.constant dense<0.000000e+00> : vector<8xf32>
    %191 = vector.multi_reduction <add>, %190, %cst_99 [1] : vector<8x128xf32> to vector<8xf32>
    %192 = vector.shape_cast %191 : vector<8xf32> to vector<8x1xf32>
    %193 = math.log %192 : vector<8x1xf32>
    %194 = vector.broadcast %193 : vector<8x1xf32> to vector<8x128xf32>
    %195 = arith.subf %189, %194 : vector<8x128xf32>
    %c2_100 = arith.constant 2 : index
    %c0_101 = arith.constant 0 : index
    %c0_102 = arith.constant 0 : index
    %196 = vector.load %arg8[%c2_100, %c0_101, %c0_102] : memref<4x8x128xf32, #tpu.memory_space<vmem>>, vector<1x8x128xf32>
    %197 = vector.shape_cast %196 : vector<1x8x128xf32> to vector<8x128xf32>
    %198 = vector.shape_cast %195 : vector<8x128xf32> to vector<1x8x128xf32>
    tpu.vector_store %arg8[%c2_100, %c0_101, %c0_102], %198 {strides = array<i32>} : memref<4x8x128xf32, #tpu.memory_space<vmem>>, vector<1x8x128xf32>,
    %c3 = arith.constant 3 : index
    %c0_103 = arith.constant 0 : index
    %c0_104 = arith.constant 0 : index
    %199 = vector.load %arg1[%c3, %c0_103, %c0_104] : memref<4x128x8xbf16, #tpu.memory_space<vmem>>, vector<1x128x8xbf16>
    %200 = vector.shape_cast %199 : vector<1x128x8xbf16> to vector<128x8xbf16>
    %cst_105 = arith.constant dense<0.000000e+00> : vector<128x128xf32>
    %201 = tpu.matmul %200, %0, %cst_105 {dimension_numbers = #tpu.dot_dimension_numbers<[1], [0], [0], [1], [0, 0, 1, 1], [], []>} : vector<128x8xbf16>, vector<8x128xbf16>, vector<128x128xf32> -> vector<128x128xf32>
    %202 = vector.extract_strided_slice %201 {offsets = [0, 0], sizes = [128, 32], strides = [1, 1]} : vector<128x128xf32> to vector<128x32xf32>
    %203 = vector.broadcast %2 : vector<1x32xf32> to vector<128x32xf32>
    %204 = arith.addf %202, %203 : vector<128x32xf32>
    %205 = vector.extract_strided_slice %201 {offsets = [0, 32], sizes = [128, 32], strides = [1, 1]} : vector<128x128xf32> to vector<128x32xf32>
    %c3_106 = arith.constant 3 : index
    %c0_107 = arith.constant 0 : index
    %c0_108 = arith.constant 0 : index
    %c0_109 = arith.constant 0 : index
    %206 = vector.load %arg2[%c3_106, %c0_107, %c0_108, %c0_109] : memref<4x3x128x128xbf16, #tpu.memory_space<vmem>>, vector<1x1x128x128xbf16>
    %207 = vector.shape_cast %206 : vector<1x1x128x128xbf16> to vector<128x128xbf16>
    %208 = arith.truncf %205 : vector<128x32xf32> to vector<128x32xbf16>
    %cst_110 = arith.constant dense<0.000000e+00> : vector<128x32xf32>
    %209 = tpu.matmul %207, %208, %cst_110 {dimension_numbers = #tpu.dot_dimension_numbers<[1], [0], [0], [1], [0, 0, 1, 1], [], []>} : vector<128x128xbf16>, vector<128x32xbf16>, vector<128x32xf32> -> vector<128x32xf32>
    %210 = arith.addf %204, %209 : vector<128x32xf32>
    %211 = vector.extract_strided_slice %201 {offsets = [0, 64], sizes = [128, 32], strides = [1, 1]} : vector<128x128xf32> to vector<128x32xf32>
    %c3_111 = arith.constant 3 : index
    %c1_112 = arith.constant 1 : index
    %c0_113 = arith.constant 0 : index
    %c0_114 = arith.constant 0 : index
    %212 = vector.load %arg2[%c3_111, %c1_112, %c0_113, %c0_114] : memref<4x3x128x128xbf16, #tpu.memory_space<vmem>>, vector<1x1x128x128xbf16>
    %213 = vector.shape_cast %212 : vector<1x1x128x128xbf16> to vector<128x128xbf16>
    %214 = arith.truncf %211 : vector<128x32xf32> to vector<128x32xbf16>
    %cst_115 = arith.constant dense<0.000000e+00> : vector<128x32xf32>
    %215 = tpu.matmul %213, %214, %cst_115 {dimension_numbers = #tpu.dot_dimension_numbers<[1], [0], [0], [1], [0, 0, 1, 1], [], []>} : vector<128x128xbf16>, vector<128x32xbf16>, vector<128x32xf32> -> vector<128x32xf32>
    %216 = arith.addf %210, %215 : vector<128x32xf32>
    %217 = vector.extract_strided_slice %201 {offsets = [0, 96], sizes = [128, 32], strides = [1, 1]} : vector<128x128xf32> to vector<128x32xf32>
    %c3_116 = arith.constant 3 : index
    %c2_117 = arith.constant 2 : index
    %c0_118 = arith.constant 0 : index
    %c0_119 = arith.constant 0 : index
    %218 = vector.load %arg2[%c3_116, %c2_117, %c0_118, %c0_119] : memref<4x3x128x128xbf16, #tpu.memory_space<vmem>>, vector<1x1x128x128xbf16>
    %219 = vector.shape_cast %218 : vector<1x1x128x128xbf16> to vector<128x128xbf16>
    %220 = arith.truncf %217 : vector<128x32xf32> to vector<128x32xbf16>
    %cst_120 = arith.constant dense<0.000000e+00> : vector<128x32xf32>
    %221 = tpu.matmul %219, %220, %cst_120 {dimension_numbers = #tpu.dot_dimension_numbers<[1], [0], [0], [1], [0, 0, 1, 1], [], []>} : vector<128x128xbf16>, vector<128x32xbf16>, vector<128x32xf32> -> vector<128x32xf32>
    %222 = arith.addf %216, %221 : vector<128x32xf32>
    %cst_121 = arith.constant 0.000000e+00 : f32
    %223 = vector.broadcast %cst_121 : f32 to vector<128x32xf32>
    %224 = arith.maximumf %222, %223 : vector<128x32xf32>
    %225 = arith.truncf %224 : vector<128x32xf32> to vector<128x32xbf16>
    %c3_122 = arith.constant 3 : index
    %c0_123 = arith.constant 0 : index
    %c0_124 = arith.constant 0 : index
    %226 = vector.load %arg3[%c3_122, %c0_123, %c0_124] : memref<4x32x128xbf16, #tpu.memory_space<vmem>>, vector<1x32x128xbf16>
    %227 = vector.shape_cast %226 : vector<1x32x128xbf16> to vector<32x128xbf16>
    %cst_125 = arith.constant dense<0.000000e+00> : vector<32x32xf32>
    %228 = tpu.matmul %227, %225, %cst_125 {dimension_numbers = #tpu.dot_dimension_numbers<[1], [0], [0], [1], [0, 0, 1, 1], [], []>} : vector<32x128xbf16>, vector<128x32xbf16>, vector<32x32xf32> -> vector<32x32xf32>
    %229 = vector.shape_cast %3 : vector<1x128xf32> to vector<1x128xf32>
    %230 = vector.broadcast %229 : vector<1x128xf32> to vector<8x128xf32>
    %231 = vector.extract_strided_slice %228 {offsets = [0, 0], sizes = [8, 32], strides = [1, 1]} : vector<32x32xf32> to vector<8x32xf32>
    %232 = vector.extract_strided_slice %1 {offsets = [0, 0], sizes = [32, 128], strides = [1, 1]} : vector<128x128xbf16> to vector<32x128xbf16>
    %233 = arith.truncf %231 : vector<8x32xf32> to vector<8x32xbf16>
    %cst_126 = arith.constant dense<0.000000e+00> : vector<8x128xf32>
    %234 = tpu.matmul %233, %232, %cst_126 {dimension_numbers = #tpu.dot_dimension_numbers<[1], [0], [0], [1], [0, 0, 1, 1], [], []>} : vector<8x32xbf16>, vector<32x128xbf16>, vector<8x128xf32> -> vector<8x128xf32>
    %235 = arith.addf %230, %234 : vector<8x128xf32>
    %236 = vector.extract_strided_slice %228 {offsets = [8, 0], sizes = [8, 32], strides = [1, 1]} : vector<32x32xf32> to vector<8x32xf32>
    %237 = vector.extract_strided_slice %1 {offsets = [32, 0], sizes = [32, 128], strides = [1, 1]} : vector<128x128xbf16> to vector<32x128xbf16>
    %238 = arith.truncf %236 : vector<8x32xf32> to vector<8x32xbf16>
    %cst_127 = arith.constant dense<0.000000e+00> : vector<8x128xf32>
    %239 = tpu.matmul %238, %237, %cst_127 {dimension_numbers = #tpu.dot_dimension_numbers<[1], [0], [0], [1], [0, 0, 1, 1], [], []>} : vector<8x32xbf16>, vector<32x128xbf16>, vector<8x128xf32> -> vector<8x128xf32>
    %240 = arith.addf %235, %239 : vector<8x128xf32>
    %241 = vector.extract_strided_slice %228 {offsets = [16, 0], sizes = [8, 32], strides = [1, 1]} : vector<32x32xf32> to vector<8x32xf32>
    %242 = vector.extract_strided_slice %1 {offsets = [64, 0], sizes = [32, 128], strides = [1, 1]} : vector<128x128xbf16> to vector<32x128xbf16>
    %243 = arith.truncf %241 : vector<8x32xf32> to vector<8x32xbf16>
    %cst_128 = arith.constant dense<0.000000e+00> : vector<8x128xf32>
    %244 = tpu.matmul %243, %242, %cst_128 {dimension_numbers = #tpu.dot_dimension_numbers<[1], [0], [0], [1], [0, 0, 1, 1], [], []>} : vector<8x32xbf16>, vector<32x128xbf16>, vector<8x128xf32> -> vector<8x128xf32>
    %245 = arith.addf %240, %244 : vector<8x128xf32>
    %246 = vector.extract_strided_slice %228 {offsets = [24, 0], sizes = [8, 32], strides = [1, 1]} : vector<32x32xf32> to vector<8x32xf32>
    %247 = vector.extract_strided_slice %1 {offsets = [96, 0], sizes = [32, 128], strides = [1, 1]} : vector<128x128xbf16> to vector<32x128xbf16>
    %248 = arith.truncf %246 : vector<8x32xf32> to vector<8x32xbf16>
    %cst_129 = arith.constant dense<0.000000e+00> : vector<8x128xf32>
    %249 = tpu.matmul %248, %247, %cst_129 {dimension_numbers = #tpu.dot_dimension_numbers<[1], [0], [0], [1], [0, 0, 1, 1], [], []>} : vector<8x32xbf16>, vector<32x128xbf16>, vector<8x128xf32> -> vector<8x128xf32>
    %250 = arith.addf %245, %249 : vector<8x128xf32>
    %cst_130 = arith.constant dense<0xFF800000> : vector<8xf32>
    %251 = vector.multi_reduction <maximumf>, %250, %cst_130 [1] : vector<8x128xf32> to vector<8xf32>
    %252 = vector.shape_cast %251 : vector<8xf32> to vector<8x1xf32>
    %253 = vector.broadcast %252 : vector<8x1xf32> to vector<8x128xf32>
    %254 = arith.subf %250, %253 : vector<8x128xf32>
    %255 = math.exp %254 : vector<8x128xf32>
    %cst_131 = arith.constant dense<0.000000e+00> : vector<8xf32>
    %256 = vector.multi_reduction <add>, %255, %cst_131 [1] : vector<8x128xf32> to vector<8xf32>
    %257 = vector.shape_cast %256 : vector<8xf32> to vector<8x1xf32>
    %258 = math.log %257 : vector<8x1xf32>
    %259 = vector.broadcast %258 : vector<8x1xf32> to vector<8x128xf32>
    %260 = arith.subf %254, %259 : vector<8x128xf32>
    %c3_132 = arith.constant 3 : index
    %c0_133 = arith.constant 0 : index
    %c0_134 = arith.constant 0 : index
    %261 = vector.load %arg8[%c3_132, %c0_133, %c0_134] : memref<4x8x128xf32, #tpu.memory_space<vmem>>, vector<1x8x128xf32>
    %262 = vector.shape_cast %261 : vector<1x8x128xf32> to vector<8x128xf32>
    %263 = vector.shape_cast %260 : vector<8x128xf32> to vector<1x8x128xf32>
    tpu.vector_store %arg8[%c3_132, %c0_133, %c0_134], %263 {strides = array<i32>} : memref<4x8x128xf32, #tpu.memory_space<vmem>>, vector<1x8x128xf32>,
    return
  }
  func.func @transform_0(%arg0: i32) -> (i32, i32, i32) {
    %c0_i32 = arith.constant 0 : i32
    %c0_i32_0 = arith.constant 0 : i32
    %c0_i32_1 = arith.constant 0 : i32
    return %arg0, %c0_i32, %c0_i32_0 : i32, i32, i32
  }
  func.func @transform_1(%arg0: i32) -> (i32, i32, i32, i32) {
    %c0_i32 = arith.constant 0 : i32
    %c0_i32_0 = arith.constant 0 : i32
    %c0_i32_1 = arith.constant 0 : i32
    %c0_i32_2 = arith.constant 0 : i32
    return %arg0, %c0_i32, %c0_i32_0, %c0_i32_1 : i32, i32, i32, i32
  }
  func.func @transform_2(%arg0: i32) -> (i32, i32, i32) {
    %c0_i32 = arith.constant 0 : i32
    %c0_i32_0 = arith.constant 0 : i32
    %c0_i32_1 = arith.constant 0 : i32
    return %arg0, %c0_i32, %c0_i32_0 : i32, i32, i32
  }
  func.func @transform_3(%arg0: i32) -> (i32, i32) {
    %c0_i32 = arith.constant 0 : i32
    %c0_i32_0 = arith.constant 0 : i32
    %c0_i32_1 = arith.constant 0 : i32
    return %c0_i32, %c0_i32_0 : i32, i32
  }
  func.func @transform_4(%arg0: i32) -> (i32, i32) {
    %c0_i32 = arith.constant 0 : i32
    %c0_i32_0 = arith.constant 0 : i32
    %c0_i32_1 = arith.constant 0 : i32
    return %c0_i32, %c0_i32_0 : i32, i32
  }
  func.func @transform_5(%arg0: i32) -> (i32, i32) {
    %c0_i32 = arith.constant 0 : i32
    %c0_i32_0 = arith.constant 0 : i32
    %c0_i32_1 = arith.constant 0 : i32
    return %c0_i32, %c0_i32_0 : i32, i32
  }
  func.func @transform_6(%arg0: i32) -> (i32, i32) {
    %c0_i32 = arith.constant 0 : i32
    %c0_i32_0 = arith.constant 0 : i32
    %c0_i32_1 = arith.constant 0 : i32
    return %c0_i32, %c0_i32_0 : i32, i32
  }
  func.func @transform_7(%arg0: i32) -> (i32, i32, i32) {
    %c0_i32 = arith.constant 0 : i32
    %c0_i32_0 = arith.constant 0 : i32
    %c0_i32_1 = arith.constant 0 : i32
    return %arg0, %c0_i32, %c0_i32_0 : i32, i32, i32
  }
}

</mosaic_0001>

<llo_original>
// kernel: rgcn_net_forward.1
$region0: #{rgcn_net_forward.1}
  #allocation0 [shape = 'u32[]', space=smem, size = 0x4, offset = 0x4, fixed_abs, tag = 'smem constant byte address 0x4 - core index']
  #allocation1 [shape = 'u32[144,128]{1,0:T(1,128)}', space=vmem, size = 0x12000, scoped, tag = 'internal scratch']
  %s0 = inlined_call_operand.vmem [shape: bf16[8,128,8], index: 0, kind: input, shape index: {}]
  %s1 = inlined_call_operand.vmem [shape: bf16[8,3,128,128], index: 1, kind: input, shape index: {}]
  %s2 = inlined_call_operand.vmem [shape: bf16[8,32,128], index: 2, kind: input, shape index: {}]
  %s3 = inlined_call_operand.vmem [shape: bf16[8,128], index: 3, kind: input, shape index: {}]
  %s4 = inlined_call_operand.vmem [shape: f32[1,32], index: 4, kind: input, shape index: {}]
  %s5 = inlined_call_operand.vmem [shape: bf16[128,128], index: 5, kind: input, shape index: {}]
  %s6 = inlined_call_operand.vmem [shape: f32[1,128], index: 6, kind: input, shape index: {}]
  %s7 = inlined_call_operand.vmem [shape: f32[8,8,128], index: 7, kind: output, shape index: {}]
  %s8 = sld [smem:[#allocation0]]
  $region61: #{rgcn_net_forward.1} parent=0
    _
  %s10 = ssub.s32 1, %s8
  %s11 = scalar_select 0, %s10, %s8
  loop: start=0, step=1, limit=4
  $region2: #{rgcn_net_forward.1} parent=0 // loop_pre_header
    _
  $region3: #{rgcn_net_forward.1} parent=0 // loop_header
    %s13 = sphi 0, %s17
    %p14 = scmp.ge.s32.totalorder %s13, 4
    %s23 = sphi 0, %s25
    %s26 = sphi 0, %s23
    %s27 = sphi 0, %s26
    %s43 = sphi 0, %s27
    %s49 = sphi 0, %s51
    %s52 = sphi 0, %s49
    %s53 = sphi 0, %s52
    %s69 = sphi 0, %s53
    %s75 = sphi 0, %s77
    %s78 = sphi 0, %s75
    %s79 = sphi 0, %s78
    %s95 = sphi 0, %s79
    %s99 = sphi 0, %s99
    %s101 = sphi 0, %s99
    %s102 = sphi 0, %s101
    %s116 = sphi 0, %s102
    %s120 = sphi 0, %s120
    %s122 = sphi 0, %s120
    %s123 = sphi 0, %s122
    %s137 = sphi 0, %s123
    %s141 = sphi 0, %s141
    %s143 = sphi 0, %s141
    %s144 = sphi 0, %s143
    %s158 = sphi 0, %s144
    %s162 = sphi 0, %s162
    %s164 = sphi 0, %s162
    %s165 = sphi 0, %s164
    %s179 = sphi 0, %s165
    %s185 = sphi 0, %s187
    %s188 = sphi 0, %s185
    %s189 = sphi 0, %s188
    %s205 = sphi 0, %s189
  $region4: #{rgcn_net_forward.1} parent=0 // loop_header_branch
    %16 = sbr.rel (%p14) target = $region8
  $region5: #{rgcn_net_forward.1} parent=0 // loop_body
    %s18 = ssub.s32 %s13, 1
    %s19 = ssub.s32 %s13, 2
    %s20 = sadd.s32 %s13, 1
    %s21 = ssub.s32 %s13, %s20
    %p22 = scmp.eq.s32.totalorder %s21, 0
    %s24 = sadd.s32 %s23, 1
    %s25 = scalar_select %p22, %s23, %s24
    %p28 = pneg %p22
    %p29 = scmp.eq.s32.totalorder %s13, 1
    %p30 = por %p28, %p29
    %p31 = scmp.ne.s32.totalorder %s23, %s26
    %p32 = scmp.eq.s32.totalorder %s13, 0
    %p33 = por %p31, %p32
    %p34 = scmp.ne.s32.totalorder %s23, %s26
    %p35 = scmp.eq.s32.totalorder %s18, 1
    %p36 = por %p34, %p35
    %p37 = scmp.ne.s32.totalorder %s26, %s27
    %p38 = scmp.eq.s32.totalorder %s18, 0
    %p39 = por %p37, %p38
    %p40 = scmp.ne.s32.totalorder %s26, %s27
    %p41 = scmp.eq.s32.totalorder %s19, 1
    %p42 = por %p40, %p41
    %p44 = scmp.ne.s32.totalorder %s27, %s43
    %p45 = scmp.eq.s32.totalorder %s19, 0
    %p46 = por %p44, %p45
    %s47 = ssub.s32 %s13, %s20
    %p48 = scmp.eq.s32.totalorder %s47, 0
    %s50 = sadd.s32 %s49, 1
    %s51 = scalar_select %p48, %s49, %s50
    %p54 = pneg %p48
    %p55 = scmp.eq.s32.totalorder %s13, 1
    %p56 = por %p54, %p55
    %p57 = scmp.ne.s32.totalorder %s49, %s52
    %p58 = scmp.eq.s32.totalorder %s13, 0
    %p59 = por %p57, %p58
    %p60 = scmp.ne.s32.totalorder %s49, %s52
    %p61 = scmp.eq.s32.totalorder %s18, 1
    %p62 = por %p60, %p61
    %p63 = scmp.ne.s32.totalorder %s52, %s53
    %p64 = scmp.eq.s32.totalorder %s18, 0
    %p65 = por %p63, %p64
    %p66 = scmp.ne.s32.totalorder %s52, %s53
    %p67 = scmp.eq.s32.totalorder %s19, 1
    %p68 = por %p66, %p67
    %p70 = scmp.ne.s32.totalorder %s53, %s69
    %p71 = scmp.eq.s32.totalorder %s19, 0
    %p72 = por %p70, %p71
    %s73 = ssub.s32 %s13, %s20
    %p74 = scmp.eq.s32.totalorder %s73, 0
    %s76 = sadd.s32 %s75, 1
    %s77 = scalar_select %p74, %s75, %s76
    %p80 = pneg %p74
    %p81 = scmp.eq.s32.totalorder %s13, 1
    %p82 = por %p80, %p81
    %p83 = scmp.ne.s32.totalorder %s75, %s78
    %p84 = scmp.eq.s32.totalorder %s13, 0
    %p85 = por %p83, %p84
    %p86 = scmp.ne.s32.totalorder %s75, %s78
    %p87 = scmp.eq.s32.totalorder %s18, 1
    %p88 = por %p86, %p87
    %p89 = scmp.ne.s32.totalorder %s78, %s79
    %p90 = scmp.eq.s32.totalorder %s18, 0
    %p91 = por %p89, %p90
    %p92 = scmp.ne.s32.totalorder %s78, %s79
    %p93 = scmp.eq.s32.totalorder %s19, 1
    %p94 = por %p92, %p93
    %p96 = scmp.ne.s32.totalorder %s79, %s95
    %p97 = scmp.eq.s32.totalorder %s19, 0
    %p98 = por %p96, %p97
    %s100 = sadd.s32 %s99, 1
    %p103 = scmp.eq.s32.totalorder %s13, 1
    %p104 = scmp.ne.s32.totalorder %s99, %s101
    %p105 = scmp.eq.s32.totalorder %s13, 0
    %p106 = por %p104, %p105
    %p107 = scmp.ne.s32.totalorder %s99, %s101
    %p108 = scmp.eq.s32.totalorder %s18, 1
    %p109 = por %p107, %p108
    %p110 = scmp.ne.s32.totalorder %s101, %s102
    %p111 = scmp.eq.s32.totalorder %s18, 0
    %p112 = por %p110, %p111
    %p113 = scmp.ne.s32.totalorder %s101, %s102
    %p114 = scmp.eq.s32.totalorder %s19, 1
    %p115 = por %p113, %p114
    %p117 = scmp.ne.s32.totalorder %s102, %s116
    %p118 = scmp.eq.s32.totalorder %s19, 0
    %p119 = por %p117, %p118
    %s121 = sadd.s32 %s120, 1
    %p124 = scmp.eq.s32.totalorder %s13, 1
    %p125 = scmp.ne.s32.totalorder %s120, %s122
    %p126 = scmp.eq.s32.totalorder %s13, 0
    %p127 = por %p125, %p126
    %p128 = scmp.ne.s32.totalorder %s120, %s122
    %p129 = scmp.eq.s32.totalorder %s18, 1
    %p130 = por %p128, %p129
    %p131 = scmp.ne.s32.totalorder %s122, %s123
    %p132 = scmp.eq.s32.totalorder %s18, 0
    %p133 = por %p131, %p132
    %p134 = scmp.ne.s32.totalorder %s122, %s123
    %p135 = scmp.eq.s32.totalorder %s19, 1
    %p136 = por %p134, %p135
    %p138 = scmp.ne.s32.totalorder %s123, %s137
    %p139 = scmp.eq.s32.totalorder %s19, 0
    %p140 = por %p138, %p139
    %s142 = sadd.s32 %s141, 1
    %p145 = scmp.eq.s32.totalorder %s13, 1
    %p146 = scmp.ne.s32.totalorder %s141, %s143
    %p147 = scmp.eq.s32.totalorder %s13, 0
    %p148 = por %p146, %p147
    %p149 = scmp.ne.s32.totalorder %s141, %s143
    %p150 = scmp.eq.s32.totalorder %s18, 1
    %p151 = por %p149, %p150
    %p152 = scmp.ne.s32.totalorder %s143, %s144
    %p153 = scmp.eq.s32.totalorder %s18, 0
    %p154 = por %p152, %p153
    %p155 = scmp.ne.s32.totalorder %s143, %s144
    %p156 = scmp.eq.s32.totalorder %s19, 1
    %p157 = por %p155, %p156
    %p159 = scmp.ne.s32.totalorder %s144, %s158
    %p160 = scmp.eq.s32.totalorder %s19, 0
    %p161 = por %p159, %p160
    %s163 = sadd.s32 %s162, 1
    %p166 = scmp.eq.s32.totalorder %s13, 1
    %p167 = scmp.ne.s32.totalorder %s162, %s164
    %p168 = scmp.eq.s32.totalorder %s13, 0
    %p169 = por %p167, %p168
    %p170 = scmp.ne.s32.totalorder %s162, %s164
    %p171 = scmp.eq.s32.totalorder %s18, 1
    %p172 = por %p170, %p171
    %p173 = scmp.ne.s32.totalorder %s164, %s165
    %p174 = scmp.eq.s32.totalorder %s18, 0
    %p175 = por %p173, %p174
    %p176 = scmp.ne.s32.totalorder %s164, %s165
    %p177 = scmp.eq.s32.totalorder %s19, 1
    %p178 = por %p176, %p177
    %p180 = scmp.ne.s32.totalorder %s165, %s179
    %p181 = scmp.eq.s32.totalorder %s19, 0
    %p182 = por %p180, %p181
    %s183 = ssub.s32 %s13, %s20
    %p184 = scmp.eq.s32.totalorder %s183, 0
    %s186 = sadd.s32 %s185, 1
    %s187 = scalar_select %p184, %s185, %s186
    %p190 = pneg %p184
    %p191 = scmp.eq.s32.totalorder %s13, 1
    %p192 = por %p190, %p191
    %p193 = scmp.ne.s32.totalorder %s185, %s188
    %p194 = scmp.eq.s32.totalorder %s13, 0
    %p195 = por %p193, %p194
    %p196 = scmp.ne.s32.totalorder %s185, %s188
    %p197 = scmp.eq.s32.totalorder %s18, 1
    %p198 = por %p196, %p197
    %p199 = scmp.ne.s32.totalorder %s188, %s189
    %p200 = scmp.eq.s32.totalorder %s18, 0
    %p201 = por %p199, %p200
    %p202 = scmp.ne.s32.totalorder %s188, %s189
    %p203 = scmp.eq.s32.totalorder %s19, 1
    %p204 = por %p202, %p203
    %p206 = scmp.ne.s32.totalorder %s189, %s205
    %p207 = scmp.eq.s32.totalorder %s19, 0
    %p208 = por %p206, %p207
    %p209 = scmp.le.s32.totalorder 1, %s13
    %p210 = scmp.lt.s32.totalorder %s13, 3
    %p211 = pnand %p209, %p210
    %p212 = pneg %p211
    // Predicated region
    $region9: #{rgcn_net_forward.1} parent=5 // pred_check
      _
    $region10: #{rgcn_net_forward.1} parent=5 // pred_check_branch
      %214 = sbr.rel (%p211) target = $region12
    $region11: #{rgcn_net_forward.1} parent=5 // pred_region
      %s215 = ssub.s32 %s13, 1
      // Predicated region
      $region13: #{rgcn_net_forward.1} parent=11 // pred_check
        %p216 = pneg %p112
      $region14: #{rgcn_net_forward.1} parent=11 // pred_check_branch
        %218 = sbr.rel (%p216) target = $region16
      $region15: #{rgcn_net_forward.1} parent=11 // pred_region
        _
      $region16: #{rgcn_net_forward.1} parent=11 // pred_fallthru
        _
      // Predicated region
      $region17: #{rgcn_net_forward.1} parent=11 // pred_check
        %p219 = pneg %p133
      $region18: #{rgcn_net_forward.1} parent=11 // pred_check_branch
        %221 = sbr.rel (%p219) target = $region20
      $region19: #{rgcn_net_forward.1} parent=11 // pred_region
        _
      $region20: #{rgcn_net_forward.1} parent=11 // pred_fallthru
        _
      // Predicated region
      $region21: #{rgcn_net_forward.1} parent=11 // pred_check
        %p222 = pneg %p154
      $region22: #{rgcn_net_forward.1} parent=11 // pred_check_branch
        %224 = sbr.rel (%p222) target = $region24
      $region23: #{rgcn_net_forward.1} parent=11 // pred_region
        _
      $region24: #{rgcn_net_forward.1} parent=11 // pred_fallthru
        _
      // Predicated region
      $region25: #{rgcn_net_forward.1} parent=11 // pred_check
        %p225 = pneg %p175
      $region26: #{rgcn_net_forward.1} parent=11 // pred_check_branch
        %227 = sbr.rel (%p225) target = $region28
      $region27: #{rgcn_net_forward.1} parent=11 // pred_region
        _
      $region28: #{rgcn_net_forward.1} parent=11 // pred_fallthru
        _
    $region12: #{rgcn_net_forward.1} parent=5 // pred_fallthru
      _
    %p228 = scmp.lt.s32.totalorder %s13, 2
    // Predicated region
    $region29: #{rgcn_net_forward.1} parent=5 // pred_check
      %p229 = pneg %p228
    $region30: #{rgcn_net_forward.1} parent=5 // pred_check_branch
      %231 = sbr.rel (%p229) target = $region32
    $region31: #{rgcn_net_forward.1} parent=5 // pred_region
      // Predicated region
      $region33: #{rgcn_net_forward.1} parent=31 // pred_check
        %p232 = pneg %p33
      $region34: #{rgcn_net_forward.1} parent=31 // pred_check_branch
        %234 = sbr.rel (%p232) target = $region36
      $region35: #{rgcn_net_forward.1} parent=31 // pred_region
        %s235 = smul.u32 4, %s13
        %p236 = scmp.lt.s32.totalorder %s235, 7
        %s237 = scalar_select %p236, %s235, 7
        %s238 = smul.addr %s237, 16
        %s239 = smul.addr %s238, 4
        %s240 = scalar_lea.vmem %s0, %s239
        %s241 = smul.u32 4, %s13
      $region36: #{rgcn_net_forward.1} parent=31 // pred_fallthru
        _
      // Predicated region
      $region37: #{rgcn_net_forward.1} parent=31 // pred_check
        %p242 = pneg %p59
      $region38: #{rgcn_net_forward.1} parent=31 // pred_check_branch
        %244 = sbr.rel (%p242) target = $region40
      $region39: #{rgcn_net_forward.1} parent=31 // pred_region
        %s245 = smul.u32 4, %s13
        %p246 = scmp.lt.s32.totalorder %s245, 7
        %s247 = scalar_select %p246, %s245, 7
        %s248 = smul.addr %s247, 48
        %s249 = smul.addr %s248, 4
        %s250 = scalar_lea.vmem %s1, %s249
        %s251 = smul.u32 4, %s13
      $region40: #{rgcn_net_forward.1} parent=31 // pred_fallthru
        _
      // Predicated region
      $region41: #{rgcn_net_forward.1} parent=31 // pred_check
        %p252 = pneg %p85
      $region42: #{rgcn_net_forward.1} parent=31 // pred_check_branch
        %254 = sbr.rel (%p252) target = $region44
      $region43: #{rgcn_net_forward.1} parent=31 // pred_region
        %s255 = smul.u32 4, %s13
        %p256 = scmp.lt.s32.totalorder %s255, 7
        %s257 = scalar_select %p256, %s255, 7
        %s258 = smul.addr %s257, 4
        %s259 = smul.addr %s258, 4
        %s260 = scalar_lea.vmem %s2, %s259
        %s261 = smul.u32 4, %s13
      $region44: #{rgcn_net_forward.1} parent=31 // pred_fallthru
        _
    $region32: #{rgcn_net_forward.1} parent=5 // pred_fallthru
      _
    %p262 = scmp.le.s32.totalorder 1, %s13
    %p263 = scmp.lt.s32.totalorder %s13, 3
    %p264 = pnand %p262, %p263
    %p265 = pneg %p264
    // Predicated region
    $region45: #{rgcn_net_forward.1} parent=5 // pred_check
      _
    $region46: #{rgcn_net_forward.1} parent=5 // pred_check_branch
      %267 = sbr.rel (%p264) target = $region48
    $region47: #{rgcn_net_forward.1} parent=5 // pred_region
      %s268 = ssub.s32 %s13, 1
      %s269 = smul.u32 4, %s18
      %p270 = scmp.lt.s32.totalorder %s269, 7
      %s271 = scalar_select %p270, %s269, 7
      %s272 = smul.addr %s271, 16
      %s273 = smul.addr %s272, 4
      %s274 = scalar_lea.vmem %s0, %s273
      %p275 = pneg %p39
      %p276 = pneg %p36
      %s277 = smul.u32 4, %s18
      %p278 = scmp.lt.s32.totalorder %s277, 7
      %s279 = scalar_select %p278, %s277, 7
      %s280 = smul.addr %s279, 48
      %s281 = smul.addr %s280, 4
      %s282 = scalar_lea.vmem %s1, %s281
      %p283 = pneg %p65
      %p284 = pneg %p62
      %s285 = smul.u32 4, %s18
      %p286 = scmp.lt.s32.totalorder %s285, 7
      %s287 = scalar_select %p286, %s285, 7
      %s288 = smul.addr %s287, 4
      %s289 = smul.addr %s288, 4
      %s290 = scalar_lea.vmem %s2, %s289
      %p291 = pneg %p91
      %p292 = pneg %p88
      %p293 = pneg %p112
      %p294 = pneg %p109
      %p295 = pneg %p133
      %p296 = pneg %p130
      %p297 = pneg %p154
      %p298 = pneg %p151
      %p299 = pneg %p175
      %p300 = pneg %p172
      %p301 = pneg %p201
      %p302 = pneg %p198
      %s303 = smul.u32 4, %s18
      %p304 = scmp.lt.s32.totalorder %s303, 7
      %s305 = scalar_select %p304, %s303, 7
      %s306 = smul.addr %s305, 8
      %s307 = scalar_lea.vmem %s7, %s306
      %s308 = smul.u32 4, %s18
      %p309 = scmp.lt.s32.totalorder %s308, 7
      %s310 = scalar_select %p309, %s308, 7
      %s311 = smul.addr %s310, 16
      %s312 = smul.addr %s311, 4
      %s313 = scalar_lea.vmem %s0, %s312
      %s314 = smul.u32 4, %s18
      %s315 = smul.u32 4, %s18
      %p316 = scmp.lt.s32.totalorder %s315, 7
      %s317 = scalar_select %p316, %s315, 7
      %s318 = smul.addr %s317, 48
      %s319 = smul.addr %s318, 4
      %s320 = scalar_lea.vmem %s1, %s319
      %s321 = smul.u32 4, %s18
      %s322 = smul.u32 4, %s18
      %p323 = scmp.lt.s32.totalorder %s322, 7
      %s324 = scalar_select %p323, %s322, 7
      %s325 = smul.addr %s324, 4
      %s326 = smul.addr %s325, 4
      %s327 = scalar_lea.vmem %s2, %s326
      %s328 = smul.u32 4, %s18
      %s329 = smul.u32 4, %s18
      %p330 = scmp.lt.s32.totalorder %s329, 7
      %s331 = scalar_select %p330, %s329, 7
      %s332 = smul.addr %s331, 8
      %s333 = scalar_lea.vmem %s7, %s332
      %s334 = smul.u32 4, %s18
      %v336 = vld [vmem:[%s3] sm:$0xf]
      %v337 = vld [vmem:[%s5] sm:$0xf]
      %v338 = vld [vmem:[%s5 + $0x4] sm:$0xf]
      %v339 = vld [vmem:[%s5 + $0x8] sm:$0xf]
      %v340 = vld [vmem:[%s5 + $0xc] sm:$0xf]
      %v341 = vld [vmem:[%s5 + $0x10] sm:$0xf]
      %v342 = vld [vmem:[%s5 + $0x14] sm:$0xf]
      %v343 = vld [vmem:[%s5 + $0x18] sm:$0xf]
      %v344 = vld [vmem:[%s5 + $0x1c] sm:$0xf]
      %v345 = vld [vmem:[%s5 + $0x20] sm:$0xf]
      %v346 = vld [vmem:[%s5 + $0x24] sm:$0xf]
      %v347 = vld [vmem:[%s5 + $0x28] sm:$0xf]
      %v348 = vld [vmem:[%s5 + $0x2c] sm:$0xf]
      %v349 = vld [vmem:[%s5 + $0x30] sm:$0xf]
      %v350 = vld [vmem:[%s5 + $0x34] sm:$0xf]
      %v351 = vld [vmem:[%s5 + $0x38] sm:$0xf]
      %v352 = vld [vmem:[%s5 + $0x3c] sm:$0xf]
      %v353 = vld [vmem:[%s4] sm:$0x1]
      %v354 = vld [vmem:[%s6] sm:$0x1]
      %v355 = vld [vmem:[%s313] sm:$0xf]
      %v356 = vld [vmem:[%s313 + $0x4] sm:$0xf]
      %v357 = vld [vmem:[%s313 + $0x8] sm:$0xf]
      %v358 = vld [vmem:[%s313 + $0xc] sm:$0xf]
      %v359 = vld [vmem:[%s313 + $0x10] sm:$0xf]
      %v360 = vld [vmem:[%s313 + $0x14] sm:$0xf]
      %v361 = vld [vmem:[%s313 + $0x18] sm:$0xf]
      %v362 = vld [vmem:[%s313 + $0x1c] sm:$0xf]
      %v363 = vld [vmem:[%s313 + $0x20] sm:$0xf]
      %v364 = vld [vmem:[%s313 + $0x24] sm:$0xf]
      %v365 = vld [vmem:[%s313 + $0x28] sm:$0xf]
      %v366 = vld [vmem:[%s313 + $0x2c] sm:$0xf]
      %v367 = vld [vmem:[%s313 + $0x30] sm:$0xf]
      %v368 = vld [vmem:[%s313 + $0x34] sm:$0xf]
      %v369 = vld [vmem:[%s313 + $0x38] sm:$0xf]
      %v370 = vld [vmem:[%s313 + $0x3c] sm:$0xf]
      %v387 = vunpack.c.l.b16 %v355
      %v388 = vunpack.c.l.b16 %v356
      %v389 = vunpack.c.l.b16 %v357
      %v390 = vunpack.c.l.b16 %v358
      %v391 = vunpack.c.l.b16 %v359
      %v392 = vunpack.c.l.b16 %v360
      %v393 = vunpack.c.l.b16 %v361
      %v394 = vunpack.c.l.b16 %v362
      %v395 = vunpack.c.l.b16 %v363
      %v396 = vunpack.c.l.b16 %v364
      %v397 = vunpack.c.l.b16 %v365
      %v398 = vunpack.c.l.b16 %v366
      %v399 = vunpack.c.l.b16 %v367
      %v400 = vunpack.c.l.b16 %v368
      %v401 = vunpack.c.l.b16 %v369
      %v402 = vunpack.c.l.b16 %v370
      %v403 = vpack.c.b16 %v388, %v387
      %v404 = vpack.c.b16 %v390, %v389
      %v405 = vpack.c.b16 %v392, %v391
      %v406 = vpack.c.b16 %v394, %v393
      %v407 = vpack.c.b16 %v396, %v395
      %v408 = vpack.c.b16 %v398, %v397
      %v409 = vpack.c.b16 %v400, %v399
      %v410 = vpack.c.b16 %v402, %v401
      %vm411 = vcmask 64512
      %v413 = vsel %vm411, %v403, 0
      %v416 = vsel %vm411, %v404, 0
      %v419 = vsel %vm411, %v405, 0
      %v422 = vsel %vm411, %v406, 0
      %v425 = vsel %vm411, %v407, 0
      %v428 = vsel %vm411, %v408, 0
      %v431 = vsel %vm411, %v409, 0
      %v434 = vsel %vm411, %v410, 0
      %vm436 = vcmask 1043456
      %v438 = vsel %vm436, %v336, 0
      %440 = vmatprep.subr.bf16.mxu0 0
      %441 = vmatpush1.bf16.msra.mxu0 0
      %442 = vmatprep.subr.bf16.mxu0 0
      %443 = vmatpush1.bf16.msra.mxu0 0
      %444 = vmatprep.subr.bf16.mxu0 0
      %445 = vmatpush1.bf16.msra.mxu0 0
      %446 = vmatprep.subr.bf16.mxu0 0
      %447 = vmatpush1.bf16.msra.mxu0 0
      %448 = vmatprep.subr.bf16.mxu0 0
      %449 = vmatpush1.bf16.msra.mxu0 0
      %450 = vmatprep.subr.bf16.mxu0 0
      %451 = vmatpush1.bf16.msra.mxu0 0
      %452 = vmatprep.subr.bf16.mxu0 0
      %453 = vmatpush1.bf16.msra.mxu0 0
      %454 = vmatprep.subr.bf16.mxu0 0
      %455 = vmatpush1.bf16.msra.mxu0 %v438
      %456 = vmatprep.subr.bf16.mxu0 0
      %457 = vmatpush2.bf16.msra.mxu0 0
      %458 = vmatprep.subr.bf16.mxu0 0
      %459 = vmatpush2.bf16.msra.mxu0 0
      %460 = vmatprep.subr.bf16.mxu0 0
      %461 = vmatpush2.bf16.msra.mxu0 0
      %462 = vmatprep.subr.bf16.mxu0 0
      %463 = vmatpush2.bf16.msra.mxu0 0
      %464 = vmatprep.subr.bf16.mxu0 0
      %465 = vmatpush2.bf16.msra.mxu0 0
      %466 = vmatprep.subr.bf16.mxu0 0
      %467 = vmatpush2.bf16.msra.mxu0 0
      %468 = vmatprep.subr.bf16.mxu0 0
      %469 = vmatpush2.bf16.msra.mxu0 0
      %470 = vmatprep.subr.bf16.mxu0 0
      %471 = vmatpush2.bf16.msra.mxu0 0
      %472 = vmatprep.mubr.bf16.mxu0 0
      %473 = vmatmul.mubr.bf16.gmra.mxu0 %v413
      %v474 = vpop.f32.mrf.mxu0
      %v475 = vadd.f32 0.0, %v474
      %v476 = vpop.f32.mrf.mxu0
      %v477 = vpop.f32.mrf.mxu0
      %v478 = vadd.f32 0.0, %v477
      %v479 = vpop.f32.mrf.mxu0
      %480 = vmatprep.mubr.bf16.mxu0 0
      %481 = vmatmul.mubr.bf16.gmra.mxu0 %v416
      %v482 = vpop.f32.mrf.mxu0
      %v483 = vadd.f32 0.0, %v482
      %v484 = vpop.f32.mrf.mxu0
      %v485 = vpop.f32.mrf.mxu0
      %v486 = vadd.f32 0.0, %v485
      %v487 = vpop.f32.mrf.mxu0
      %488 = vmatprep.mubr.bf16.mxu0 0
      %489 = vmatmul.mubr.bf16.gmra.mxu0 %v419
      %v490 = vpop.f32.mrf.mxu0
      %v491 = vadd.f32 0.0, %v490
      %v492 = vpop.f32.mrf.mxu0
      %v493 = vpop.f32.mrf.mxu0
      %v494 = vadd.f32 0.0, %v493
      %v495 = vpop.f32.mrf.mxu0
      %496 = vmatprep.mubr.bf16.mxu0 0
      %497 = vmatmul.mubr.bf16.gmra.mxu0 %v422
      %v498 = vpop.f32.mrf.mxu0
      %v499 = vadd.f32 0.0, %v498
      %v500 = vpop.f32.mrf.mxu0
      %v501 = vpop.f32.mrf.mxu0
      %v502 = vadd.f32 0.0, %v501
      %v503 = vpop.f32.mrf.mxu0
      %504 = vmatprep.mubr.bf16.mxu0 0
      %505 = vmatmul.mubr.bf16.gmra.mxu0 %v425
      %v506 = vpop.f32.mrf.mxu0
      %v507 = vadd.f32 0.0, %v506
      %v508 = vpop.f32.mrf.mxu0
      %v509 = vpop.f32.mrf.mxu0
      %v510 = vadd.f32 0.0, %v509
      %v511 = vpop.f32.mrf.mxu0
      %512 = vmatprep.mubr.bf16.mxu0 0
      %513 = vmatmul.mubr.bf16.gmra.mxu0 %v428
      %v514 = vpop.f32.mrf.mxu0
      %v515 = vadd.f32 0.0, %v514
      %v516 = vpop.f32.mrf.mxu0
      %v517 = vpop.f32.mrf.mxu0
      %v518 = vadd.f32 0.0, %v517
      %v519 = vpop.f32.mrf.mxu0
      %520 = vmatprep.mubr.bf16.mxu0 0
      %521 = vmatmul.mubr.bf16.gmra.mxu0 %v431
      %v522 = vpop.f32.mrf.mxu0
      %v523 = vadd.f32 0.0, %v522
      %v524 = vpop.f32.mrf.mxu0
      %v525 = vpop.f32.mrf.mxu0
      %v526 = vadd.f32 0.0, %v525
      %v527 = vpop.f32.mrf.mxu0
      %528 = vmatprep.mubr.bf16.mxu0 0
      %529 = vmatmul.mubr.bf16.gmra.mxu0 %v434
      %v530 = vpop.f32.mrf.mxu0
      %v531 = vadd.f32 0.0, %v530
      %v532 = vpop.f32.mrf.mxu0
      %v533 = vpop.f32.mrf.mxu0
      %v534 = vadd.f32 0.0, %v533
      %v535 = vpop.f32.mrf.mxu0
      %536 = vdwg.mxu0
      %v538 = vlaneseq
      %v539 = vshrl.u32 %v538, 7
      %v540 = vsub.s32 0, %v539
      %v541 = vrot.slane %v353, %v540
      %v543 = vadd.f32 %v475, %v541
      %v544 = vadd.f32 %v478, %v541
      %v545 = vadd.f32 %v483, %v541
      %v546 = vadd.f32 %v486, %v541
      %v547 = vadd.f32 %v491, %v541
      %v548 = vadd.f32 %v494, %v541
      %v549 = vadd.f32 %v499, %v541
      %v550 = vadd.f32 %v502, %v541
      %v551 = vadd.f32 %v507, %v541
      %v552 = vadd.f32 %v510, %v541
      %v553 = vadd.f32 %v515, %v541
      %v554 = vadd.f32 %v518, %v541
      %v555 = vadd.f32 %v523, %v541
      %v556 = vadd.f32 %v526, %v541
      %v557 = vadd.f32 %v531, %v541
      %v558 = vadd.f32 %v534, %v541
      %v559 = vld [vmem:[%s320] sm:$0xf]
      %v560 = vld [vmem:[%s320 + $0x4] sm:$0xf]
      %v561 = vld [vmem:[%s320 + $0x8] sm:$0xf]
      %v562 = vld [vmem:[%s320 + $0xc] sm:$0xf]
      %v563 = vld [vmem:[%s320 + $0x10] sm:$0xf]
      %v564 = vld [vmem:[%s320 + $0x14] sm:$0xf]
      %v565 = vld [vmem:[%s320 + $0x18] sm:$0xf]
      %v566 = vld [vmem:[%s320 + $0x1c] sm:$0xf]
      %v567 = vld [vmem:[%s320 + $0x20] sm:$0xf]
      %v568 = vld [vmem:[%s320 + $0x24] sm:$0xf]
      %v569 = vld [vmem:[%s320 + $0x28] sm:$0xf]
      %v570 = vld [vmem:[%s320 + $0x2c] sm:$0xf]
      %v571 = vld [vmem:[%s320 + $0x30] sm:$0xf]
      %v572 = vld [vmem:[%s320 + $0x34] sm:$0xf]
      %v573 = vld [vmem:[%s320 + $0x38] sm:$0xf]
      %v574 = vld [vmem:[%s320 + $0x3c] sm:$0xf]
      %v575 = vpack.c.bf16 %v478, %v475
      %v576 = vpack.c.bf16 %v486, %v483
      %v577 = vpack.c.bf16 %v494, %v491
      %v578 = vpack.c.bf16 %v502, %v499
      %v579 = vpack.c.bf16 %v510, %v507
      %v580 = vpack.c.bf16 %v518, %v515
      %v581 = vpack.c.bf16 %v526, %v523
      %v582 = vpack.c.bf16 %v534, %v531
      %v599 = vunpack.c.l.b16 %v559
      %v600 = vunpack.c.l.b16 %v560
      %v601 = vunpack.c.l.b16 %v561
      %v602 = vunpack.c.l.b16 %v562
      %v603 = vunpack.c.l.b16 %v563
      %v604 = vunpack.c.l.b16 %v564
      %v605 = vunpack.c.l.b16 %v565
      %v606 = vunpack.c.l.b16 %v566
      %v607 = vunpack.c.l.b16 %v567
      %v608 = vunpack.c.l.b16 %v568
      %v609 = vunpack.c.l.b16 %v569
      %v610 = vunpack.c.l.b16 %v570
      %v611 = vunpack.c.l.b16 %v571
      %v612 = vunpack.c.l.b16 %v572
      %v613 = vunpack.c.l.b16 %v573
      %v614 = vunpack.c.l.b16 %v574
      %v615 = vpack.c.b16 %v600, %v599
      %v616 = vpack.c.b16 %v602, %v601
      %v617 = vpack.c.b16 %v604, %v603
      %v618 = vpack.c.b16 %v606, %v605
      %v619 = vpack.c.b16 %v608, %v607
      %v620 = vpack.c.b16 %v610, %v609
      %v621 = vpack.c.b16 %v612, %v611
      %v622 = vpack.c.b16 %v614, %v613
      %639 = vrot.lane.b32.xlu0 %v575, 96
      %v640 = vpop.permute.xlu0 %639
      %641 = vrot.lane.b32.xlu0 %v576, 96
      %v642 = vpop.permute.xlu0 %641
      %643 = vrot.lane.b32.xlu0 %v577, 96
      %v644 = vpop.permute.xlu0 %643
      %645 = vrot.lane.b32.xlu0 %v578, 96
      %v646 = vpop.permute.xlu0 %645
      %647 = vrot.lane.b32.xlu0 %v579, 96
      %v648 = vpop.permute.xlu0 %647
      %649 = vrot.lane.b32.xlu0 %v580, 96
      %v650 = vpop.permute.xlu0 %649
      %651 = vrot.lane.b32.xlu0 %v581, 96
      %v652 = vpop.permute.xlu0 %651
      %653 = vrot.lane.b32.xlu0 %v582, 96
      %v654 = vpop.permute.xlu0 %653
      %663 = vmatprep.subr.bf16.mxu0 0
      %664 = vmatpush1.bf16.msra.mxu0 %v654
      %665 = vmatprep.subr.bf16.mxu0 0
      %666 = vmatpush1.bf16.msra.mxu0 %v652
      %667 = vmatprep.subr.bf16.mxu0 0
      %668 = vmatpush1.bf16.msra.mxu0 %v650
      %669 = vmatprep.subr.bf16.mxu0 0
      %670 = vmatpush1.bf16.msra.mxu0 %v648
      %671 = vmatprep.subr.bf16.mxu0 0
      %672 = vmatpush1.bf16.msra.mxu0 %v646
      %673 = vmatprep.subr.bf16.mxu0 0
      %674 = vmatpush1.bf16.msra.mxu0 %v644
      %675 = vmatprep.subr.bf16.mxu0 0
      %676 = vmatpush1.bf16.msra.mxu0 %v642
      %677 = vmatprep.subr.bf16.mxu0 0
      %678 = vmatpush1.bf16.msra.mxu0 %v640
      %679 = vmatprep.subr.bf16.mxu0 0
      %680 = vmatpush2.bf16.msra.mxu0 0
      %681 = vmatprep.subr.bf16.mxu0 0
      %682 = vmatpush2.bf16.msra.mxu0 0
      %683 = vmatprep.subr.bf16.mxu0 0
      %684 = vmatpush2.bf16.msra.mxu0 0
      %685 = vmatprep.subr.bf16.mxu0 0
      %686 = vmatpush2.bf16.msra.mxu0 0
      %687 = vmatprep.subr.bf16.mxu0 0
      %688 = vmatpush2.bf16.msra.mxu0 0
      %689 = vmatprep.subr.bf16.mxu0 0
      %690 = vmatpush2.bf16.msra.mxu0 0
      %691 = vmatprep.subr.bf16.mxu0 0
      %692 = vmatpush2.bf16.msra.mxu0 0
      %693 = vmatprep.subr.bf16.mxu0 0
      %694 = vmatpush2.bf16.msra.mxu0 0
      %695 = vmatprep.mubr.bf16.mxu0 0
      %696 = vmatmul.mubr.bf16.gmra.mxu0 %v615
      %v697 = vpop.f32.mrf.mxu0
      %v698 = vadd.f32 0.0, %v697
      %v699 = vpop.f32.mrf.mxu0
      %v700 = vpop.f32.mrf.mxu0
      %v701 = vadd.f32 0.0, %v700
      %v702 = vpop.f32.mrf.mxu0
      %703 = vmatprep.mubr.bf16.mxu0 0
      %704 = vmatmul.mubr.bf16.gmra.mxu0 %v616
      %v705 = vpop.f32.mrf.mxu0
      %v706 = vadd.f32 0.0, %v705
      %v707 = vpop.f32.mrf.mxu0
      %v708 = vpop.f32.mrf.mxu0
      %v709 = vadd.f32 0.0, %v708
      %v710 = vpop.f32.mrf.mxu0
      %711 = vmatprep.mubr.bf16.mxu0 0
      %712 = vmatmul.mubr.bf16.gmra.mxu0 %v617
      %v713 = vpop.f32.mrf.mxu0
      %v714 = vadd.f32 0.0, %v713
      %v715 = vpop.f32.mrf.mxu0
      %v716 = vpop.f32.mrf.mxu0
      %v717 = vadd.f32 0.0, %v716
      %v718 = vpop.f32.mrf.mxu0
      %719 = vmatprep.mubr.bf16.mxu0 0
      %720 = vmatmul.mubr.bf16.gmra.mxu0 %v618
      %v721 = vpop.f32.mrf.mxu0
      %v722 = vadd.f32 0.0, %v721
      %v723 = vpop.f32.mrf.mxu0
      %v724 = vpop.f32.mrf.mxu0
      %v725 = vadd.f32 0.0, %v724
      %v726 = vpop.f32.mrf.mxu0
      %727 = vmatprep.mubr.bf16.mxu0 0
      %728 = vmatmul.mubr.bf16.gmra.mxu0 %v619
      %v729 = vpop.f32.mrf.mxu0
      %v730 = vadd.f32 0.0, %v729
      %v731 = vpop.f32.mrf.mxu0
      %v732 = vpop.f32.mrf.mxu0
      %v733 = vadd.f32 0.0, %v732
      %v734 = vpop.f32.mrf.mxu0
      %735 = vmatprep.mubr.bf16.mxu0 0
      %736 = vmatmul.mubr.bf16.gmra.mxu0 %v620
      %v737 = vpop.f32.mrf.mxu0
      %v738 = vadd.f32 0.0, %v737
      %v739 = vpop.f32.mrf.mxu0
      %v740 = vpop.f32.mrf.mxu0
      %v741 = vadd.f32 0.0, %v740
      %v742 = vpop.f32.mrf.mxu0
      %743 = vmatprep.mubr.bf16.mxu0 0
      %744 = vmatmul.mubr.bf16.gmra.mxu0 %v621
      %v745 = vpop.f32.mrf.mxu0
      %v746 = vadd.f32 0.0, %v745
      %v747 = vpop.f32.mrf.mxu0
      %v748 = vpop.f32.mrf.mxu0
      %v749 = vadd.f32 0.0, %v748
      %v750 = vpop.f32.mrf.mxu0
      %751 = vmatprep.mubr.bf16.mxu0 0
      %752 = vmatmul.mubr.bf16.gmra.mxu0 %v622
      %v753 = vpop.f32.mrf.mxu0
      %v754 = vadd.f32 0.0, %v753
      %v755 = vpop.f32.mrf.mxu0
      %v756 = vpop.f32.mrf.mxu0
      %v757 = vadd.f32 0.0, %v756
      %v758 = vpop.f32.mrf.mxu0
      %759 = vdwg.mxu0
      %v760 = vadd.f32 %v543, %v698
      %v761 = vadd.f32 %v544, %v701
      %v762 = vadd.f32 %v545, %v706
      %v763 = vadd.f32 %v546, %v709
      %v764 = vadd.f32 %v547, %v714
      %v765 = vadd.f32 %v548, %v717
      %v766 = vadd.f32 %v549, %v722
      %v767 = vadd.f32 %v550, %v725
      %v768 = vadd.f32 %v551, %v730
      %v769 = vadd.f32 %v552, %v733
      %v770 = vadd.f32 %v553, %v738
      %v771 = vadd.f32 %v554, %v741
      %v772 = vadd.f32 %v555, %v746
      %v773 = vadd.f32 %v556, %v749
      %v774 = vadd.f32 %v557, %v754
      %v775 = vadd.f32 %v558, %v757
      %s776 = scalar_lea.vmem %s320, 64
      %v777 = vld [vmem:[%s776] sm:$0xf]
      %v778 = vld [vmem:[%s776 + $0x4] sm:$0xf]
      %v779 = vld [vmem:[%s776 + $0x8] sm:$0xf]
      %v780 = vld [vmem:[%s776 + $0xc] sm:$0xf]
      %v781 = vld [vmem:[%s776 + $0x10] sm:$0xf]
      %v782 = vld [vmem:[%s776 + $0x14] sm:$0xf]
      %v783 = vld [vmem:[%s776 + $0x18] sm:$0xf]
      %v784 = vld [vmem:[%s776 + $0x1c] sm:$0xf]
      %v785 = vld [vmem:[%s776 + $0x20] sm:$0xf]
      %v786 = vld [vmem:[%s776 + $0x24] sm:$0xf]
      %v787 = vld [vmem:[%s776 + $0x28] sm:$0xf]
      %v788 = vld [vmem:[%s776 + $0x2c] sm:$0xf]
      %v789 = vld [vmem:[%s776 + $0x30] sm:$0xf]
      %v790 = vld [vmem:[%s776 + $0x34] sm:$0xf]
      %v791 = vld [vmem:[%s776 + $0x38] sm:$0xf]
      %v792 = vld [vmem:[%s776 + $0x3c] sm:$0xf]
      %v809 = vunpack.c.l.b16 %v777
      %v810 = vunpack.c.l.b16 %v778
      %v811 = vunpack.c.l.b16 %v779
      %v812 = vunpack.c.l.b16 %v780
      %v813 = vunpack.c.l.b16 %v781
      %v814 = vunpack.c.l.b16 %v782
      %v815 = vunpack.c.l.b16 %v783
      %v816 = vunpack.c.l.b16 %v784
      %v817 = vunpack.c.l.b16 %v785
      %v818 = vunpack.c.l.b16 %v786
      %v819 = vunpack.c.l.b16 %v787
      %v820 = vunpack.c.l.b16 %v788
      %v821 = vunpack.c.l.b16 %v789
      %v822 = vunpack.c.l.b16 %v790
      %v823 = vunpack.c.l.b16 %v791
      %v824 = vunpack.c.l.b16 %v792
      %v825 = vpack.c.b16 %v810, %v809
      %v826 = vpack.c.b16 %v812, %v811
      %v827 = vpack.c.b16 %v814, %v813
      %v828 = vpack.c.b16 %v816, %v815
      %v829 = vpack.c.b16 %v818, %v817
      %v830 = vpack.c.b16 %v820, %v819
      %v831 = vpack.c.b16 %v822, %v821
      %v832 = vpack.c.b16 %v824, %v823
      %841 = vrot.lane.b32.xlu0 %v575, 64
      %v842 = vpop.permute.xlu0 %841
      %843 = vrot.lane.b32.xlu0 %v576, 64
      %v844 = vpop.permute.xlu0 %843
      %845 = vrot.lane.b32.xlu0 %v577, 64
      %v846 = vpop.permute.xlu0 %845
      %847 = vrot.lane.b32.xlu0 %v578, 64
      %v848 = vpop.permute.xlu0 %847
      %849 = vrot.lane.b32.xlu0 %v579, 64
      %v850 = vpop.permute.xlu0 %849
      %851 = vrot.lane.b32.xlu0 %v580, 64
      %v852 = vpop.permute.xlu0 %851
      %853 = vrot.lane.b32.xlu0 %v581, 64
      %v854 = vpop.permute.xlu0 %853
      %855 = vrot.lane.b32.xlu0 %v582, 64
      %v856 = vpop.permute.xlu0 %855
      %865 = vmatprep.subr.bf16.mxu0 0
      %866 = vmatpush1.bf16.msra.mxu0 %v856
      %867 = vmatprep.subr.bf16.mxu0 0
      %868 = vmatpush1.bf16.msra.mxu0 %v854
      %869 = vmatprep.subr.bf16.mxu0 0
      %870 = vmatpush1.bf16.msra.mxu0 %v852
      %871 = vmatprep.subr.bf16.mxu0 0
      %872 = vmatpush1.bf16.msra.mxu0 %v850
      %873 = vmatprep.subr.bf16.mxu0 0
      %874 = vmatpush1.bf16.msra.mxu0 %v848
      %875 = vmatprep.subr.bf16.mxu0 0
      %876 = vmatpush1.bf16.msra.mxu0 %v846
      %877 = vmatprep.subr.bf16.mxu0 0
      %878 = vmatpush1.bf16.msra.mxu0 %v844
      %879 = vmatprep.subr.bf16.mxu0 0
      %880 = vmatpush1.bf16.msra.mxu0 %v842
      %881 = vmatprep.subr.bf16.mxu0 0
      %882 = vmatpush2.bf16.msra.mxu0 0
      %883 = vmatprep.subr.bf16.mxu0 0
      %884 = vmatpush2.bf16.msra.mxu0 0
      %885 = vmatprep.subr.bf16.mxu0 0
      %886 = vmatpush2.bf16.msra.mxu0 0
      %887 = vmatprep.subr.bf16.mxu0 0
      %888 = vmatpush2.bf16.msra.mxu0 0
      %889 = vmatprep.subr.bf16.mxu0 0
      %890 = vmatpush2.bf16.msra.mxu0 0
      %891 = vmatprep.subr.bf16.mxu0 0
      %892 = vmatpush2.bf16.msra.mxu0 0
      %893 = vmatprep.subr.bf16.mxu0 0
      %894 = vmatpush2.bf16.msra.mxu0 0
      %895 = vmatprep.subr.bf16.mxu0 0
      %896 = vmatpush2.bf16.msra.mxu0 0
      %897 = vmatprep.mubr.bf16.mxu0 0
      %898 = vmatmul.mubr.bf16.gmra.mxu0 %v825
      %v899 = vpop.f32.mrf.mxu0
      %v900 = vadd.f32 0.0, %v899
      %v901 = vpop.f32.mrf.mxu0
      %v902 = vpop.f32.mrf.mxu0
      %v903 = vadd.f32 0.0, %v902
      %v904 = vpop.f32.mrf.mxu0
      %905 = vmatprep.mubr.bf16.mxu0 0
      %906 = vmatmul.mubr.bf16.gmra.mxu0 %v826
      %v907 = vpop.f32.mrf.mxu0
      %v908 = vadd.f32 0.0, %v907
      %v909 = vpop.f32.mrf.mxu0
      %v910 = vpop.f32.mrf.mxu0
      %v911 = vadd.f32 0.0, %v910
      %v912 = vpop.f32.mrf.mxu0
      %913 = vmatprep.mubr.bf16.mxu0 0
      %914 = vmatmul.mubr.bf16.gmra.mxu0 %v827
      %v915 = vpop.f32.mrf.mxu0
      %v916 = vadd.f32 0.0, %v915
      %v917 = vpop.f32.mrf.mxu0
      %v918 = vpop.f32.mrf.mxu0
      %v919 = vadd.f32 0.0, %v918
      %v920 = vpop.f32.mrf.mxu0
      %921 = vmatprep.mubr.bf16.mxu0 0
      %922 = vmatmul.mubr.bf16.gmra.mxu0 %v828
      %v923 = vpop.f32.mrf.mxu0
      %v924 = vadd.f32 0.0, %v923
      %v925 = vpop.f32.mrf.mxu0
      %v926 = vpop.f32.mrf.mxu0
      %v927 = vadd.f32 0.0, %v926
      %v928 = vpop.f32.mrf.mxu0
      %929 = vmatprep.mubr.bf16.mxu0 0
      %930 = vmatmul.mubr.bf16.gmra.mxu0 %v829
      %v931 = vpop.f32.mrf.mxu0
      %v932 = vadd.f32 0.0, %v931
      %v933 = vpop.f32.mrf.mxu0
      %v934 = vpop.f32.mrf.mxu0
      %v935 = vadd.f32 0.0, %v934
      %v936 = vpop.f32.mrf.mxu0
      %937 = vmatprep.mubr.bf16.mxu0 0
      %938 = vmatmul.mubr.bf16.gmra.mxu0 %v830
      %v939 = vpop.f32.mrf.mxu0
      %v940 = vadd.f32 0.0, %v939
      %v941 = vpop.f32.mrf.mxu0
      %v942 = vpop.f32.mrf.mxu0
      %v943 = vadd.f32 0.0, %v942
      %v944 = vpop.f32.mrf.mxu0
      %945 = vmatprep.mubr.bf16.mxu0 0
      %946 = vmatmul.mubr.bf16.gmra.mxu0 %v831
      %v947 = vpop.f32.mrf.mxu0
      %v948 = vadd.f32 0.0, %v947
      %v949 = vpop.f32.mrf.mxu0
      %v950 = vpop.f32.mrf.mxu0
      %v951 = vadd.f32 0.0, %v950
      %v952 = vpop.f32.mrf.mxu0
      %953 = vmatprep.mubr.bf16.mxu0 0
      %954 = vmatmul.mubr.bf16.gmra.mxu0 %v832
      %v955 = vpop.f32.mrf.mxu0
      %v956 = vadd.f32 0.0, %v955
      %v957 = vpop.f32.mrf.mxu0
      %v958 = vpop.f32.mrf.mxu0
      %v959 = vadd.f32 0.0, %v958
      %v960 = vpop.f32.mrf.mxu0
      %961 = vdwg.mxu0
      %v962 = vadd.f32 %v760, %v900
      %v963 = vadd.f32 %v761, %v903
      %v964 = vadd.f32 %v762, %v908
      %v965 = vadd.f32 %v763, %v911
      %v966 = vadd.f32 %v764, %v916
      %v967 = vadd.f32 %v765, %v919
      %v968 = vadd.f32 %v766, %v924
      %v969 = vadd.f32 %v767, %v927
      %v970 = vadd.f32 %v768, %v932
      %v971 = vadd.f32 %v769, %v935
      %v972 = vadd.f32 %v770, %v940
      %v973 = vadd.f32 %v771, %v943
      %v974 = vadd.f32 %v772, %v948
      %v975 = vadd.f32 %v773, %v951
      %v976 = vadd.f32 %v774, %v956
      %v977 = vadd.f32 %v775, %v959
      %s978 = scalar_lea.vmem %s320, 128
      %v979 = vld [vmem:[%s978] sm:$0xf]
      %v980 = vld [vmem:[%s978 + $0x4] sm:$0xf]
      %v981 = vld [vmem:[%s978 + $0x8] sm:$0xf]
      %v982 = vld [vmem:[%s978 + $0xc] sm:$0xf]
      %v983 = vld [vmem:[%s978 + $0x10] sm:$0xf]
      %v984 = vld [vmem:[%s978 + $0x14] sm:$0xf]
      %v985 = vld [vmem:[%s978 + $0x18] sm:$0xf]
      %v986 = vld [vmem:[%s978 + $0x1c] sm:$0xf]
      %v987 = vld [vmem:[%s978 + $0x20] sm:$0xf]
      %v988 = vld [vmem:[%s978 + $0x24] sm:$0xf]
      %v989 = vld [vmem:[%s978 + $0x28] sm:$0xf]
      %v990 = vld [vmem:[%s978 + $0x2c] sm:$0xf]
      %v991 = vld [vmem:[%s978 + $0x30] sm:$0xf]
      %v992 = vld [vmem:[%s978 + $0x34] sm:$0xf]
      %v993 = vld [vmem:[%s978 + $0x38] sm:$0xf]
      %v994 = vld [vmem:[%s978 + $0x3c] sm:$0xf]
      %v1011 = vunpack.c.l.b16 %v979
      %v1012 = vunpack.c.l.b16 %v980
      %v1013 = vunpack.c.l.b16 %v981
      %v1014 = vunpack.c.l.b16 %v982
      %v1015 = vunpack.c.l.b16 %v983
      %v1016 = vunpack.c.l.b16 %v984
      %v1017 = vunpack.c.l.b16 %v985
      %v1018 = vunpack.c.l.b16 %v986
      %v1019 = vunpack.c.l.b16 %v987
      %v1020 = vunpack.c.l.b16 %v988
      %v1021 = vunpack.c.l.b16 %v989
      %v1022 = vunpack.c.l.b16 %v990
      %v1023 = vunpack.c.l.b16 %v991
      %v1024 = vunpack.c.l.b16 %v992
      %v1025 = vunpack.c.l.b16 %v993
      %v1026 = vunpack.c.l.b16 %v994
      %v1027 = vpack.c.b16 %v1012, %v1011
      %v1028 = vpack.c.b16 %v1014, %v1013
      %v1029 = vpack.c.b16 %v1016, %v1015
      %v1030 = vpack.c.b16 %v1018, %v1017
      %v1031 = vpack.c.b16 %v1020, %v1019
      %v1032 = vpack.c.b16 %v1022, %v1021
      %v1033 = vpack.c.b16 %v1024, %v1023
      %v1034 = vpack.c.b16 %v1026, %v1025
      %1043 = vrot.lane.b32.xlu0 %v575, 32
      %v1044 = vpop.permute.xlu0 %1043
      %1045 = vrot.lane.b32.xlu0 %v576, 32
      %v1046 = vpop.permute.xlu0 %1045
      %1047 = vrot.lane.b32.xlu0 %v577, 32
      %v1048 = vpop.permute.xlu0 %1047
      %1049 = vrot.lane.b32.xlu0 %v578, 32
      %v1050 = vpop.permute.xlu0 %1049
      %1051 = vrot.lane.b32.xlu0 %v579, 32
      %v1052 = vpop.permute.xlu0 %1051
      %1053 = vrot.lane.b32.xlu0 %v580, 32
      %v1054 = vpop.permute.xlu0 %1053
      %1055 = vrot.lane.b32.xlu0 %v581, 32
      %v1056 = vpop.permute.xlu0 %1055
      %1057 = vrot.lane.b32.xlu0 %v582, 32
      %v1058 = vpop.permute.xlu0 %1057
      %1067 = vmatprep.subr.bf16.mxu0 0
      %1068 = vmatpush1.bf16.msra.mxu0 %v1058
      %1069 = vmatprep.subr.bf16.mxu0 0
      %1070 = vmatpush1.bf16.msra.mxu0 %v1056
      %1071 = vmatprep.subr.bf16.mxu0 0
      %1072 = vmatpush1.bf16.msra.mxu0 %v1054
      %1073 = vmatprep.subr.bf16.mxu0 0
      %1074 = vmatpush1.bf16.msra.mxu0 %v1052
      %1075 = vmatprep.subr.bf16.mxu0 0
      %1076 = vmatpush1.bf16.msra.mxu0 %v1050
      %1077 = vmatprep.subr.bf16.mxu0 0
      %1078 = vmatpush1.bf16.msra.mxu0 %v1048
      %1079 = vmatprep.subr.bf16.mxu0 0
      %1080 = vmatpush1.bf16.msra.mxu0 %v1046
      %1081 = vmatprep.subr.bf16.mxu0 0
      %1082 = vmatpush1.bf16.msra.mxu0 %v1044
      %1083 = vmatprep.subr.bf16.mxu0 0
      %1084 = vmatpush2.bf16.msra.mxu0 0
      %1085 = vmatprep.subr.bf16.mxu0 0
      %1086 = vmatpush2.bf16.msra.mxu0 0
      %1087 = vmatprep.subr.bf16.mxu0 0
      %1088 = vmatpush2.bf16.msra.mxu0 0
      %1089 = vmatprep.subr.bf16.mxu0 0
      %1090 = vmatpush2.bf16.msra.mxu0 0
      %1091 = vmatprep.subr.bf16.mxu0 0
      %1092 = vmatpush2.bf16.msra.mxu0 0
      %1093 = vmatprep.subr.bf16.mxu0 0
      %1094 = vmatpush2.bf16.msra.mxu0 0
      %1095 = vmatprep.subr.bf16.mxu0 0
      %1096 = vmatpush2.bf16.msra.mxu0 0
      %1097 = vmatprep.subr.bf16.mxu0 0
      %1098 = vmatpush2.bf16.msra.mxu0 0
      %1099 = vmatprep.mubr.bf16.mxu0 0
      %1100 = vmatmul.mubr.bf16.gmra.mxu0 %v1027
      %v1101 = vpop.f32.mrf.mxu0
      %v1102 = vadd.f32 0.0, %v1101
      %v1103 = vpop.f32.mrf.mxu0
      %v1104 = vpop.f32.mrf.mxu0
      %v1105 = vadd.f32 0.0, %v1104
      %v1106 = vpop.f32.mrf.mxu0
      %1107 = vmatprep.mubr.bf16.mxu0 0
      %1108 = vmatmul.mubr.bf16.gmra.mxu0 %v1028
      %v1109 = vpop.f32.mrf.mxu0
      %v1110 = vadd.f32 0.0, %v1109
      %v1111 = vpop.f32.mrf.mxu0
      %v1112 = vpop.f32.mrf.mxu0
      %v1113 = vadd.f32 0.0, %v1112
      %v1114 = vpop.f32.mrf.mxu0
      %1115 = vmatprep.mubr.bf16.mxu0 0
      %1116 = vmatmul.mubr.bf16.gmra.mxu0 %v1029
      %v1117 = vpop.f32.mrf.mxu0
      %v1118 = vadd.f32 0.0, %v1117
      %v1119 = vpop.f32.mrf.mxu0
      %v1120 = vpop.f32.mrf.mxu0
      %v1121 = vadd.f32 0.0, %v1120
      %v1122 = vpop.f32.mrf.mxu0
      %1123 = vmatprep.mubr.bf16.mxu0 0
      %1124 = vmatmul.mubr.bf16.gmra.mxu0 %v1030
      %v1125 = vpop.f32.mrf.mxu0
      %v1126 = vadd.f32 0.0, %v1125
      %v1127 = vpop.f32.mrf.mxu0
      %v1128 = vpop.f32.mrf.mxu0
      %v1129 = vadd.f32 0.0, %v1128
      %v1130 = vpop.f32.mrf.mxu0
      %1131 = vmatprep.mubr.bf16.mxu0 0
      %1132 = vmatmul.mubr.bf16.gmra.mxu0 %v1031
      %v1133 = vpop.f32.mrf.mxu0
      %v1134 = vadd.f32 0.0, %v1133
      %v1135 = vpop.f32.mrf.mxu0
      %v1136 = vpop.f32.mrf.mxu0
      %v1137 = vadd.f32 0.0, %v1136
      %v1138 = vpop.f32.mrf.mxu0
      %1139 = vmatprep.mubr.bf16.mxu0 0
      %1140 = vmatmul.mubr.bf16.gmra.mxu0 %v1032
      %v1141 = vpop.f32.mrf.mxu0
      %v1142 = vadd.f32 0.0, %v1141
      %v1143 = vpop.f32.mrf.mxu0
      %v1144 = vpop.f32.mrf.mxu0
      %v1145 = vadd.f32 0.0, %v1144
      %v1146 = vpop.f32.mrf.mxu0
      %1147 = vmatprep.mubr.bf16.mxu0 0
      %1148 = vmatmul.mubr.bf16.gmra.mxu0 %v1033
      %v1149 = vpop.f32.mrf.mxu0
      %v1150 = vadd.f32 0.0, %v1149
      %v1151 = vpop.f32.mrf.mxu0
      %v1152 = vpop.f32.mrf.mxu0
      %v1153 = vadd.f32 0.0, %v1152
      %v1154 = vpop.f32.mrf.mxu0
      %1155 = vmatprep.mubr.bf16.mxu0 0
      %1156 = vmatmul.mubr.bf16.gmra.mxu0 %v1034
      %v1157 = vpop.f32.mrf.mxu0
      %v1158 = vadd.f32 0.0, %v1157
      %v1159 = vpop.f32.mrf.mxu0
      %v1160 = vpop.f32.mrf.mxu0
      %v1161 = vadd.f32 0.0, %v1160
      %v1162 = vpop.f32.mrf.mxu0
      %1163 = vdwg.mxu0
      %v1164 = vadd.f32 %v962, %v1102
      %v1165 = vadd.f32 %v963, %v1105
      %v1166 = vadd.f32 %v964, %v1110
      %v1167 = vadd.f32 %v965, %v1113
      %v1168 = vadd.f32 %v966, %v1118
      %v1169 = vadd.f32 %v967, %v1121
      %v1170 = vadd.f32 %v968, %v1126
      %v1171 = vadd.f32 %v969, %v1129
      %v1172 = vadd.f32 %v970, %v1134
      %v1173 = vadd.f32 %v971, %v1137
      %v1174 = vadd.f32 %v972, %v1142
      %v1175 = vadd.f32 %v973, %v1145
      %v1176 = vadd.f32 %v974, %v1150
      %v1177 = vadd.f32 %v975, %v1153
      %v1178 = vadd.f32 %v976, %v1158
      %v1179 = vadd.f32 %v977, %v1161
      %v1180 = vmax.f32 %v1164, 0.0
      %v1181 = vmax.f32 %v1165, 0.0
      %v1182 = vmax.f32 %v1166, 0.0
      %v1183 = vmax.f32 %v1167, 0.0
      %v1184 = vmax.f32 %v1168, 0.0
      %v1185 = vmax.f32 %v1169, 0.0
      %v1186 = vmax.f32 %v1170, 0.0
      %v1187 = vmax.f32 %v1171, 0.0
      %v1188 = vmax.f32 %v1172, 0.0
      %v1189 = vmax.f32 %v1173, 0.0
      %v1190 = vmax.f32 %v1174, 0.0
      %v1191 = vmax.f32 %v1175, 0.0
      %v1192 = vmax.f32 %v1176, 0.0
      %v1193 = vmax.f32 %v1177, 0.0
      %v1194 = vmax.f32 %v1178, 0.0
      %v1195 = vmax.f32 %v1179, 0.0
      %v1196 = vpack.c.bf16 %v1181, %v1180
      %v1197 = vpack.c.bf16 %v1183, %v1182
      %v1198 = vpack.c.bf16 %v1185, %v1184
      %v1199 = vpack.c.bf16 %v1187, %v1186
      %v1200 = vpack.c.bf16 %v1189, %v1188
      %v1201 = vpack.c.bf16 %v1191, %v1190
      %v1202 = vpack.c.bf16 %v1193, %v1192
      %v1203 = vpack.c.bf16 %v1195, %v1194
      %v1204 = vld [vmem:[%s327] sm:$0xf]
      %v1205 = vld [vmem:[%s327 + $0x4] sm:$0xf]
      %v1206 = vld [vmem:[%s327 + $0x8] sm:$0xf]
      %v1207 = vld [vmem:[%s327 + $0xc] sm:$0xf]
      %v1212 = vunpack.c.l.b16 %v1204
      %v1213 = vunpack.c.l.b16 %v1205
      %v1214 = vunpack.c.l.b16 %v1206
      %v1215 = vunpack.c.l.b16 %v1207
      %v1216 = vpack.c.b16 %v1213, %v1212
      %v1217 = vpack.c.b16 %v1215, %v1214
      %1220 = vmatprep.subr.bf16.mxu0 0
      %1221 = vmatpush1.bf16.msra.mxu0 %v1203
      %1222 = vmatprep.subr.bf16.mxu0 0
      %1223 = vmatpush1.bf16.msra.mxu0 %v1202
      %1224 = vmatprep.subr.bf16.mxu0 0
      %1225 = vmatpush1.bf16.msra.mxu0 %v1201
      %1226 = vmatprep.subr.bf16.mxu0 0
      %1227 = vmatpush1.bf16.msra.mxu0 %v1200
      %1228 = vmatprep.subr.bf16.mxu0 0
      %1229 = vmatpush1.bf16.msra.mxu0 %v1199
      %1230 = vmatprep.subr.bf16.mxu0 0
      %1231 = vmatpush1.bf16.msra.mxu0 %v1198
      %1232 = vmatprep.subr.bf16.mxu0 0
      %1233 = vmatpush1.bf16.msra.mxu0 %v1197
      %1234 = vmatprep.subr.bf16.mxu0 0
      %1235 = vmatpush1.bf16.msra.mxu0 %v1196
      %1236 = vmatprep.subr.bf16.mxu0 0
      %1237 = vmatpush2.bf16.msra.mxu0 0
      %1238 = vmatprep.subr.bf16.mxu0 0
      %1239 = vmatpush2.bf16.msra.mxu0 0
      %1240 = vmatprep.subr.bf16.mxu0 0
      %1241 = vmatpush2.bf16.msra.mxu0 0
      %1242 = vmatprep.subr.bf16.mxu0 0
      %1243 = vmatpush2.bf16.msra.mxu0 0
      %1244 = vmatprep.subr.bf16.mxu0 0
      %1245 = vmatpush2.bf16.msra.mxu0 0
      %1246 = vmatprep.subr.bf16.mxu0 0
      %1247 = vmatpush2.bf16.msra.mxu0 0
      %1248 = vmatprep.subr.bf16.mxu0 0
      %1249 = vmatpush2.bf16.msra.mxu0 0
      %1250 = vmatprep.subr.bf16.mxu0 0
      %1251 = vmatpush2.bf16.msra.mxu0 0
      %1252 = vmatprep.mubr.bf16.mxu0 0
      %1253 = vmatmul.mubr.bf16.gmra.mxu0 %v1216
      %v1254 = vpop.f32.mrf.mxu0
      %v1255 = vadd.f32 0.0, %v1254
      %v1256 = vpop.f32.mrf.mxu0
      %v1257 = vpop.f32.mrf.mxu0
      %v1258 = vadd.f32 0.0, %v1257
      %v1259 = vpop.f32.mrf.mxu0
      %1260 = vmatprep.mubr.bf16.mxu0 0
      %1261 = vmatmul.mubr.bf16.gmra.mxu0 %v1217
      %v1262 = vpop.f32.mrf.mxu0
      %v1263 = vadd.f32 0.0, %v1262
      %v1264 = vpop.f32.mrf.mxu0
      %v1265 = vpop.f32.mrf.mxu0
      %v1266 = vadd.f32 0.0, %v1265
      %v1267 = vpop.f32.mrf.mxu0
      %1268 = vdwg.mxu0
      %v1270 = vlaneseq
      %v1271 = vshrl.u32 %v1270, 7
      %v1272 = vsub.s32 0, %v1271
      %v1273 = vrot.slane %v354, %v1272
      %v1275 = vpack.c.bf16 %v1255, %v1255
      %v1280 = vunpack.c.l.b16 %v337
      %v1281 = vunpack.c.l.b16 %v338
      %v1282 = vunpack.c.l.b16 %v339
      %v1283 = vunpack.c.l.b16 %v340
      %v1284 = vpack.c.b16 %v1281, %v1280
      %v1285 = vpack.c.b16 %v1283, %v1282
      %vm1288 = vcmask 261120
      %v1290 = vsel %vm1288, %v1275, 0
      %1292 = vmatprep.subr.bf16.mxu0 0
      %1293 = vmatpush1.bf16.msra.mxu0 0
      %1294 = vmatprep.subr.bf16.mxu0 0
      %1295 = vmatpush1.bf16.msra.mxu0 0
      %1296 = vmatprep.subr.bf16.mxu0 0
      %1297 = vmatpush1.bf16.msra.mxu0 0
      %1298 = vmatprep.subr.bf16.mxu0 0
      %1299 = vmatpush1.bf16.msra.mxu0 0
      %1300 = vmatprep.subr.bf16.mxu0 0
      %1301 = vmatpush1.bf16.msra.mxu0 0
      %1302 = vmatprep.subr.bf16.mxu0 0
      %1303 = vmatpush1.bf16.msra.mxu0 0
      %1304 = vmatprep.subr.bf16.mxu0 0
      %1305 = vmatpush1.bf16.msra.mxu0 %v1285
      %1306 = vmatprep.subr.bf16.mxu0 0
      %1307 = vmatpush1.bf16.msra.mxu0 %v1284
      %1308 = vmatprep.subr.bf16.mxu0 0
      %1309 = vmatpush2.bf16.msra.mxu0 0
      %1310 = vmatprep.subr.bf16.mxu0 0
      %1311 = vmatpush2.bf16.msra.mxu0 0
      %1312 = vmatprep.subr.bf16.mxu0 0
      %1313 = vmatpush2.bf16.msra.mxu0 0
      %1314 = vmatprep.subr.bf16.mxu0 0
      %1315 = vmatpush2.bf16.msra.mxu0 0
      %1316 = vmatprep.subr.bf16.mxu0 0
      %1317 = vmatpush2.bf16.msra.mxu0 0
      %1318 = vmatprep.subr.bf16.mxu0 0
      %1319 = vmatpush2.bf16.msra.mxu0 0
      %1320 = vmatprep.subr.bf16.mxu0 0
      %1321 = vmatpush2.bf16.msra.mxu0 0
      %1322 = vmatprep.subr.bf16.mxu0 0
      %1323 = vmatpush2.bf16.msra.mxu0 0
      %1324 = vmatprep.mubr.bf16.mxu0 0
      %1325 = vmatmul.mubr.bf16.gmra.mxu0 %v1290
      %v1326 = vpop.f32.mrf.mxu0
      %v1327 = vadd.f32 0.0, %v1326
      %v1328 = vpop.f32.mrf.mxu0
      %v1329 = vpop.f32.mrf.mxu0
      %v1330 = vpop.f32.mrf.mxu0
      %1331 = vdwg.mxu0
      %v1332 = vadd.f32 %v1273, %v1327
      %v1333 = vpack.c.bf16 %v1258, %v1258
      %v1338 = vunpack.c.l.b16 %v341
      %v1339 = vunpack.c.l.b16 %v342
      %v1340 = vunpack.c.l.b16 %v343
      %v1341 = vunpack.c.l.b16 %v344
      %v1342 = vpack.c.b16 %v1339, %v1338
      %v1343 = vpack.c.b16 %v1341, %v1340
      %v1347 = vsel %vm1288, %v1333, 0
      %1349 = vmatprep.subr.bf16.mxu0 0
      %1350 = vmatpush1.bf16.msra.mxu0 0
      %1351 = vmatprep.subr.bf16.mxu0 0
      %1352 = vmatpush1.bf16.msra.mxu0 0
      %1353 = vmatprep.subr.bf16.mxu0 0
      %1354 = vmatpush1.bf16.msra.mxu0 0
      %1355 = vmatprep.subr.bf16.mxu0 0
      %1356 = vmatpush1.bf16.msra.mxu0 0
      %1357 = vmatprep.subr.bf16.mxu0 0
      %1358 = vmatpush1.bf16.msra.mxu0 0
      %1359 = vmatprep.subr.bf16.mxu0 0
      %1360 = vmatpush1.bf16.msra.mxu0 0
      %1361 = vmatprep.subr.bf16.mxu0 0
      %1362 = vmatpush1.bf16.msra.mxu0 %v1343
      %1363 = vmatprep.subr.bf16.mxu0 0
      %1364 = vmatpush1.bf16.msra.mxu0 %v1342
      %1365 = vmatprep.subr.bf16.mxu0 0
      %1366 = vmatpush2.bf16.msra.mxu0 0
      %1367 = vmatprep.subr.bf16.mxu0 0
      %1368 = vmatpush2.bf16.msra.mxu0 0
      %1369 = vmatprep.subr.bf16.mxu0 0
      %1370 = vmatpush2.bf16.msra.mxu0 0
      %1371 = vmatprep.subr.bf16.mxu0 0
      %1372 = vmatpush2.bf16.msra.mxu0 0
      %1373 = vmatprep.subr.bf16.mxu0 0
      %1374 = vmatpush2.bf16.msra.mxu0 0
      %1375 = vmatprep.subr.bf16.mxu0 0
      %1376 = vmatpush2.bf16.msra.mxu0 0
      %1377 = vmatprep.subr.bf16.mxu0 0
      %1378 = vmatpush2.bf16.msra.mxu0 0
      %1379 = vmatprep.subr.bf16.mxu0 0
      %1380 = vmatpush2.bf16.msra.mxu0 0
      %1381 = vmatprep.mubr.bf16.mxu0 0
      %1382 = vmatmul.mubr.bf16.gmra.mxu0 %v1347
      %v1383 = vpop.f32.mrf.mxu0
      %v1384 = vadd.f32 0.0, %v1383
      %v1385 = vpop.f32.mrf.mxu0
      %v1386 = vpop.f32.mrf.mxu0
      %v1387 = vpop.f32.mrf.mxu0
      %1388 = vdwg.mxu0
      %v1389 = vadd.f32 %v1332, %v1384
      %v1390 = vpack.c.bf16 %v1263, %v1263
      %v1395 = vunpack.c.l.b16 %v345
      %v1396 = vunpack.c.l.b16 %v346
      %v1397 = vunpack.c.l.b16 %v347
      %v1398 = vunpack.c.l.b16 %v348
      %v1399 = vpack.c.b16 %v1396, %v1395
      %v1400 = vpack.c.b16 %v1398, %v1397
      %v1404 = vsel %vm1288, %v1390, 0
      %1406 = vmatprep.subr.bf16.mxu0 0
      %1407 = vmatpush1.bf16.msra.mxu0 0
      %1408 = vmatprep.subr.bf16.mxu0 0
      %1409 = vmatpush1.bf16.msra.mxu0 0
      %1410 = vmatprep.subr.bf16.mxu0 0
      %1411 = vmatpush1.bf16.msra.mxu0 0
      %1412 = vmatprep.subr.bf16.mxu0 0
      %1413 = vmatpush1.bf16.msra.mxu0 0
      %1414 = vmatprep.subr.bf16.mxu0 0
      %1415 = vmatpush1.bf16.msra.mxu0 0
      %1416 = vmatprep.subr.bf16.mxu0 0
      %1417 = vmatpush1.bf16.msra.mxu0 0
      %1418 = vmatprep.subr.bf16.mxu0 0
      %1419 = vmatpush1.bf16.msra.mxu0 %v1400
      %1420 = vmatprep.subr.bf16.mxu0 0
      %1421 = vmatpush1.bf16.msra.mxu0 %v1399
      %1422 = vmatprep.subr.bf16.mxu0 0
      %1423 = vmatpush2.bf16.msra.mxu0 0
      %1424 = vmatprep.subr.bf16.mxu0 0
      %1425 = vmatpush2.bf16.msra.mxu0 0
      %1426 = vmatprep.subr.bf16.mxu0 0
      %1427 = vmatpush2.bf16.msra.mxu0 0
      %1428 = vmatprep.subr.bf16.mxu0 0
      %1429 = vmatpush2.bf16.msra.mxu0 0
      %1430 = vmatprep.subr.bf16.mxu0 0
      %1431 = vmatpush2.bf16.msra.mxu0 0
      %1432 = vmatprep.subr.bf16.mxu0 0
      %1433 = vmatpush2.bf16.msra.mxu0 0
      %1434 = vmatprep.subr.bf16.mxu0 0
      %1435 = vmatpush2.bf16.msra.mxu0 0
      %1436 = vmatprep.subr.bf16.mxu0 0
      %1437 = vmatpush2.bf16.msra.mxu0 0
      %1438 = vmatprep.mubr.bf16.mxu0 0
      %1439 = vmatmul.mubr.bf16.gmra.mxu0 %v1404
      %v1440 = vpop.f32.mrf.mxu0
      %v1441 = vadd.f32 0.0, %v1440
      %v1442 = vpop.f32.mrf.mxu0
      %v1443 = vpop.f32.mrf.mxu0
      %v1444 = vpop.f32.mrf.mxu0
      %1445 = vdwg.mxu0
      %v1446 = vadd.f32 %v1389, %v1441
      %v1447 = vpack.c.bf16 %v1266, %v1266
      %v1452 = vunpack.c.l.b16 %v349
      %v1453 = vunpack.c.l.b16 %v350
      %v1454 = vunpack.c.l.b16 %v351
      %v1455 = vunpack.c.l.b16 %v352
      %v1456 = vpack.c.b16 %v1453, %v1452
      %v1457 = vpack.c.b16 %v1455, %v1454
      %v1461 = vsel %vm1288, %v1447, 0
      %1463 = vmatprep.subr.bf16.mxu0 0
      %1464 = vmatpush1.bf16.msra.mxu0 0
      %1465 = vmatprep.subr.bf16.mxu0 0
      %1466 = vmatpush1.bf16.msra.mxu0 0
      %1467 = vmatprep.subr.bf16.mxu0 0
      %1468 = vmatpush1.bf16.msra.mxu0 0
      %1469 = vmatprep.subr.bf16.mxu0 0
      %1470 = vmatpush1.bf16.msra.mxu0 0
      %1471 = vmatprep.subr.bf16.mxu0 0
      %1472 = vmatpush1.bf16.msra.mxu0 0
      %1473 = vmatprep.subr.bf16.mxu0 0
      %1474 = vmatpush1.bf16.msra.mxu0 0
      %1475 = vmatprep.subr.bf16.mxu0 0
      %1476 = vmatpush1.bf16.msra.mxu0 %v1457
      %1477 = vmatprep.subr.bf16.mxu0 0
      %1478 = vmatpush1.bf16.msra.mxu0 %v1456
      %1479 = vmatprep.subr.bf16.mxu0 0
      %1480 = vmatpush2.bf16.msra.mxu0 0
      %1481 = vmatprep.subr.bf16.mxu0 0
      %1482 = vmatpush2.bf16.msra.mxu0 0
      %1483 = vmatprep.subr.bf16.mxu0 0
      %1484 = vmatpush2.bf16.msra.mxu0 0
      %1485 = vmatprep.subr.bf16.mxu0 0
      %1486 = vmatpush2.bf16.msra.mxu0 0
      %1487 = vmatprep.subr.bf16.mxu0 0
      %1488 = vmatpush2.bf16.msra.mxu0 0
      %1489 = vmatprep.subr.bf16.mxu0 0
      %1490 = vmatpush2.bf16.msra.mxu0 0
      %1491 = vmatprep.subr.bf16.mxu0 0
      %1492 = vmatpush2.bf16.msra.mxu0 0
      %1493 = vmatprep.subr.bf16.mxu0 0
      %1494 = vmatpush2.bf16.msra.mxu0 0
      %1495 = vmatprep.mubr.bf16.mxu0 0
      %1496 = vmatmul.mubr.bf16.gmra.mxu0 %v1461
      %v1497 = vpop.f32.mrf.mxu0
      %v1498 = vadd.f32 0.0, %v1497
      %v1499 = vpop.f32.mrf.mxu0
      %v1500 = vpop.f32.mrf.mxu0
      %v1501 = vpop.f32.mrf.mxu0
      %1502 = vdwg.mxu0
      %v1503 = vadd.f32 %v1446, %v1498
      %1504 = vmax.xlane.f32.xlu0 %v1503
      %v1505 = vpop.xlane.xlu0 %1504
      %v1506 = vsub.f32 %v1503, %v1505
      %v1507 = vmul.f32 %v1506, 1.442695
      %v1508 = vpow.pop %v1507
      %1509 = vadd.xlane.f32.xlu0 %v1508
      %v1510 = vpop.xlane.xlu0 %1509
      %v1511 = vlog2.pop %v1510
      %v1512 = vmul.f32 %v1511, 0.6931472
      %v1513 = vsub.f32 %v1506, %v1512
      %1514 = vst [vmem:[%s333] sm:$0xff] %v1513
      %s1515 = scalar_lea.vmem %s313, 64
      %v1516 = vld [vmem:[%s1515] sm:$0xf]
      %v1517 = vld [vmem:[%s1515 + $0x4] sm:$0xf]
      %v1518 = vld [vmem:[%s1515 + $0x8] sm:$0xf]
      %v1519 = vld [vmem:[%s1515 + $0xc] sm:$0xf]
      %v1520 = vld [vmem:[%s1515 + $0x10] sm:$0xf]
      %v1521 = vld [vmem:[%s1515 + $0x14] sm:$0xf]
      %v1522 = vld [vmem:[%s1515 + $0x18] sm:$0xf]
      %v1523 = vld [vmem:[%s1515 + $0x1c] sm:$0xf]
      %v1524 = vld [vmem:[%s1515 + $0x20] sm:$0xf]
      %v1525 = vld [vmem:[%s1515 + $0x24] sm:$0xf]
      %v1526 = vld [vmem:[%s1515 + $0x28] sm:$0xf]
      %v1527 = vld [vmem:[%s1515 + $0x2c] sm:$0xf]
      %v1528 = vld [vmem:[%s1515 + $0x30] sm:$0xf]
      %v1529 = vld [vmem:[%s1515 + $0x34] sm:$0xf]
      %v1530 = vld [vmem:[%s1515 + $0x38] sm:$0xf]
      %v1531 = vld [vmem:[%s1515 + $0x3c] sm:$0xf]
      %v1548 = vunpack.c.l.b16 %v1516
      %v1549 = vunpack.c.l.b16 %v1517
      %v1550 = vunpack.c.l.b16 %v1518
      %v1551 = vunpack.c.l.b16 %v1519
      %v1552 = vunpack.c.l.b16 %v1520
      %v1553 = vunpack.c.l.b16 %v1521
      %v1554 = vunpack.c.l.b16 %v1522
      %v1555 = vunpack.c.l.b16 %v1523
      %v1556 = vunpack.c.l.b16 %v1524
      %v1557 = vunpack.c.l.b16 %v1525
      %v1558 = vunpack.c.l.b16 %v1526
      %v1559 = vunpack.c.l.b16 %v1527
      %v1560 = vunpack.c.l.b16 %v1528
      %v1561 = vunpack.c.l.b16 %v1529
      %v1562 = vunpack.c.l.b16 %v1530
      %v1563 = vunpack.c.l.b16 %v1531
      %v1564 = vpack.c.b16 %v1549, %v1548
      %v1565 = vpack.c.b16 %v1551, %v1550
      %v1566 = vpack.c.b16 %v1553, %v1552
      %v1567 = vpack.c.b16 %v1555, %v1554
      %v1568 = vpack.c.b16 %v1557, %v1556
      %v1569 = vpack.c.b16 %v1559, %v1558
      %v1570 = vpack.c.b16 %v1561, %v1560
      %v1571 = vpack.c.b16 %v1563, %v1562
      %v1573 = vsel %vm411, %v1564, 0
      %v1576 = vsel %vm411, %v1565, 0
      %v1579 = vsel %vm411, %v1566, 0
      %v1582 = vsel %vm411, %v1567, 0
      %v1585 = vsel %vm411, %v1568, 0
      %v1588 = vsel %vm411, %v1569, 0
      %v1591 = vsel %vm411, %v1570, 0
      %v1594 = vsel %vm411, %v1571, 0
      %1596 = vmatprep.subr.bf16.mxu0 0
      %1597 = vmatpush1.bf16.msra.mxu0 0
      %1598 = vmatprep.subr.bf16.mxu0 0
      %1599 = vmatpush1.bf16.msra.mxu0 0
      %1600 = vmatprep.subr.bf16.mxu0 0
      %1601 = vmatpush1.bf16.msra.mxu0 0
      %1602 = vmatprep.subr.bf16.mxu0 0
      %1603 = vmatpush1.bf16.msra.mxu0 0
      %1604 = vmatprep.subr.bf16.mxu0 0
      %1605 = vmatpush1.bf16.msra.mxu0 0
      %1606 = vmatprep.subr.bf16.mxu0 0
      %1607 = vmatpush1.bf16.msra.mxu0 0
      %1608 = vmatprep.subr.bf16.mxu0 0
      %1609 = vmatpush1.bf16.msra.mxu0 0
      %1610 = vmatprep.subr.bf16.mxu0 0
      %1611 = vmatpush1.bf16.msra.mxu0 %v438
      %1612 = vmatprep.subr.bf16.mxu0 0
      %1613 = vmatpush2.bf16.msra.mxu0 0
      %1614 = vmatprep.subr.bf16.mxu0 0
      %1615 = vmatpush2.bf16.msra.mxu0 0
      %1616 = vmatprep.subr.bf16.mxu0 0
      %1617 = vmatpush2.bf16.msra.mxu0 0
      %1618 = vmatprep.subr.bf16.mxu0 0
      %1619 = vmatpush2.bf16.msra.mxu0 0
      %1620 = vmatprep.subr.bf16.mxu0 0
      %1621 = vmatpush2.bf16.msra.mxu0 0
      %1622 = vmatprep.subr.bf16.mxu0 0
      %1623 = vmatpush2.bf16.msra.mxu0 0
      %1624 = vmatprep.subr.bf16.mxu0 0
      %1625 = vmatpush2.bf16.msra.mxu0 0
      %1626 = vmatprep.subr.bf16.mxu0 0
      %1627 = vmatpush2.bf16.msra.mxu0 0
      %1628 = vmatprep.mubr.bf16.mxu0 0
      %1629 = vmatmul.mubr.bf16.gmra.mxu0 %v1573
      %v1630 = vpop.f32.mrf.mxu0
      %v1631 = vadd.f32 0.0, %v1630
      %v1632 = vpop.f32.mrf.mxu0
      %v1633 = vpop.f32.mrf.mxu0
      %v1634 = vadd.f32 0.0, %v1633
      %v1635 = vpop.f32.mrf.mxu0
      %1636 = vmatprep.mubr.bf16.mxu0 0
      %1637 = vmatmul.mubr.bf16.gmra.mxu0 %v1576
      %v1638 = vpop.f32.mrf.mxu0
      %v1639 = vadd.f32 0.0, %v1638
      %v1640 = vpop.f32.mrf.mxu0
      %v1641 = vpop.f32.mrf.mxu0
      %v1642 = vadd.f32 0.0, %v1641
      %v1643 = vpop.f32.mrf.mxu0
      %1644 = vmatprep.mubr.bf16.mxu0 0
      %1645 = vmatmul.mubr.bf16.gmra.mxu0 %v1579
      %v1646 = vpop.f32.mrf.mxu0
      %v1647 = vadd.f32 0.0, %v1646
      %v1648 = vpop.f32.mrf.mxu0
      %v1649 = vpop.f32.mrf.mxu0
      %v1650 = vadd.f32 0.0, %v1649
      %v1651 = vpop.f32.mrf.mxu0
      %1652 = vmatprep.mubr.bf16.mxu0 0
      %1653 = vmatmul.mubr.bf16.gmra.mxu0 %v1582
      %v1654 = vpop.f32.mrf.mxu0
      %v1655 = vadd.f32 0.0, %v1654
      %v1656 = vpop.f32.mrf.mxu0
      %v1657 = vpop.f32.mrf.mxu0
      %v1658 = vadd.f32 0.0, %v1657
      %v1659 = vpop.f32.mrf.mxu0
      %1660 = vmatprep.mubr.bf16.mxu0 0
      %1661 = vmatmul.mubr.bf16.gmra.mxu0 %v1585
      %v1662 = vpop.f32.mrf.mxu0
      %v1663 = vadd.f32 0.0, %v1662
      %v1664 = vpop.f32.mrf.mxu0
      %v1665 = vpop.f32.mrf.mxu0
      %v1666 = vadd.f32 0.0, %v1665
      %v1667 = vpop.f32.mrf.mxu0
      %1668 = vmatprep.mubr.bf16.mxu0 0
      %1669 = vmatmul.mubr.bf16.gmra.mxu0 %v1588
      %v1670 = vpop.f32.mrf.mxu0
      %v1671 = vadd.f32 0.0, %v1670
      %v1672 = vpop.f32.mrf.mxu0
      %v1673 = vpop.f32.mrf.mxu0
      %v1674 = vadd.f32 0.0, %v1673
      %v1675 = vpop.f32.mrf.mxu0
      %1676 = vmatprep.mubr.bf16.mxu0 0
      %1677 = vmatmul.mubr.bf16.gmra.mxu0 %v1591
      %v1678 = vpop.f32.mrf.mxu0
      %v1679 = vadd.f32 0.0, %v1678
      %v1680 = vpop.f32.mrf.mxu0
      %v1681 = vpop.f32.mrf.mxu0
      %v1682 = vadd.f32 0.0, %v1681
      %v1683 = vpop.f32.mrf.mxu0
      %1684 = vmatprep.mubr.bf16.mxu0 0
      %1685 = vmatmul.mubr.bf16.gmra.mxu0 %v1594
      %v1686 = vpop.f32.mrf.mxu0
      %v1687 = vadd.f32 0.0, %v1686
      %v1688 = vpop.f32.mrf.mxu0
      %v1689 = vpop.f32.mrf.mxu0
      %v1690 = vadd.f32 0.0, %v1689
      %v1691 = vpop.f32.mrf.mxu0
      %1692 = vdwg.mxu0
      %v1693 = vadd.f32 %v1631, %v541
      %v1694 = vadd.f32 %v1634, %v541
      %v1695 = vadd.f32 %v1639, %v541
      %v1696 = vadd.f32 %v1642, %v541
      %v1697 = vadd.f32 %v1647, %v541
      %v1698 = vadd.f32 %v1650, %v541
      %v1699 = vadd.f32 %v1655, %v541
      %v1700 = vadd.f32 %v1658, %v541
      %v1701 = vadd.f32 %v1663, %v541
      %v1702 = vadd.f32 %v1666, %v541
      %v1703 = vadd.f32 %v1671, %v541
      %v1704 = vadd.f32 %v1674, %v541
      %v1705 = vadd.f32 %v1679, %v541
      %v1706 = vadd.f32 %v1682, %v541
      %v1707 = vadd.f32 %v1687, %v541
      %v1708 = vadd.f32 %v1690, %v541
      %s1709 = scalar_lea.vmem %s320, 192
      %v1710 = vld [vmem:[%s1709] sm:$0xf]
      %v1711 = vld [vmem:[%s1709 + $0x4] sm:$0xf]
      %v1712 = vld [vmem:[%s1709 + $0x8] sm:$0xf]
      %v1713 = vld [vmem:[%s1709 + $0xc] sm:$0xf]
      %v1714 = vld [vmem:[%s1709 + $0x10] sm:$0xf]
      %v1715 = vld [vmem:[%s1709 + $0x14] sm:$0xf]
      %v1716 = vld [vmem:[%s1709 + $0x18] sm:$0xf]
      %v1717 = vld [vmem:[%s1709 + $0x1c] sm:$0xf]
      %v1718 = vld [vmem:[%s1709 + $0x20] sm:$0xf]
      %v1719 = vld [vmem:[%s1709 + $0x24] sm:$0xf]
      %v1720 = vld [vmem:[%s1709 + $0x28] sm:$0xf]
      %v1721 = vld [vmem:[%s1709 + $0x2c] sm:$0xf]
      %v1722 = vld [vmem:[%s1709 + $0x30] sm:$0xf]
      %v1723 = vld [vmem:[%s1709 + $0x34] sm:$0xf]
      %v1724 = vld [vmem:[%s1709 + $0x38] sm:$0xf]
      %v1725 = vld [vmem:[%s1709 + $0x3c] sm:$0xf]
      %v1726 = vpack.c.bf16 %v1634, %v1631
      %v1727 = vpack.c.bf16 %v1642, %v1639
      %v1728 = vpack.c.bf16 %v1650, %v1647
      %v1729 = vpack.c.bf16 %v1658, %v1655
      %v1730 = vpack.c.bf16 %v1666, %v1663
      %v1731 = vpack.c.bf16 %v1674, %v1671
      %v1732 = vpack.c.bf16 %v1682, %v1679
      %v1733 = vpack.c.bf16 %v1690, %v1687
      %v1750 = vunpack.c.l.b16 %v1710
      %v1751 = vunpack.c.l.b16 %v1711
      %v1752 = vunpack.c.l.b16 %v1712
      %v1753 = vunpack.c.l.b16 %v1713
      %v1754 = vunpack.c.l.b16 %v1714
      %v1755 = vunpack.c.l.b16 %v1715
      %v1756 = vunpack.c.l.b16 %v1716
      %v1757 = vunpack.c.l.b16 %v1717
      %v1758 = vunpack.c.l.b16 %v1718
      %v1759 = vunpack.c.l.b16 %v1719
      %v1760 = vunpack.c.l.b16 %v1720
      %v1761 = vunpack.c.l.b16 %v1721
      %v1762 = vunpack.c.l.b16 %v1722
      %v1763 = vunpack.c.l.b16 %v1723
      %v1764 = vunpack.c.l.b16 %v1724
      %v1765 = vunpack.c.l.b16 %v1725
      %v1766 = vpack.c.b16 %v1751, %v1750
      %v1767 = vpack.c.b16 %v1753, %v1752
      %v1768 = vpack.c.b16 %v1755, %v1754
      %v1769 = vpack.c.b16 %v1757, %v1756
      %v1770 = vpack.c.b16 %v1759, %v1758
      %v1771 = vpack.c.b16 %v1761, %v1760
      %v1772 = vpack.c.b16 %v1763, %v1762
      %v1773 = vpack.c.b16 %v1765, %v1764
      %1790 = vrot.lane.b32.xlu0 %v1726, 96
      %v1791 = vpop.permute.xlu0 %1790
      %1792 = vrot.lane.b32.xlu0 %v1727, 96
      %v1793 = vpop.permute.xlu0 %1792
      %1794 = vrot.lane.b32.xlu0 %v1728, 96
      %v1795 = vpop.permute.xlu0 %1794
      %1796 = vrot.lane.b32.xlu0 %v1729, 96
      %v1797 = vpop.permute.xlu0 %1796
      %1798 = vrot.lane.b32.xlu0 %v1730, 96
      %v1799 = vpop.permute.xlu0 %1798
      %1800 = vrot.lane.b32.xlu0 %v1731, 96
      %v1801 = vpop.permute.xlu0 %1800
      %1802 = vrot.lane.b32.xlu0 %v1732, 96
      %v1803 = vpop.permute.xlu0 %1802
      %1804 = vrot.lane.b32.xlu0 %v1733, 96
      %v1805 = vpop.permute.xlu0 %1804
      %1814 = vmatprep.subr.bf16.mxu0 0
      %1815 = vmatpush1.bf16.msra.mxu0 %v1805
      %1816 = vmatprep.subr.bf16.mxu0 0
      %1817 = vmatpush1.bf16.msra.mxu0 %v1803
      %1818 = vmatprep.subr.bf16.mxu0 0
      %1819 = vmatpush1.bf16.msra.mxu0 %v1801
      %1820 = vmatprep.subr.bf16.mxu0 0
      %1821 = vmatpush1.bf16.msra.mxu0 %v1799
      %1822 = vmatprep.subr.bf16.mxu0 0
      %1823 = vmatpush1.bf16.msra.mxu0 %v1797
      %1824 = vmatprep.subr.bf16.mxu0 0
      %1825 = vmatpush1.bf16.msra.mxu0 %v1795
      %1826 = vmatprep.subr.bf16.mxu0 0
      %1827 = vmatpush1.bf16.msra.mxu0 %v1793
      %1828 = vmatprep.subr.bf16.mxu0 0
      %1829 = vmatpush1.bf16.msra.mxu0 %v1791
      %1830 = vmatprep.subr.bf16.mxu0 0
      %1831 = vmatpush2.bf16.msra.mxu0 0
      %1832 = vmatprep.subr.bf16.mxu0 0
      %1833 = vmatpush2.bf16.msra.mxu0 0
      %1834 = vmatprep.subr.bf16.mxu0 0
      %1835 = vmatpush2.bf16.msra.mxu0 0
      %1836 = vmatprep.subr.bf16.mxu0 0
      %1837 = vmatpush2.bf16.msra.mxu0 0
      %1838 = vmatprep.subr.bf16.mxu0 0
      %1839 = vmatpush2.bf16.msra.mxu0 0
      %1840 = vmatprep.subr.bf16.mxu0 0
      %1841 = vmatpush2.bf16.msra.mxu0 0
      %1842 = vmatprep.subr.bf16.mxu0 0
      %1843 = vmatpush2.bf16.msra.mxu0 0
      %1844 = vmatprep.subr.bf16.mxu0 0
      %1845 = vmatpush2.bf16.msra.mxu0 0
      %1846 = vmatprep.mubr.bf16.mxu0 0
      %1847 = vmatmul.mubr.bf16.gmra.mxu0 %v1766
      %v1848 = vpop.f32.mrf.mxu0
      %v1849 = vadd.f32 0.0, %v1848
      %v1850 = vpop.f32.mrf.mxu0
      %v1851 = vpop.f32.mrf.mxu0
      %v1852 = vadd.f32 0.0, %v1851
      %v1853 = vpop.f32.mrf.mxu0
      %1854 = vmatprep.mubr.bf16.mxu0 0
      %1855 = vmatmul.mubr.bf16.gmra.mxu0 %v1767
      %v1856 = vpop.f32.mrf.mxu0
      %v1857 = vadd.f32 0.0, %v1856
      %v1858 = vpop.f32.mrf.mxu0
      %v1859 = vpop.f32.mrf.mxu0
      %v1860 = vadd.f32 0.0, %v1859
      %v1861 = vpop.f32.mrf.mxu0
      %1862 = vmatprep.mubr.bf16.mxu0 0
      %1863 = vmatmul.mubr.bf16.gmra.mxu0 %v1768
      %v1864 = vpop.f32.mrf.mxu0
      %v1865 = vadd.f32 0.0, %v1864
      %v1866 = vpop.f32.mrf.mxu0
      %v1867 = vpop.f32.mrf.mxu0
      %v1868 = vadd.f32 0.0, %v1867
      %v1869 = vpop.f32.mrf.mxu0
      %1870 = vmatprep.mubr.bf16.mxu0 0
      %1871 = vmatmul.mubr.bf16.gmra.mxu0 %v1769
      %v1872 = vpop.f32.mrf.mxu0
      %v1873 = vadd.f32 0.0, %v1872
      %v1874 = vpop.f32.mrf.mxu0
      %v1875 = vpop.f32.mrf.mxu0
      %v1876 = vadd.f32 0.0, %v1875
      %v1877 = vpop.f32.mrf.mxu0
      %1878 = vmatprep.mubr.bf16.mxu0 0
      %1879 = vmatmul.mubr.bf16.gmra.mxu0 %v1770
      %v1880 = vpop.f32.mrf.mxu0
      %v1881 = vadd.f32 0.0, %v1880
      %v1882 = vpop.f32.mrf.mxu0
      %v1883 = vpop.f32.mrf.mxu0
      %v1884 = vadd.f32 0.0, %v1883
      %v1885 = vpop.f32.mrf.mxu0
      %1886 = vmatprep.mubr.bf16.mxu0 0
      %1887 = vmatmul.mubr.bf16.gmra.mxu0 %v1771
      %v1888 = vpop.f32.mrf.mxu0
      %v1889 = vadd.f32 0.0, %v1888
      %v1890 = vpop.f32.mrf.mxu0
      %v1891 = vpop.f32.mrf.mxu0
      %v1892 = vadd.f32 0.0, %v1891
      %v1893 = vpop.f32.mrf.mxu0
      %1894 = vmatprep.mubr.bf16.mxu0 0
      %1895 = vmatmul.mubr.bf16.gmra.mxu0 %v1772
      %v1896 = vpop.f32.mrf.mxu0
      %v1897 = vadd.f32 0.0, %v1896
      %v1898 = vpop.f32.mrf.mxu0
      %v1899 = vpop.f32.mrf.mxu0
      %v1900 = vadd.f32 0.0, %v1899
      %v1901 = vpop.f32.mrf.mxu0
      %1902 = vmatprep.mubr.bf16.mxu0 0
      %1903 = vmatmul.mubr.bf16.gmra.mxu0 %v1773
      %v1904 = vpop.f32.mrf.mxu0
      %v1905 = vadd.f32 0.0, %v1904
      %v1906 = vpop.f32.mrf.mxu0
      %v1907 = vpop.f32.mrf.mxu0
      %v1908 = vadd.f32 0.0, %v1907
      %v1909 = vpop.f32.mrf.mxu0
      %1910 = vdwg.mxu0
      %v1911 = vadd.f32 %v1693, %v1849
      %v1912 = vadd.f32 %v1694, %v1852
      %v1913 = vadd.f32 %v1695, %v1857
      %v1914 = vadd.f32 %v1696, %v1860
      %v1915 = vadd.f32 %v1697, %v1865
      %v1916 = vadd.f32 %v1698, %v1868
      %v1917 = vadd.f32 %v1699, %v1873
      %v1918 = vadd.f32 %v1700, %v1876
      %v1919 = vadd.f32 %v1701, %v1881
      %v1920 = vadd.f32 %v1702, %v1884
      %v1921 = vadd.f32 %v1703, %v1889
      %v1922 = vadd.f32 %v1704, %v1892
      %v1923 = vadd.f32 %v1705, %v1897
      %v1924 = vadd.f32 %v1706, %v1900
      %v1925 = vadd.f32 %v1707, %v1905
      %v1926 = vadd.f32 %v1708, %v1908
      %s1927 = scalar_lea.vmem %s320, 256
      %v1928 = vld [vmem:[%s1927] sm:$0xf]
      %v1929 = vld [vmem:[%s1927 + $0x4] sm:$0xf]
      %v1930 = vld [vmem:[%s1927 + $0x8] sm:$0xf]
      %v1931 = vld [vmem:[%s1927 + $0xc] sm:$0xf]
      %v1932 = vld [vmem:[%s1927 + $0x10] sm:$0xf]
      %v1933 = vld [vmem:[%s1927 + $0x14] sm:$0xf]
      %v1934 = vld [vmem:[%s1927 + $0x18] sm:$0xf]
      %v1935 = vld [vmem:[%s1927 + $0x1c] sm:$0xf]
      %v1936 = vld [vmem:[%s1927 + $0x20] sm:$0xf]
      %v1937 = vld [vmem:[%s1927 + $0x24] sm:$0xf]
      %v1938 = vld [vmem:[%s1927 + $0x28] sm:$0xf]
      %v1939 = vld [vmem:[%s1927 + $0x2c] sm:$0xf]
      %v1940 = vld [vmem:[%s1927 + $0x30] sm:$0xf]
      %v1941 = vld [vmem:[%s1927 + $0x34] sm:$0xf]
      %v1942 = vld [vmem:[%s1927 + $0x38] sm:$0xf]
      %v1943 = vld [vmem:[%s1927 + $0x3c] sm:$0xf]
      %v1960 = vunpack.c.l.b16 %v1928
      %v1961 = vunpack.c.l.b16 %v1929
      %v1962 = vunpack.c.l.b16 %v1930
      %v1963 = vunpack.c.l.b16 %v1931
      %v1964 = vunpack.c.l.b16 %v1932
      %v1965 = vunpack.c.l.b16 %v1933
      %v1966 = vunpack.c.l.b16 %v1934
      %v1967 = vunpack.c.l.b16 %v1935
      %v1968 = vunpack.c.l.b16 %v1936
      %v1969 = vunpack.c.l.b16 %v1937
      %v1970 = vunpack.c.l.b16 %v1938
      %v1971 = vunpack.c.l.b16 %v1939
      %v1972 = vunpack.c.l.b16 %v1940
      %v1973 = vunpack.c.l.b16 %v1941
      %v1974 = vunpack.c.l.b16 %v1942
      %v1975 = vunpack.c.l.b16 %v1943
      %v1976 = vpack.c.b16 %v1961, %v1960
      %v1977 = vpack.c.b16 %v1963, %v1962
      %v1978 = vpack.c.b16 %v1965, %v1964
      %v1979 = vpack.c.b16 %v1967, %v1966
      %v1980 = vpack.c.b16 %v1969, %v1968
      %v1981 = vpack.c.b16 %v1971, %v1970
      %v1982 = vpack.c.b16 %v1973, %v1972
      %v1983 = vpack.c.b16 %v1975, %v1974
      %1992 = vrot.lane.b32.xlu0 %v1726, 64
      %v1993 = vpop.permute.xlu0 %1992
      %1994 = vrot.lane.b32.xlu0 %v1727, 64
      %v1995 = vpop.permute.xlu0 %1994
      %1996 = vrot.lane.b32.xlu0 %v1728, 64
      %v1997 = vpop.permute.xlu0 %1996
      %1998 = vrot.lane.b32.xlu0 %v1729, 64
      %v1999 = vpop.permute.xlu0 %1998
      %2000 = vrot.lane.b32.xlu0 %v1730, 64
      %v2001 = vpop.permute.xlu0 %2000
      %2002 = vrot.lane.b32.xlu0 %v1731, 64
      %v2003 = vpop.permute.xlu0 %2002
      %2004 = vrot.lane.b32.xlu0 %v1732, 64
      %v2005 = vpop.permute.xlu0 %2004
      %2006 = vrot.lane.b32.xlu0 %v1733, 64
      %v2007 = vpop.permute.xlu0 %2006
      %2016 = vmatprep.subr.bf16.mxu0 0
      %2017 = vmatpush1.bf16.msra.mxu0 %v2007
      %2018 = vmatprep.subr.bf16.mxu0 0
      %2019 = vmatpush1.bf16.msra.mxu0 %v2005
      %2020 = vmatprep.subr.bf16.mxu0 0
      %2021 = vmatpush1.bf16.msra.mxu0 %v2003
      %2022 = vmatprep.subr.bf16.mxu0 0
      %2023 = vmatpush1.bf16.msra.mxu0 %v2001
      %2024 = vmatprep.subr.bf16.mxu0 0
      %2025 = vmatpush1.bf16.msra.mxu0 %v1999
      %2026 = vmatprep.subr.bf16.mxu0 0
      %2027 = vmatpush1.bf16.msra.mxu0 %v1997
      %2028 = vmatprep.subr.bf16.mxu0 0
      %2029 = vmatpush1.bf16.msra.mxu0 %v1995
      %2030 = vmatprep.subr.bf16.mxu0 0
      %2031 = vmatpush1.bf16.msra.mxu0 %v1993
      %2032 = vmatprep.subr.bf16.mxu0 0
      %2033 = vmatpush2.bf16.msra.mxu0 0
      %2034 = vmatprep.subr.bf16.mxu0 0
      %2035 = vmatpush2.bf16.msra.mxu0 0
      %2036 = vmatprep.subr.bf16.mxu0 0
      %2037 = vmatpush2.bf16.msra.mxu0 0
      %2038 = vmatprep.subr.bf16.mxu0 0
      %2039 = vmatpush2.bf16.msra.mxu0 0
      %2040 = vmatprep.subr.bf16.mxu0 0
      %2041 = vmatpush2.bf16.msra.mxu0 0
      %2042 = vmatprep.subr.bf16.mxu0 0
      %2043 = vmatpush2.bf16.msra.mxu0 0
      %2044 = vmatprep.subr.bf16.mxu0 0
      %2045 = vmatpush2.bf16.msra.mxu0 0
      %2046 = vmatprep.subr.bf16.mxu0 0
      %2047 = vmatpush2.bf16.msra.mxu0 0
      %2048 = vmatprep.mubr.bf16.mxu0 0
      %2049 = vmatmul.mubr.bf16.gmra.mxu0 %v1976
      %v2050 = vpop.f32.mrf.mxu0
      %v2051 = vadd.f32 0.0, %v2050
      %v2052 = vpop.f32.mrf.mxu0
      %v2053 = vpop.f32.mrf.mxu0
      %v2054 = vadd.f32 0.0, %v2053
      %v2055 = vpop.f32.mrf.mxu0
      %2056 = vmatprep.mubr.bf16.mxu0 0
      %2057 = vmatmul.mubr.bf16.gmra.mxu0 %v1977
      %v2058 = vpop.f32.mrf.mxu0
      %v2059 = vadd.f32 0.0, %v2058
      %v2060 = vpop.f32.mrf.mxu0
      %v2061 = vpop.f32.mrf.mxu0
      %v2062 = vadd.f32 0.0, %v2061
      %v2063 = vpop.f32.mrf.mxu0
      %2064 = vmatprep.mubr.bf16.mxu0 0
      %2065 = vmatmul.mubr.bf16.gmra.mxu0 %v1978
      %v2066 = vpop.f32.mrf.mxu0
      %v2067 = vadd.f32 0.0, %v2066
      %v2068 = vpop.f32.mrf.mxu0
      %v2069 = vpop.f32.mrf.mxu0
      %v2070 = vadd.f32 0.0, %v2069
      %v2071 = vpop.f32.mrf.mxu0
      %2072 = vmatprep.mubr.bf16.mxu0 0
      %2073 = vmatmul.mubr.bf16.gmra.mxu0 %v1979
      %v2074 = vpop.f32.mrf.mxu0
      %v2075 = vadd.f32 0.0, %v2074
      %v2076 = vpop.f32.mrf.mxu0
      %v2077 = vpop.f32.mrf.mxu0
      %v2078 = vadd.f32 0.0, %v2077
      %v2079 = vpop.f32.mrf.mxu0
      %2080 = vmatprep.mubr.bf16.mxu0 0
      %2081 = vmatmul.mubr.bf16.gmra.mxu0 %v1980
      %v2082 = vpop.f32.mrf.mxu0
      %v2083 = vadd.f32 0.0, %v2082
      %v2084 = vpop.f32.mrf.mxu0
      %v2085 = vpop.f32.mrf.mxu0
      %v2086 = vadd.f32 0.0, %v2085
      %v2087 = vpop.f32.mrf.mxu0
      %2088 = vmatprep.mubr.bf16.mxu0 0
      %2089 = vmatmul.mubr.bf16.gmra.mxu0 %v1981
      %v2090 = vpop.f32.mrf.mxu0
      %v2091 = vadd.f32 0.0, %v2090
      %v2092 = vpop.f32.mrf.mxu0
      %v2093 = vpop.f32.mrf.mxu0
      %v2094 = vadd.f32 0.0, %v2093
      %v2095 = vpop.f32.mrf.mxu0
      %2096 = vmatprep.mubr.bf16.mxu0 0
      %2097 = vmatmul.mubr.bf16.gmra.mxu0 %v1982
      %v2098 = vpop.f32.mrf.mxu0
      %v2099 = vadd.f32 0.0, %v2098
      %v2100 = vpop.f32.mrf.mxu0
      %v2101 = vpop.f32.mrf.mxu0
      %v2102 = vadd.f32 0.0, %v2101
      %v2103 = vpop.f32.mrf.mxu0
      %2104 = vmatprep.mubr.bf16.mxu0 0
      %2105 = vmatmul.mubr.bf16.gmra.mxu0 %v1983
      %v2106 = vpop.f32.mrf.mxu0
      %v2107 = vadd.f32 0.0, %v2106
      %v2108 = vpop.f32.mrf.mxu0
      %v2109 = vpop.f32.mrf.mxu0
      %v2110 = vadd.f32 0.0, %v2109
      %v2111 = vpop.f32.mrf.mxu0
      %2112 = vdwg.mxu0
      %v2113 = vadd.f32 %v1911, %v2051
      %v2114 = vadd.f32 %v1912, %v2054
      %v2115 = vadd.f32 %v1913, %v2059
      %v2116 = vadd.f32 %v1914, %v2062
      %v2117 = vadd.f32 %v1915, %v2067
      %v2118 = vadd.f32 %v1916, %v2070
      %v2119 = vadd.f32 %v1917, %v2075
      %v2120 = vadd.f32 %v1918, %v2078
      %v2121 = vadd.f32 %v1919, %v2083
      %v2122 = vadd.f32 %v1920, %v2086
      %v2123 = vadd.f32 %v1921, %v2091
      %v2124 = vadd.f32 %v1922, %v2094
      %v2125 = vadd.f32 %v1923, %v2099
      %v2126 = vadd.f32 %v1924, %v2102
      %v2127 = vadd.f32 %v1925, %v2107
      %v2128 = vadd.f32 %v1926, %v2110
      %s2129 = scalar_lea.vmem %s320, 320
      %v2130 = vld [vmem:[%s2129] sm:$0xf]
      %v2131 = vld [vmem:[%s2129 + $0x4] sm:$0xf]
      %v2132 = vld [vmem:[%s2129 + $0x8] sm:$0xf]
      %v2133 = vld [vmem:[%s2129 + $0xc] sm:$0xf]
      %v2134 = vld [vmem:[%s2129 + $0x10] sm:$0xf]
      %v2135 = vld [vmem:[%s2129 + $0x14] sm:$0xf]
      %v2136 = vld [vmem:[%s2129 + $0x18] sm:$0xf]
      %v2137 = vld [vmem:[%s2129 + $0x1c] sm:$0xf]
      %v2138 = vld [vmem:[%s2129 + $0x20] sm:$0xf]
      %v2139 = vld [vmem:[%s2129 + $0x24] sm:$0xf]
      %v2140 = vld [vmem:[%s2129 + $0x28] sm:$0xf]
      %v2141 = vld [vmem:[%s2129 + $0x2c] sm:$0xf]
      %v2142 = vld [vmem:[%s2129 + $0x30] sm:$0xf]
      %v2143 = vld [vmem:[%s2129 + $0x34] sm:$0xf]
      %v2144 = vld [vmem:[%s2129 + $0x38] sm:$0xf]
      %v2145 = vld [vmem:[%s2129 + $0x3c] sm:$0xf]
      %v2162 = vunpack.c.l.b16 %v2130
      %v2163 = vunpack.c.l.b16 %v2131
      %v2164 = vunpack.c.l.b16 %v2132
      %v2165 = vunpack.c.l.b16 %v2133
      %v2166 = vunpack.c.l.b16 %v2134
      %v2167 = vunpack.c.l.b16 %v2135
      %v2168 = vunpack.c.l.b16 %v2136
      %v2169 = vunpack.c.l.b16 %v2137
      %v2170 = vunpack.c.l.b16 %v2138
      %v2171 = vunpack.c.l.b16 %v2139
      %v2172 = vunpack.c.l.b16 %v2140
      %v2173 = vunpack.c.l.b16 %v2141
      %v2174 = vunpack.c.l.b16 %v2142
      %v2175 = vunpack.c.l.b16 %v2143
      %v2176 = vunpack.c.l.b16 %v2144
      %v2177 = vunpack.c.l.b16 %v2145
      %v2178 = vpack.c.b16 %v2163, %v2162
      %v2179 = vpack.c.b16 %v2165, %v2164
      %v2180 = vpack.c.b16 %v2167, %v2166
      %v2181 = vpack.c.b16 %v2169, %v2168
      %v2182 = vpack.c.b16 %v2171, %v2170
      %v2183 = vpack.c.b16 %v2173, %v2172
      %v2184 = vpack.c.b16 %v2175, %v2174
      %v2185 = vpack.c.b16 %v2177, %v2176
      %2194 = vrot.lane.b32.xlu0 %v1726, 32
      %v2195 = vpop.permute.xlu0 %2194
      %2196 = vrot.lane.b32.xlu0 %v1727, 32
      %v2197 = vpop.permute.xlu0 %2196
      %2198 = vrot.lane.b32.xlu0 %v1728, 32
      %v2199 = vpop.permute.xlu0 %2198
      %2200 = vrot.lane.b32.xlu0 %v1729, 32
      %v2201 = vpop.permute.xlu0 %2200
      %2202 = vrot.lane.b32.xlu0 %v1730, 32
      %v2203 = vpop.permute.xlu0 %2202
      %2204 = vrot.lane.b32.xlu0 %v1731, 32
      %v2205 = vpop.permute.xlu0 %2204
      %2206 = vrot.lane.b32.xlu0 %v1732, 32
      %v2207 = vpop.permute.xlu0 %2206
      %2208 = vrot.lane.b32.xlu0 %v1733, 32
      %v2209 = vpop.permute.xlu0 %2208
      %2218 = vmatprep.subr.bf16.mxu0 0
      %2219 = vmatpush1.bf16.msra.mxu0 %v2209
      %2220 = vmatprep.subr.bf16.mxu0 0
      %2221 = vmatpush1.bf16.msra.mxu0 %v2207
      %2222 = vmatprep.subr.bf16.mxu0 0
      %2223 = vmatpush1.bf16.msra.mxu0 %v2205
      %2224 = vmatprep.subr.bf16.mxu0 0
      %2225 = vmatpush1.bf16.msra.mxu0 %v2203
      %2226 = vmatprep.subr.bf16.mxu0 0
      %2227 = vmatpush1.bf16.msra.mxu0 %v2201
      %2228 = vmatprep.subr.bf16.mxu0 0
      %2229 = vmatpush1.bf16.msra.mxu0 %v2199
      %2230 = vmatprep.subr.bf16.mxu0 0
      %2231 = vmatpush1.bf16.msra.mxu0 %v2197
      %2232 = vmatprep.subr.bf16.mxu0 0
      %2233 = vmatpush1.bf16.msra.mxu0 %v2195
      %2234 = vmatprep.subr.bf16.mxu0 0
      %2235 = vmatpush2.bf16.msra.mxu0 0
      %2236 = vmatprep.subr.bf16.mxu0 0
      %2237 = vmatpush2.bf16.msra.mxu0 0
      %2238 = vmatprep.subr.bf16.mxu0 0
      %2239 = vmatpush2.bf16.msra.mxu0 0
      %2240 = vmatprep.subr.bf16.mxu0 0
      %2241 = vmatpush2.bf16.msra.mxu0 0
      %2242 = vmatprep.subr.bf16.mxu0 0
      %2243 = vmatpush2.bf16.msra.mxu0 0
      %2244 = vmatprep.subr.bf16.mxu0 0
      %2245 = vmatpush2.bf16.msra.mxu0 0
      %2246 = vmatprep.subr.bf16.mxu0 0
      %2247 = vmatpush2.bf16.msra.mxu0 0
      %2248 = vmatprep.subr.bf16.mxu0 0
      %2249 = vmatpush2.bf16.msra.mxu0 0
      %2250 = vmatprep.mubr.bf16.mxu0 0
      %2251 = vmatmul.mubr.bf16.gmra.mxu0 %v2178
      %v2252 = vpop.f32.mrf.mxu0
      %v2253 = vadd.f32 0.0, %v2252
      %v2254 = vpop.f32.mrf.mxu0
      %v2255 = vpop.f32.mrf.mxu0
      %v2256 = vadd.f32 0.0, %v2255
      %v2257 = vpop.f32.mrf.mxu0
      %2258 = vmatprep.mubr.bf16.mxu0 0
      %2259 = vmatmul.mubr.bf16.gmra.mxu0 %v2179
      %v2260 = vpop.f32.mrf.mxu0
      %v2261 = vadd.f32 0.0, %v2260
      %v2262 = vpop.f32.mrf.mxu0
      %v2263 = vpop.f32.mrf.mxu0
      %v2264 = vadd.f32 0.0, %v2263
      %v2265 = vpop.f32.mrf.mxu0
      %2266 = vmatprep.mubr.bf16.mxu0 0
      %2267 = vmatmul.mubr.bf16.gmra.mxu0 %v2180
      %v2268 = vpop.f32.mrf.mxu0
      %v2269 = vadd.f32 0.0, %v2268
      %v2270 = vpop.f32.mrf.mxu0
      %v2271 = vpop.f32.mrf.mxu0
      %v2272 = vadd.f32 0.0, %v2271
      %v2273 = vpop.f32.mrf.mxu0
      %2274 = vmatprep.mubr.bf16.mxu0 0
      %2275 = vmatmul.mubr.bf16.gmra.mxu0 %v2181
      %v2276 = vpop.f32.mrf.mxu0
      %v2277 = vadd.f32 0.0, %v2276
      %v2278 = vpop.f32.mrf.mxu0
      %v2279 = vpop.f32.mrf.mxu0
      %v2280 = vadd.f32 0.0, %v2279
      %v2281 = vpop.f32.mrf.mxu0
      %2282 = vmatprep.mubr.bf16.mxu0 0
      %2283 = vmatmul.mubr.bf16.gmra.mxu0 %v2182
      %v2284 = vpop.f32.mrf.mxu0
      %v2285 = vadd.f32 0.0, %v2284
      %v2286 = vpop.f32.mrf.mxu0
      %v2287 = vpop.f32.mrf.mxu0
      %v2288 = vadd.f32 0.0, %v2287
      %v2289 = vpop.f32.mrf.mxu0
      %2290 = vmatprep.mubr.bf16.mxu0 0
      %2291 = vmatmul.mubr.bf16.gmra.mxu0 %v2183
      %v2292 = vpop.f32.mrf.mxu0
      %v2293 = vadd.f32 0.0, %v2292
      %v2294 = vpop.f32.mrf.mxu0
      %v2295 = vpop.f32.mrf.mxu0
      %v2296 = vadd.f32 0.0, %v2295
      %v2297 = vpop.f32.mrf.mxu0
      %2298 = vmatprep.mubr.bf16.mxu0 0
      %2299 = vmatmul.mubr.bf16.gmra.mxu0 %v2184
      %v2300 = vpop.f32.mrf.mxu0
      %v2301 = vadd.f32 0.0, %v2300
      %v2302 = vpop.f32.mrf.mxu0
      %v2303 = vpop.f32.mrf.mxu0
      %v2304 = vadd.f32 0.0, %v2303
      %v2305 = vpop.f32.mrf.mxu0
      %2306 = vmatprep.mubr.bf16.mxu0 0
      %2307 = vmatmul.mubr.bf16.gmra.mxu0 %v2185
      %v2308 = vpop.f32.mrf.mxu0
      %v2309 = vadd.f32 0.0, %v2308
      %v2310 = vpop.f32.mrf.mxu0
      %v2311 = vpop.f32.mrf.mxu0
      %v2312 = vadd.f32 0.0, %v2311
      %v2313 = vpop.f32.mrf.mxu0
      %2314 = vdwg.mxu0
      %v2315 = vadd.f32 %v2113, %v2253
      %v2316 = vadd.f32 %v2114, %v2256
      %v2317 = vadd.f32 %v2115, %v2261
      %v2318 = vadd.f32 %v2116, %v2264
      %v2319 = vadd.f32 %v2117, %v2269
      %v2320 = vadd.f32 %v2118, %v2272
      %v2321 = vadd.f32 %v2119, %v2277
      %v2322 = vadd.f32 %v2120, %v2280
      %v2323 = vadd.f32 %v2121, %v2285
      %v2324 = vadd.f32 %v2122, %v2288
      %v2325 = vadd.f32 %v2123, %v2293
      %v2326 = vadd.f32 %v2124, %v2296
      %v2327 = vadd.f32 %v2125, %v2301
      %v2328 = vadd.f32 %v2126, %v2304
      %v2329 = vadd.f32 %v2127, %v2309
      %v2330 = vadd.f32 %v2128, %v2312
      %v2331 = vmax.f32 %v2315, 0.0
      %v2332 = vmax.f32 %v2316, 0.0
      %v2333 = vmax.f32 %v2317, 0.0
      %v2334 = vmax.f32 %v2318, 0.0
      %v2335 = vmax.f32 %v2319, 0.0
      %v2336 = vmax.f32 %v2320, 0.0
      %v2337 = vmax.f32 %v2321, 0.0
      %v2338 = vmax.f32 %v2322, 0.0
      %v2339 = vmax.f32 %v2323, 0.0
      %v2340 = vmax.f32 %v2324, 0.0
      %v2341 = vmax.f32 %v2325, 0.0
      %v2342 = vmax.f32 %v2326, 0.0
      %v2343 = vmax.f32 %v2327, 0.0
      %v2344 = vmax.f32 %v2328, 0.0
      %v2345 = vmax.f32 %v2329, 0.0
      %v2346 = vmax.f32 %v2330, 0.0
      %v2347 = vpack.c.bf16 %v2332, %v2331
      %v2348 = vpack.c.bf16 %v2334, %v2333
      %v2349 = vpack.c.bf16 %v2336, %v2335
      %v2350 = vpack.c.bf16 %v2338, %v2337
      %v2351 = vpack.c.bf16 %v2340, %v2339
      %v2352 = vpack.c.bf16 %v2342, %v2341
      %v2353 = vpack.c.bf16 %v2344, %v2343
      %v2354 = vpack.c.bf16 %v2346, %v2345
      %s2355 = scalar_lea.vmem %s327, 16
      %v2356 = vld [vmem:[%s2355] sm:$0xf]
      %v2357 = vld [vmem:[%s2355 + $0x4] sm:$0xf]
      %v2358 = vld [vmem:[%s2355 + $0x8] sm:$0xf]
      %v2359 = vld [vmem:[%s2355 + $0xc] sm:$0xf]
      %v2364 = vunpack.c.l.b16 %v2356
      %v2365 = vunpack.c.l.b16 %v2357
      %v2366 = vunpack.c.l.b16 %v2358
      %v2367 = vunpack.c.l.b16 %v2359
      %v2368 = vpack.c.b16 %v2365, %v2364
      %v2369 = vpack.c.b16 %v2367, %v2366
      %2372 = vmatprep.subr.bf16.mxu0 0
      %2373 = vmatpush1.bf16.msra.mxu0 %v2354
      %2374 = vmatprep.subr.bf16.mxu0 0
      %2375 = vmatpush1.bf16.msra.mxu0 %v2353
      %2376 = vmatprep.subr.bf16.mxu0 0
      %2377 = vmatpush1.bf16.msra.mxu0 %v2352
      %2378 = vmatprep.subr.bf16.mxu0 0
      %2379 = vmatpush1.bf16.msra.mxu0 %v2351
      %2380 = vmatprep.subr.bf16.mxu0 0
      %2381 = vmatpush1.bf16.msra.mxu0 %v2350
      %2382 = vmatprep.subr.bf16.mxu0 0
      %2383 = vmatpush1.bf16.msra.mxu0 %v2349
      %2384 = vmatprep.subr.bf16.mxu0 0
      %2385 = vmatpush1.bf16.msra.mxu0 %v2348
      %2386 = vmatprep.subr.bf16.mxu0 0
      %2387 = vmatpush1.bf16.msra.mxu0 %v2347
      %2388 = vmatprep.subr.bf16.mxu0 0
      %2389 = vmatpush2.bf16.msra.mxu0 0
      %2390 = vmatprep.subr.bf16.mxu0 0
      %2391 = vmatpush2.bf16.msra.mxu0 0
      %2392 = vmatprep.subr.bf16.mxu0 0
      %2393 = vmatpush2.bf16.msra.mxu0 0
      %2394 = vmatprep.subr.bf16.mxu0 0
      %2395 = vmatpush2.bf16.msra.mxu0 0
      %2396 = vmatprep.subr.bf16.mxu0 0
      %2397 = vmatpush2.bf16.msra.mxu0 0
      %2398 = vmatprep.subr.bf16.mxu0 0
      %2399 = vmatpush2.bf16.msra.mxu0 0
      %2400 = vmatprep.subr.bf16.mxu0 0
      %2401 = vmatpush2.bf16.msra.mxu0 0
      %2402 = vmatprep.subr.bf16.mxu0 0
      %2403 = vmatpush2.bf16.msra.mxu0 0
      %2404 = vmatprep.mubr.bf16.mxu0 0
      %2405 = vmatmul.mubr.bf16.gmra.mxu0 %v2368
      %v2406 = vpop.f32.mrf.mxu0
      %v2407 = vadd.f32 0.0, %v2406
      %v2408 = vpop.f32.mrf.mxu0
      %v2409 = vpop.f32.mrf.mxu0
      %v2410 = vadd.f32 0.0, %v2409
      %v2411 = vpop.f32.mrf.mxu0
      %2412 = vmatprep.mubr.bf16.mxu0 0
      %2413 = vmatmul.mubr.bf16.gmra.mxu0 %v2369
      %v2414 = vpop.f32.mrf.mxu0
      %v2415 = vadd.f32 0.0, %v2414
      %v2416 = vpop.f32.mrf.mxu0
      %v2417 = vpop.f32.mrf.mxu0
      %v2418 = vadd.f32 0.0, %v2417
      %v2419 = vpop.f32.mrf.mxu0
      %2420 = vdwg.mxu0
      %v2421 = vpack.c.bf16 %v2407, %v2407
      %v2423 = vsel %vm1288, %v2421, 0
      %2425 = vmatprep.subr.bf16.mxu0 0
      %2426 = vmatpush1.bf16.msra.mxu0 0
      %2427 = vmatprep.subr.bf16.mxu0 0
      %2428 = vmatpush1.bf16.msra.mxu0 0
      %2429 = vmatprep.subr.bf16.mxu0 0
      %2430 = vmatpush1.bf16.msra.mxu0 0
      %2431 = vmatprep.subr.bf16.mxu0 0
      %2432 = vmatpush1.bf16.msra.mxu0 0
      %2433 = vmatprep.subr.bf16.mxu0 0
      %2434 = vmatpush1.bf16.msra.mxu0 0
      %2435 = vmatprep.subr.bf16.mxu0 0
      %2436 = vmatpush1.bf16.msra.mxu0 0
      %2437 = vmatprep.subr.bf16.mxu0 0
      %2438 = vmatpush1.bf16.msra.mxu0 %v1285
      %2439 = vmatprep.subr.bf16.mxu0 0
      %2440 = vmatpush1.bf16.msra.mxu0 %v1284
      %2441 = vmatprep.subr.bf16.mxu0 0
      %2442 = vmatpush2.bf16.msra.mxu0 0
      %2443 = vmatprep.subr.bf16.mxu0 0
      %2444 = vmatpush2.bf16.msra.mxu0 0
      %2445 = vmatprep.subr.bf16.mxu0 0
      %2446 = vmatpush2.bf16.msra.mxu0 0
      %2447 = vmatprep.subr.bf16.mxu0 0
      %2448 = vmatpush2.bf16.msra.mxu0 0
      %2449 = vmatprep.subr.bf16.mxu0 0
      %2450 = vmatpush2.bf16.msra.mxu0 0
      %2451 = vmatprep.subr.bf16.mxu0 0
      %2452 = vmatpush2.bf16.msra.mxu0 0
      %2453 = vmatprep.subr.bf16.mxu0 0
      %2454 = vmatpush2.bf16.msra.mxu0 0
      %2455 = vmatprep.subr.bf16.mxu0 0
      %2456 = vmatpush2.bf16.msra.mxu0 0
      %2457 = vmatprep.mubr.bf16.mxu0 0
      %2458 = vmatmul.mubr.bf16.gmra.mxu0 %v2423
      %v2459 = vpop.f32.mrf.mxu0
      %v2460 = vadd.f32 0.0, %v2459
      %v2461 = vpop.f32.mrf.mxu0
      %v2462 = vpop.f32.mrf.mxu0
      %v2463 = vpop.f32.mrf.mxu0
      %2464 = vdwg.mxu0
      %v2465 = vadd.f32 %v1273, %v2460
      %v2466 = vpack.c.bf16 %v2410, %v2410
      %v2468 = vsel %vm1288, %v2466, 0
      %2470 = vmatprep.subr.bf16.mxu0 0
      %2471 = vmatpush1.bf16.msra.mxu0 0
      %2472 = vmatprep.subr.bf16.mxu0 0
      %2473 = vmatpush1.bf16.msra.mxu0 0
      %2474 = vmatprep.subr.bf16.mxu0 0
      %2475 = vmatpush1.bf16.msra.mxu0 0
      %2476 = vmatprep.subr.bf16.mxu0 0
      %2477 = vmatpush1.bf16.msra.mxu0 0
      %2478 = vmatprep.subr.bf16.mxu0 0
      %2479 = vmatpush1.bf16.msra.mxu0 0
      %2480 = vmatprep.subr.bf16.mxu0 0
      %2481 = vmatpush1.bf16.msra.mxu0 0
      %2482 = vmatprep.subr.bf16.mxu0 0
      %2483 = vmatpush1.bf16.msra.mxu0 %v1343
      %2484 = vmatprep.subr.bf16.mxu0 0
      %2485 = vmatpush1.bf16.msra.mxu0 %v1342
      %2486 = vmatprep.subr.bf16.mxu0 0
      %2487 = vmatpush2.bf16.msra.mxu0 0
      %2488 = vmatprep.subr.bf16.mxu0 0
      %2489 = vmatpush2.bf16.msra.mxu0 0
      %2490 = vmatprep.subr.bf16.mxu0 0
      %2491 = vmatpush2.bf16.msra.mxu0 0
      %2492 = vmatprep.subr.bf16.mxu0 0
      %2493 = vmatpush2.bf16.msra.mxu0 0
      %2494 = vmatprep.subr.bf16.mxu0 0
      %2495 = vmatpush2.bf16.msra.mxu0 0
      %2496 = vmatprep.subr.bf16.mxu0 0
      %2497 = vmatpush2.bf16.msra.mxu0 0
      %2498 = vmatprep.subr.bf16.mxu0 0
      %2499 = vmatpush2.bf16.msra.mxu0 0
      %2500 = vmatprep.subr.bf16.mxu0 0
      %2501 = vmatpush2.bf16.msra.mxu0 0
      %2502 = vmatprep.mubr.bf16.mxu0 0
      %2503 = vmatmul.mubr.bf16.gmra.mxu0 %v2468
      %v2504 = vpop.f32.mrf.mxu0
      %v2505 = vadd.f32 0.0, %v2504
      %v2506 = vpop.f32.mrf.mxu0
      %v2507 = vpop.f32.mrf.mxu0
      %v2508 = vpop.f32.mrf.mxu0
      %2509 = vdwg.mxu0
      %v2510 = vadd.f32 %v2465, %v2505
      %v2511 = vpack.c.bf16 %v2415, %v2415
      %v2513 = vsel %vm1288, %v2511, 0
      %2515 = vmatprep.subr.bf16.mxu0 0
      %2516 = vmatpush1.bf16.msra.mxu0 0
      %2517 = vmatprep.subr.bf16.mxu0 0
      %2518 = vmatpush1.bf16.msra.mxu0 0
      %2519 = vmatprep.subr.bf16.mxu0 0
      %2520 = vmatpush1.bf16.msra.mxu0 0
      %2521 = vmatprep.subr.bf16.mxu0 0
      %2522 = vmatpush1.bf16.msra.mxu0 0
      %2523 = vmatprep.subr.bf16.mxu0 0
      %2524 = vmatpush1.bf16.msra.mxu0 0
      %2525 = vmatprep.subr.bf16.mxu0 0
      %2526 = vmatpush1.bf16.msra.mxu0 0
      %2527 = vmatprep.subr.bf16.mxu0 0
      %2528 = vmatpush1.bf16.msra.mxu0 %v1400
      %2529 = vmatprep.subr.bf16.mxu0 0
      %2530 = vmatpush1.bf16.msra.mxu0 %v1399
      %2531 = vmatprep.subr.bf16.mxu0 0
      %2532 = vmatpush2.bf16.msra.mxu0 0
      %2533 = vmatprep.subr.bf16.mxu0 0
      %2534 = vmatpush2.bf16.msra.mxu0 0
      %2535 = vmatprep.subr.bf16.mxu0 0
      %2536 = vmatpush2.bf16.msra.mxu0 0
      %2537 = vmatprep.subr.bf16.mxu0 0
      %2538 = vmatpush2.bf16.msra.mxu0 0
      %2539 = vmatprep.subr.bf16.mxu0 0
      %2540 = vmatpush2.bf16.msra.mxu0 0
      %2541 = vmatprep.subr.bf16.mxu0 0
      %2542 = vmatpush2.bf16.msra.mxu0 0
      %2543 = vmatprep.subr.bf16.mxu0 0
      %2544 = vmatpush2.bf16.msra.mxu0 0
      %2545 = vmatprep.subr.bf16.mxu0 0
      %2546 = vmatpush2.bf16.msra.mxu0 0
      %2547 = vmatprep.mubr.bf16.mxu0 0
      %2548 = vmatmul.mubr.bf16.gmra.mxu0 %v2513
      %v2549 = vpop.f32.mrf.mxu0
      %v2550 = vadd.f32 0.0, %v2549
      %v2551 = vpop.f32.mrf.mxu0
      %v2552 = vpop.f32.mrf.mxu0
      %v2553 = vpop.f32.mrf.mxu0
      %2554 = vdwg.mxu0
      %v2555 = vadd.f32 %v2510, %v2550
      %v2556 = vpack.c.bf16 %v2418, %v2418
      %v2558 = vsel %vm1288, %v2556, 0
      %2560 = vmatprep.subr.bf16.mxu0 0
      %2561 = vmatpush1.bf16.msra.mxu0 0
      %2562 = vmatprep.subr.bf16.mxu0 0
      %2563 = vmatpush1.bf16.msra.mxu0 0
      %2564 = vmatprep.subr.bf16.mxu0 0
      %2565 = vmatpush1.bf16.msra.mxu0 0
      %2566 = vmatprep.subr.bf16.mxu0 0
      %2567 = vmatpush1.bf16.msra.mxu0 0
      %2568 = vmatprep.subr.bf16.mxu0 0
      %2569 = vmatpush1.bf16.msra.mxu0 0
      %2570 = vmatprep.subr.bf16.mxu0 0
      %2571 = vmatpush1.bf16.msra.mxu0 0
      %2572 = vmatprep.subr.bf16.mxu0 0
      %2573 = vmatpush1.bf16.msra.mxu0 %v1457
      %2574 = vmatprep.subr.bf16.mxu0 0
      %2575 = vmatpush1.bf16.msra.mxu0 %v1456
      %2576 = vmatprep.subr.bf16.mxu0 0
      %2577 = vmatpush2.bf16.msra.mxu0 0
      %2578 = vmatprep.subr.bf16.mxu0 0
      %2579 = vmatpush2.bf16.msra.mxu0 0
      %2580 = vmatprep.subr.bf16.mxu0 0
      %2581 = vmatpush2.bf16.msra.mxu0 0
      %2582 = vmatprep.subr.bf16.mxu0 0
      %2583 = vmatpush2.bf16.msra.mxu0 0
      %2584 = vmatprep.subr.bf16.mxu0 0
      %2585 = vmatpush2.bf16.msra.mxu0 0
      %2586 = vmatprep.subr.bf16.mxu0 0
      %2587 = vmatpush2.bf16.msra.mxu0 0
      %2588 = vmatprep.subr.bf16.mxu0 0
      %2589 = vmatpush2.bf16.msra.mxu0 0
      %2590 = vmatprep.subr.bf16.mxu0 0
      %2591 = vmatpush2.bf16.msra.mxu0 0
      %2592 = vmatprep.mubr.bf16.mxu0 0
      %2593 = vmatmul.mubr.bf16.gmra.mxu0 %v2558
      %v2594 = vpop.f32.mrf.mxu0
      %v2595 = vadd.f32 0.0, %v2594
      %v2596 = vpop.f32.mrf.mxu0
      %v2597 = vpop.f32.mrf.mxu0
      %v2598 = vpop.f32.mrf.mxu0
      %2599 = vdwg.mxu0
      %v2600 = vadd.f32 %v2555, %v2595
      %2601 = vmax.xlane.f32.xlu0 %v2600
      %v2602 = vpop.xlane.xlu0 %2601
      %v2603 = vsub.f32 %v2600, %v2602
      %v2604 = vmul.f32 %v2603, 1.442695
      %v2605 = vpow.pop %v2604
      %2606 = vadd.xlane.f32.xlu0 %v2605
      %v2607 = vpop.xlane.xlu0 %2606
      %v2608 = vlog2.pop %v2607
      %v2609 = vmul.f32 %v2608, 0.6931472
      %v2610 = vsub.f32 %v2603, %v2609
      %s2611 = scalar_lea.vmem %s333, 8
      %2612 = vst [vmem:[%s2611] sm:$0xff] %v2610
      %s2613 = scalar_lea.vmem %s313, 128
      %v2614 = vld [vmem:[%s2613] sm:$0xf]
      %v2615 = vld [vmem:[%s2613 + $0x4] sm:$0xf]
      %v2616 = vld [vmem:[%s2613 + $0x8] sm:$0xf]
      %v2617 = vld [vmem:[%s2613 + $0xc] sm:$0xf]
      %v2618 = vld [vmem:[%s2613 + $0x10] sm:$0xf]
      %v2619 = vld [vmem:[%s2613 + $0x14] sm:$0xf]
      %v2620 = vld [vmem:[%s2613 + $0x18] sm:$0xf]
      %v2621 = vld [vmem:[%s2613 + $0x1c] sm:$0xf]
      %v2622 = vld [vmem:[%s2613 + $0x20] sm:$0xf]
      %v2623 = vld [vmem:[%s2613 + $0x24] sm:$0xf]
      %v2624 = vld [vmem:[%s2613 + $0x28] sm:$0xf]
      %v2625 = vld [vmem:[%s2613 + $0x2c] sm:$0xf]
      %v2626 = vld [vmem:[%s2613 + $0x30] sm:$0xf]
      %v2627 = vld [vmem:[%s2613 + $0x34] sm:$0xf]
      %v2628 = vld [vmem:[%s2613 + $0x38] sm:$0xf]
      %v2629 = vld [vmem:[%s2613 + $0x3c] sm:$0xf]
      %v2646 = vunpack.c.l.b16 %v2614
      %v2647 = vunpack.c.l.b16 %v2615
      %v2648 = vunpack.c.l.b16 %v2616
      %v2649 = vunpack.c.l.b16 %v2617
      %v2650 = vunpack.c.l.b16 %v2618
      %v2651 = vunpack.c.l.b16 %v2619
      %v2652 = vunpack.c.l.b16 %v2620
      %v2653 = vunpack.c.l.b16 %v2621
      %v2654 = vunpack.c.l.b16 %v2622
      %v2655 = vunpack.c.l.b16 %v2623
      %v2656 = vunpack.c.l.b16 %v2624
      %v2657 = vunpack.c.l.b16 %v2625
      %v2658 = vunpack.c.l.b16 %v2626
      %v2659 = vunpack.c.l.b16 %v2627
      %v2660 = vunpack.c.l.b16 %v2628
      %v2661 = vunpack.c.l.b16 %v2629
      %v2662 = vpack.c.b16 %v2647, %v2646
      %v2663 = vpack.c.b16 %v2649, %v2648
      %v2664 = vpack.c.b16 %v2651, %v2650
      %v2665 = vpack.c.b16 %v2653, %v2652
      %v2666 = vpack.c.b16 %v2655, %v2654
      %v2667 = vpack.c.b16 %v2657, %v2656
      %v2668 = vpack.c.b16 %v2659, %v2658
      %v2669 = vpack.c.b16 %v2661, %v2660
      %v2671 = vsel %vm411, %v2662, 0
      %v2674 = vsel %vm411, %v2663, 0
      %v2677 = vsel %vm411, %v2664, 0
      %v2680 = vsel %vm411, %v2665, 0
      %v2683 = vsel %vm411, %v2666, 0
      %v2686 = vsel %vm411, %v2667, 0
      %v2689 = vsel %vm411, %v2668, 0
      %v2692 = vsel %vm411, %v2669, 0
      %2694 = vmatprep.subr.bf16.mxu0 0
      %2695 = vmatpush1.bf16.msra.mxu0 0
      %2696 = vmatprep.subr.bf16.mxu0 0
      %2697 = vmatpush1.bf16.msra.mxu0 0
      %2698 = vmatprep.subr.bf16.mxu0 0
      %2699 = vmatpush1.bf16.msra.mxu0 0
      %2700 = vmatprep.subr.bf16.mxu0 0
      %2701 = vmatpush1.bf16.msra.mxu0 0
      %2702 = vmatprep.subr.bf16.mxu0 0
      %2703 = vmatpush1.bf16.msra.mxu0 0
      %2704 = vmatprep.subr.bf16.mxu0 0
      %2705 = vmatpush1.bf16.msra.mxu0 0
      %2706 = vmatprep.subr.bf16.mxu0 0
      %2707 = vmatpush1.bf16.msra.mxu0 0
      %2708 = vmatprep.subr.bf16.mxu0 0
      %2709 = vmatpush1.bf16.msra.mxu0 %v438
      %2710 = vmatprep.subr.bf16.mxu0 0
      %2711 = vmatpush2.bf16.msra.mxu0 0
      %2712 = vmatprep.subr.bf16.mxu0 0
      %2713 = vmatpush2.bf16.msra.mxu0 0
      %2714 = vmatprep.subr.bf16.mxu0 0
      %2715 = vmatpush2.bf16.msra.mxu0 0
      %2716 = vmatprep.subr.bf16.mxu0 0
      %2717 = vmatpush2.bf16.msra.mxu0 0
      %2718 = vmatprep.subr.bf16.mxu0 0
      %2719 = vmatpush2.bf16.msra.mxu0 0
      %2720 = vmatprep.subr.bf16.mxu0 0
      %2721 = vmatpush2.bf16.msra.mxu0 0
      %2722 = vmatprep.subr.bf16.mxu0 0
      %2723 = vmatpush2.bf16.msra.mxu0 0
      %2724 = vmatprep.subr.bf16.mxu0 0
      %2725 = vmatpush2.bf16.msra.mxu0 0
      %2726 = vmatprep.mubr.bf16.mxu0 0
      %2727 = vmatmul.mubr.bf16.gmra.mxu0 %v2671
      %v2728 = vpop.f32.mrf.mxu0
      %v2729 = vadd.f32 0.0, %v2728
      %v2730 = vpop.f32.mrf.mxu0
      %v2731 = vpop.f32.mrf.mxu0
      %v2732 = vadd.f32 0.0, %v2731
      %v2733 = vpop.f32.mrf.mxu0
      %2734 = vmatprep.mubr.bf16.mxu0 0
      %2735 = vmatmul.mubr.bf16.gmra.mxu0 %v2674
      %v2736 = vpop.f32.mrf.mxu0
      %v2737 = vadd.f32 0.0, %v2736
      %v2738 = vpop.f32.mrf.mxu0
      %v2739 = vpop.f32.mrf.mxu0
      %v2740 = vadd.f32 0.0, %v2739
      %v2741 = vpop.f32.mrf.mxu0
      %2742 = vmatprep.mubr.bf16.mxu0 0
      %2743 = vmatmul.mubr.bf16.gmra.mxu0 %v2677
      %v2744 = vpop.f32.mrf.mxu0
      %v2745 = vadd.f32 0.0, %v2744
      %v2746 = vpop.f32.mrf.mxu0
      %v2747 = vpop.f32.mrf.mxu0
      %v2748 = vadd.f32 0.0, %v2747
      %v2749 = vpop.f32.mrf.mxu0
      %2750 = vmatprep.mubr.bf16.mxu0 0
      %2751 = vmatmul.mubr.bf16.gmra.mxu0 %v2680
      %v2752 = vpop.f32.mrf.mxu0
      %v2753 = vadd.f32 0.0, %v2752
      %v2754 = vpop.f32.mrf.mxu0
      %v2755 = vpop.f32.mrf.mxu0
      %v2756 = vadd.f32 0.0, %v2755
      %v2757 = vpop.f32.mrf.mxu0
      %2758 = vmatprep.mubr.bf16.mxu0 0
      %2759 = vmatmul.mubr.bf16.gmra.mxu0 %v2683
      %v2760 = vpop.f32.mrf.mxu0
      %v2761 = vadd.f32 0.0, %v2760
      %v2762 = vpop.f32.mrf.mxu0
      %v2763 = vpop.f32.mrf.mxu0
      %v2764 = vadd.f32 0.0, %v2763
      %v2765 = vpop.f32.mrf.mxu0
      %2766 = vmatprep.mubr.bf16.mxu0 0
      %2767 = vmatmul.mubr.bf16.gmra.mxu0 %v2686
      %v2768 = vpop.f32.mrf.mxu0
      %v2769 = vadd.f32 0.0, %v2768
      %v2770 = vpop.f32.mrf.mxu0
      %v2771 = vpop.f32.mrf.mxu0
      %v2772 = vadd.f32 0.0, %v2771
      %v2773 = vpop.f32.mrf.mxu0
      %2774 = vmatprep.mubr.bf16.mxu0 0
      %2775 = vmatmul.mubr.bf16.gmra.mxu0 %v2689
      %v2776 = vpop.f32.mrf.mxu0
      %v2777 = vadd.f32 0.0, %v2776
      %v2778 = vpop.f32.mrf.mxu0
      %v2779 = vpop.f32.mrf.mxu0
      %v2780 = vadd.f32 0.0, %v2779
      %v2781 = vpop.f32.mrf.mxu0
      %2782 = vmatprep.mubr.bf16.mxu0 0
      %2783 = vmatmul.mubr.bf16.gmra.mxu0 %v2692
      %v2784 = vpop.f32.mrf.mxu0
      %v2785 = vadd.f32 0.0, %v2784
      %v2786 = vpop.f32.mrf.mxu0
      %v2787 = vpop.f32.mrf.mxu0
      %v2788 = vadd.f32 0.0, %v2787
      %v2789 = vpop.f32.mrf.mxu0
      %2790 = vdwg.mxu0
      %v2791 = vadd.f32 %v2729, %v541
      %v2792 = vadd.f32 %v2732, %v541
      %v2793 = vadd.f32 %v2737, %v541
      %v2794 = vadd.f32 %v2740, %v541
      %v2795 = vadd.f32 %v2745, %v541
      %v2796 = vadd.f32 %v2748, %v541
      %v2797 = vadd.f32 %v2753, %v541
      %v2798 = vadd.f32 %v2756, %v541
      %v2799 = vadd.f32 %v2761, %v541
      %v2800 = vadd.f32 %v2764, %v541
      %v2801 = vadd.f32 %v2769, %v541
      %v2802 = vadd.f32 %v2772, %v541
      %v2803 = vadd.f32 %v2777, %v541
      %v2804 = vadd.f32 %v2780, %v541
      %v2805 = vadd.f32 %v2785, %v541
      %v2806 = vadd.f32 %v2788, %v541
      %s2807 = scalar_lea.vmem %s320, 384
      %v2808 = vld [vmem:[%s2807] sm:$0xf]
      %v2809 = vld [vmem:[%s2807 + $0x4] sm:$0xf]
      %v2810 = vld [vmem:[%s2807 + $0x8] sm:$0xf]
      %v2811 = vld [vmem:[%s2807 + $0xc] sm:$0xf]
      %v2812 = vld [vmem:[%s2807 + $0x10] sm:$0xf]
      %v2813 = vld [vmem:[%s2807 + $0x14] sm:$0xf]
      %v2814 = vld [vmem:[%s2807 + $0x18] sm:$0xf]
      %v2815 = vld [vmem:[%s2807 + $0x1c] sm:$0xf]
      %v2816 = vld [vmem:[%s2807 + $0x20] sm:$0xf]
      %v2817 = vld [vmem:[%s2807 + $0x24] sm:$0xf]
      %v2818 = vld [vmem:[%s2807 + $0x28] sm:$0xf]
      %v2819 = vld [vmem:[%s2807 + $0x2c] sm:$0xf]
      %v2820 = vld [vmem:[%s2807 + $0x30] sm:$0xf]
      %v2821 = vld [vmem:[%s2807 + $0x34] sm:$0xf]
      %v2822 = vld [vmem:[%s2807 + $0x38] sm:$0xf]
      %v2823 = vld [vmem:[%s2807 + $0x3c] sm:$0xf]
      %v2824 = vpack.c.bf16 %v2732, %v2729
      %v2825 = vpack.c.bf16 %v2740, %v2737
      %v2826 = vpack.c.bf16 %v2748, %v2745
      %v2827 = vpack.c.bf16 %v2756, %v2753
      %v2828 = vpack.c.bf16 %v2764, %v2761
      %v2829 = vpack.c.bf16 %v2772, %v2769
      %v2830 = vpack.c.bf16 %v2780, %v2777
      %v2831 = vpack.c.bf16 %v2788, %v2785
      %v2848 = vunpack.c.l.b16 %v2808
      %v2849 = vunpack.c.l.b16 %v2809
      %v2850 = vunpack.c.l.b16 %v2810
      %v2851 = vunpack.c.l.b16 %v2811
      %v2852 = vunpack.c.l.b16 %v2812
      %v2853 = vunpack.c.l.b16 %v2813
      %v2854 = vunpack.c.l.b16 %v2814
      %v2855 = vunpack.c.l.b16 %v2815
      %v2856 = vunpack.c.l.b16 %v2816
      %v2857 = vunpack.c.l.b16 %v2817
      %v2858 = vunpack.c.l.b16 %v2818
      %v2859 = vunpack.c.l.b16 %v2819
      %v2860 = vunpack.c.l.b16 %v2820
      %v2861 = vunpack.c.l.b16 %v2821
      %v2862 = vunpack.c.l.b16 %v2822
      %v2863 = vunpack.c.l.b16 %v2823
      %v2864 = vpack.c.b16 %v2849, %v2848
      %v2865 = vpack.c.b16 %v2851, %v2850
      %v2866 = vpack.c.b16 %v2853, %v2852
      %v2867 = vpack.c.b16 %v2855, %v2854
      %v2868 = vpack.c.b16 %v2857, %v2856
      %v2869 = vpack.c.b16 %v2859, %v2858
      %v2870 = vpack.c.b16 %v2861, %v2860
      %v2871 = vpack.c.b16 %v2863, %v2862
      %2888 = vrot.lane.b32.xlu0 %v2824, 96
      %v2889 = vpop.permute.xlu0 %2888
      %2890 = vrot.lane.b32.xlu0 %v2825, 96
      %v2891 = vpop.permute.xlu0 %2890
      %2892 = vrot.lane.b32.xlu0 %v2826, 96
      %v2893 = vpop.permute.xlu0 %2892
      %2894 = vrot.lane.b32.xlu0 %v2827, 96
      %v2895 = vpop.permute.xlu0 %2894
      %2896 = vrot.lane.b32.xlu0 %v2828, 96
      %v2897 = vpop.permute.xlu0 %2896
      %2898 = vrot.lane.b32.xlu0 %v2829, 96
      %v2899 = vpop.permute.xlu0 %2898
      %2900 = vrot.lane.b32.xlu0 %v2830, 96
      %v2901 = vpop.permute.xlu0 %2900
      %2902 = vrot.lane.b32.xlu0 %v2831, 96
      %v2903 = vpop.permute.xlu0 %2902
      %2912 = vmatprep.subr.bf16.mxu0 0
      %2913 = vmatpush1.bf16.msra.mxu0 %v2903
      %2914 = vmatprep.subr.bf16.mxu0 0
      %2915 = vmatpush1.bf16.msra.mxu0 %v2901
      %2916 = vmatprep.subr.bf16.mxu0 0
      %2917 = vmatpush1.bf16.msra.mxu0 %v2899
      %2918 = vmatprep.subr.bf16.mxu0 0
      %2919 = vmatpush1.bf16.msra.mxu0 %v2897
      %2920 = vmatprep.subr.bf16.mxu0 0
      %2921 = vmatpush1.bf16.msra.mxu0 %v2895
      %2922 = vmatprep.subr.bf16.mxu0 0
      %2923 = vmatpush1.bf16.msra.mxu0 %v2893
      %2924 = vmatprep.subr.bf16.mxu0 0
      %2925 = vmatpush1.bf16.msra.mxu0 %v2891
      %2926 = vmatprep.subr.bf16.mxu0 0
      %2927 = vmatpush1.bf16.msra.mxu0 %v2889
      %2928 = vmatprep.subr.bf16.mxu0 0
      %2929 = vmatpush2.bf16.msra.mxu0 0
      %2930 = vmatprep.subr.bf16.mxu0 0
      %2931 = vmatpush2.bf16.msra.mxu0 0
      %2932 = vmatprep.subr.bf16.mxu0 0
      %2933 = vmatpush2.bf16.msra.mxu0 0
      %2934 = vmatprep.subr.bf16.mxu0 0
      %2935 = vmatpush2.bf16.msra.mxu0 0
      %2936 = vmatprep.subr.bf16.mxu0 0
      %2937 = vmatpush2.bf16.msra.mxu0 0
      %2938 = vmatprep.subr.bf16.mxu0 0
      %2939 = vmatpush2.bf16.msra.mxu0 0
      %2940 = vmatprep.subr.bf16.mxu0 0
      %2941 = vmatpush2.bf16.msra.mxu0 0
      %2942 = vmatprep.subr.bf16.mxu0 0
      %2943 = vmatpush2.bf16.msra.mxu0 0
      %2944 = vmatprep.mubr.bf16.mxu0 0
      %2945 = vmatmul.mubr.bf16.gmra.mxu0 %v2864
      %v2946 = vpop.f32.mrf.mxu0
      %v2947 = vadd.f32 0.0, %v2946
      %v2948 = vpop.f32.mrf.mxu0
      %v2949 = vpop.f32.mrf.mxu0
      %v2950 = vadd.f32 0.0, %v2949
      %v2951 = vpop.f32.mrf.mxu0
      %2952 = vmatprep.mubr.bf16.mxu0 0
      %2953 = vmatmul.mubr.bf16.gmra.mxu0 %v2865
      %v2954 = vpop.f32.mrf.mxu0
      %v2955 = vadd.f32 0.0, %v2954
      %v2956 = vpop.f32.mrf.mxu0
      %v2957 = vpop.f32.mrf.mxu0
      %v2958 = vadd.f32 0.0, %v2957
      %v2959 = vpop.f32.mrf.mxu0
      %2960 = vmatprep.mubr.bf16.mxu0 0
      %2961 = vmatmul.mubr.bf16.gmra.mxu0 %v2866
      %v2962 = vpop.f32.mrf.mxu0
      %v2963 = vadd.f32 0.0, %v2962
      %v2964 = vpop.f32.mrf.mxu0
      %v2965 = vpop.f32.mrf.mxu0
      %v2966 = vadd.f32 0.0, %v2965
      %v2967 = vpop.f32.mrf.mxu0
      %2968 = vmatprep.mubr.bf16.mxu0 0
      %2969 = vmatmul.mubr.bf16.gmra.mxu0 %v2867
      %v2970 = vpop.f32.mrf.mxu0
      %v2971 = vadd.f32 0.0, %v2970
      %v2972 = vpop.f32.mrf.mxu0
      %v2973 = vpop.f32.mrf.mxu0
      %v2974 = vadd.f32 0.0, %v2973
      %v2975 = vpop.f32.mrf.mxu0
      %2976 = vmatprep.mubr.bf16.mxu0 0
      %2977 = vmatmul.mubr.bf16.gmra.mxu0 %v2868
      %v2978 = vpop.f32.mrf.mxu0
      %v2979 = vadd.f32 0.0, %v2978
      %v2980 = vpop.f32.mrf.mxu0
      %v2981 = vpop.f32.mrf.mxu0
      %v2982 = vadd.f32 0.0, %v2981
      %v2983 = vpop.f32.mrf.mxu0
      %2984 = vmatprep.mubr.bf16.mxu0 0
      %2985 = vmatmul.mubr.bf16.gmra.mxu0 %v2869
      %v2986 = vpop.f32.mrf.mxu0
      %v2987 = vadd.f32 0.0, %v2986
      %v2988 = vpop.f32.mrf.mxu0
      %v2989 = vpop.f32.mrf.mxu0
      %v2990 = vadd.f32 0.0, %v2989
      %v2991 = vpop.f32.mrf.mxu0
      %2992 = vmatprep.mubr.bf16.mxu0 0
      %2993 = vmatmul.mubr.bf16.gmra.mxu0 %v2870
      %v2994 = vpop.f32.mrf.mxu0
      %v2995 = vadd.f32 0.0, %v2994
      %v2996 = vpop.f32.mrf.mxu0
      %v2997 = vpop.f32.mrf.mxu0
      %v2998 = vadd.f32 0.0, %v2997
      %v2999 = vpop.f32.mrf.mxu0
      %3000 = vmatprep.mubr.bf16.mxu0 0
      %3001 = vmatmul.mubr.bf16.gmra.mxu0 %v2871
      %v3002 = vpop.f32.mrf.mxu0
      %v3003 = vadd.f32 0.0, %v3002
      %v3004 = vpop.f32.mrf.mxu0
      %v3005 = vpop.f32.mrf.mxu0
      %v3006 = vadd.f32 0.0, %v3005
      %v3007 = vpop.f32.mrf.mxu0
      %3008 = vdwg.mxu0
      %v3009 = vadd.f32 %v2791, %v2947
      %v3010 = vadd.f32 %v2792, %v2950
      %v3011 = vadd.f32 %v2793, %v2955
      %v3012 = vadd.f32 %v2794, %v2958
      %v3013 = vadd.f32 %v2795, %v2963
      %v3014 = vadd.f32 %v2796, %v2966
      %v3015 = vadd.f32 %v2797, %v2971
      %v3016 = vadd.f32 %v2798, %v2974
      %v3017 = vadd.f32 %v2799, %v2979
      %v3018 = vadd.f32 %v2800, %v2982
      %v3019 = vadd.f32 %v2801, %v2987
      %v3020 = vadd.f32 %v2802, %v2990
      %v3021 = vadd.f32 %v2803, %v2995
      %v3022 = vadd.f32 %v2804, %v2998
      %v3023 = vadd.f32 %v2805, %v3003
      %v3024 = vadd.f32 %v2806, %v3006
      %s3025 = scalar_lea.vmem %s320, 448
      %v3026 = vld [vmem:[%s3025] sm:$0xf]
      %v3027 = vld [vmem:[%s3025 + $0x4] sm:$0xf]
      %v3028 = vld [vmem:[%s3025 + $0x8] sm:$0xf]
      %v3029 = vld [vmem:[%s3025 + $0xc] sm:$0xf]
      %v3030 = vld [vmem:[%s3025 + $0x10] sm:$0xf]
      %v3031 = vld [vmem:[%s3025 + $0x14] sm:$0xf]
      %v3032 = vld [vmem:[%s3025 + $0x18] sm:$0xf]
      %v3033 = vld [vmem:[%s3025 + $0x1c] sm:$0xf]
      %v3034 = vld [vmem:[%s3025 + $0x20] sm:$0xf]
      %v3035 = vld [vmem:[%s3025 + $0x24] sm:$0xf]
      %v3036 = vld [vmem:[%s3025 + $0x28] sm:$0xf]
      %v3037 = vld [vmem:[%s3025 + $0x2c] sm:$0xf]
      %v3038 = vld [vmem:[%s3025 + $0x30] sm:$0xf]
      %v3039 = vld [vmem:[%s3025 + $0x34] sm:$0xf]
      %v3040 = vld [vmem:[%s3025 + $0x38] sm:$0xf]
      %v3041 = vld [vmem:[%s3025 + $0x3c] sm:$0xf]
      %v3058 = vunpack.c.l.b16 %v3026
      %v3059 = vunpack.c.l.b16 %v3027
      %v3060 = vunpack.c.l.b16 %v3028
      %v3061 = vunpack.c.l.b16 %v3029
      %v3062 = vunpack.c.l.b16 %v3030
      %v3063 = vunpack.c.l.b16 %v3031
      %v3064 = vunpack.c.l.b16 %v3032
      %v3065 = vunpack.c.l.b16 %v3033
      %v3066 = vunpack.c.l.b16 %v3034
      %v3067 = vunpack.c.l.b16 %v3035
      %v3068 = vunpack.c.l.b16 %v3036
      %v3069 = vunpack.c.l.b16 %v3037
      %v3070 = vunpack.c.l.b16 %v3038
      %v3071 = vunpack.c.l.b16 %v3039
      %v3072 = vunpack.c.l.b16 %v3040
      %v3073 = vunpack.c.l.b16 %v3041
      %v3074 = vpack.c.b16 %v3059, %v3058
      %v3075 = vpack.c.b16 %v3061, %v3060
      %v3076 = vpack.c.b16 %v3063, %v3062
      %v3077 = vpack.c.b16 %v3065, %v3064
      %v3078 = vpack.c.b16 %v3067, %v3066
      %v3079 = vpack.c.b16 %v3069, %v3068
      %v3080 = vpack.c.b16 %v3071, %v3070
      %v3081 = vpack.c.b16 %v3073, %v3072
      %3090 = vrot.lane.b32.xlu0 %v2824, 64
      %v3091 = vpop.permute.xlu0 %3090
      %3092 = vrot.lane.b32.xlu0 %v2825, 64
      %v3093 = vpop.permute.xlu0 %3092
      %3094 = vrot.lane.b32.xlu0 %v2826, 64
      %v3095 = vpop.permute.xlu0 %3094
      %3096 = vrot.lane.b32.xlu0 %v2827, 64
      %v3097 = vpop.permute.xlu0 %3096
      %3098 = vrot.lane.b32.xlu0 %v2828, 64
      %v3099 = vpop.permute.xlu0 %3098
      %3100 = vrot.lane.b32.xlu0 %v2829, 64
      %v3101 = vpop.permute.xlu0 %3100
      %3102 = vrot.lane.b32.xlu0 %v2830, 64
      %v3103 = vpop.permute.xlu0 %3102
      %3104 = vrot.lane.b32.xlu0 %v2831, 64
      %v3105 = vpop.permute.xlu0 %3104
      %3114 = vmatprep.subr.bf16.mxu0 0
      %3115 = vmatpush1.bf16.msra.mxu0 %v3105
      %3116 = vmatprep.subr.bf16.mxu0 0
      %3117 = vmatpush1.bf16.msra.mxu0 %v3103
      %3118 = vmatprep.subr.bf16.mxu0 0
      %3119 = vmatpush1.bf16.msra.mxu0 %v3101
      %3120 = vmatprep.subr.bf16.mxu0 0
      %3121 = vmatpush1.bf16.msra.mxu0 %v3099
      %3122 = vmatprep.subr.bf16.mxu0 0
      %3123 = vmatpush1.bf16.msra.mxu0 %v3097
      %3124 = vmatprep.subr.bf16.mxu0 0
      %3125 = vmatpush1.bf16.msra.mxu0 %v3095
      %3126 = vmatprep.subr.bf16.mxu0 0
      %3127 = vmatpush1.bf16.msra.mxu0 %v3093
      %3128 = vmatprep.subr.bf16.mxu0 0
      %3129 = vmatpush1.bf16.msra.mxu0 %v3091
      %3130 = vmatprep.subr.bf16.mxu0 0
      %3131 = vmatpush2.bf16.msra.mxu0 0
      %3132 = vmatprep.subr.bf16.mxu0 0
      %3133 = vmatpush2.bf16.msra.mxu0 0
      %3134 = vmatprep.subr.bf16.mxu0 0
      %3135 = vmatpush2.bf16.msra.mxu0 0
      %3136 = vmatprep.subr.bf16.mxu0 0
      %3137 = vmatpush2.bf16.msra.mxu0 0
      %3138 = vmatprep.subr.bf16.mxu0 0
      %3139 = vmatpush2.bf16.msra.mxu0 0
      %3140 = vmatprep.subr.bf16.mxu0 0
      %3141 = vmatpush2.bf16.msra.mxu0 0
      %3142 = vmatprep.subr.bf16.mxu0 0
      %3143 = vmatpush2.bf16.msra.mxu0 0
      %3144 = vmatprep.subr.bf16.mxu0 0
      %3145 = vmatpush2.bf16.msra.mxu0 0
      %3146 = vmatprep.mubr.bf16.mxu0 0
      %3147 = vmatmul.mubr.bf16.gmra.mxu0 %v3074
      %v3148 = vpop.f32.mrf.mxu0
      %v3149 = vadd.f32 0.0, %v3148
      %v3150 = vpop.f32.mrf.mxu0
      %v3151 = vpop.f32.mrf.mxu0
      %v3152 = vadd.f32 0.0, %v3151
      %v3153 = vpop.f32.mrf.mxu0
      %3154 = vmatprep.mubr.bf16.mxu0 0
      %3155 = vmatmul.mubr.bf16.gmra.mxu0 %v3075
      %v3156 = vpop.f32.mrf.mxu0
      %v3157 = vadd.f32 0.0, %v3156
      %v3158 = vpop.f32.mrf.mxu0
      %v3159 = vpop.f32.mrf.mxu0
      %v3160 = vadd.f32 0.0, %v3159
      %v3161 = vpop.f32.mrf.mxu0
      %3162 = vmatprep.mubr.bf16.mxu0 0
      %3163 = vmatmul.mubr.bf16.gmra.mxu0 %v3076
      %v3164 = vpop.f32.mrf.mxu0
      %v3165 = vadd.f32 0.0, %v3164
      %v3166 = vpop.f32.mrf.mxu0
      %v3167 = vpop.f32.mrf.mxu0
      %v3168 = vadd.f32 0.0, %v3167
      %v3169 = vpop.f32.mrf.mxu0
      %3170 = vmatprep.mubr.bf16.mxu0 0
      %3171 = vmatmul.mubr.bf16.gmra.mxu0 %v3077
      %v3172 = vpop.f32.mrf.mxu0
      %v3173 = vadd.f32 0.0, %v3172
      %v3174 = vpop.f32.mrf.mxu0
      %v3175 = vpop.f32.mrf.mxu0
      %v3176 = vadd.f32 0.0, %v3175
      %v3177 = vpop.f32.mrf.mxu0
      %3178 = vmatprep.mubr.bf16.mxu0 0
      %3179 = vmatmul.mubr.bf16.gmra.mxu0 %v3078
      %v3180 = vpop.f32.mrf.mxu0
      %v3181 = vadd.f32 0.0, %v3180
      %v3182 = vpop.f32.mrf.mxu0
      %v3183 = vpop.f32.mrf.mxu0
      %v3184 = vadd.f32 0.0, %v3183
      %v3185 = vpop.f32.mrf.mxu0
      %3186 = vmatprep.mubr.bf16.mxu0 0
      %3187 = vmatmul.mubr.bf16.gmra.mxu0 %v3079
      %v3188 = vpop.f32.mrf.mxu0
      %v3189 = vadd.f32 0.0, %v3188
      %v3190 = vpop.f32.mrf.mxu0
      %v3191 = vpop.f32.mrf.mxu0
      %v3192 = vadd.f32 0.0, %v3191
      %v3193 = vpop.f32.mrf.mxu0
      %3194 = vmatprep.mubr.bf16.mxu0 0
      %3195 = vmatmul.mubr.bf16.gmra.mxu0 %v3080
      %v3196 = vpop.f32.mrf.mxu0
      %v3197 = vadd.f32 0.0, %v3196
      %v3198 = vpop.f32.mrf.mxu0
      %v3199 = vpop.f32.mrf.mxu0
      %v3200 = vadd.f32 0.0, %v3199
      %v3201 = vpop.f32.mrf.mxu0
      %3202 = vmatprep.mubr.bf16.mxu0 0
      %3203 = vmatmul.mubr.bf16.gmra.mxu0 %v3081
      %v3204 = vpop.f32.mrf.mxu0
      %v3205 = vadd.f32 0.0, %v3204
      %v3206 = vpop.f32.mrf.mxu0
      %v3207 = vpop.f32.mrf.mxu0
      %v3208 = vadd.f32 0.0, %v3207
      %v3209 = vpop.f32.mrf.mxu0
      %3210 = vdwg.mxu0
      %v3211 = vadd.f32 %v3009, %v3149
      %v3212 = vadd.f32 %v3010, %v3152
      %v3213 = vadd.f32 %v3011, %v3157
      %v3214 = vadd.f32 %v3012, %v3160
      %v3215 = vadd.f32 %v3013, %v3165
      %v3216 = vadd.f32 %v3014, %v3168
      %v3217 = vadd.f32 %v3015, %v3173
      %v3218 = vadd.f32 %v3016, %v3176
      %v3219 = vadd.f32 %v3017, %v3181
      %v3220 = vadd.f32 %v3018, %v3184
      %v3221 = vadd.f32 %v3019, %v3189
      %v3222 = vadd.f32 %v3020, %v3192
      %v3223 = vadd.f32 %v3021, %v3197
      %v3224 = vadd.f32 %v3022, %v3200
      %v3225 = vadd.f32 %v3023, %v3205
      %v3226 = vadd.f32 %v3024, %v3208
      %s3227 = scalar_lea.vmem %s320, 512
      %v3228 = vld [vmem:[%s3227] sm:$0xf]
      %v3229 = vld [vmem:[%s3227 + $0x4] sm:$0xf]
      %v3230 = vld [vmem:[%s3227 + $0x8] sm:$0xf]
      %v3231 = vld [vmem:[%s3227 + $0xc] sm:$0xf]
      %v3232 = vld [vmem:[%s3227 + $0x10] sm:$0xf]
      %v3233 = vld [vmem:[%s3227 + $0x14] sm:$0xf]
      %v3234 = vld [vmem:[%s3227 + $0x18] sm:$0xf]
      %v3235 = vld [vmem:[%s3227 + $0x1c] sm:$0xf]
      %v3236 = vld [vmem:[%s3227 + $0x20] sm:$0xf]
      %v3237 = vld [vmem:[%s3227 + $0x24] sm:$0xf]
      %v3238 = vld [vmem:[%s3227 + $0x28] sm:$0xf]
      %v3239 = vld [vmem:[%s3227 + $0x2c] sm:$0xf]
      %v3240 = vld [vmem:[%s3227 + $0x30] sm:$0xf]
      %v3241 = vld [vmem:[%s3227 + $0x34] sm:$0xf]
      %v3242 = vld [vmem:[%s3227 + $0x38] sm:$0xf]
      %v3243 = vld [vmem:[%s3227 + $0x3c] sm:$0xf]
      %v3260 = vunpack.c.l.b16 %v3228
      %v3261 = vunpack.c.l.b16 %v3229
      %v3262 = vunpack.c.l.b16 %v3230
      %v3263 = vunpack.c.l.b16 %v3231
      %v3264 = vunpack.c.l.b16 %v3232
      %v3265 = vunpack.c.l.b16 %v3233
      %v3266 = vunpack.c.l.b16 %v3234
      %v3267 = vunpack.c.l.b16 %v3235
      %v3268 = vunpack.c.l.b16 %v3236
      %v3269 = vunpack.c.l.b16 %v3237
      %v3270 = vunpack.c.l.b16 %v3238
      %v3271 = vunpack.c.l.b16 %v3239
      %v3272 = vunpack.c.l.b16 %v3240
      %v3273 = vunpack.c.l.b16 %v3241
      %v3274 = vunpack.c.l.b16 %v3242
      %v3275 = vunpack.c.l.b16 %v3243
      %v3276 = vpack.c.b16 %v3261, %v3260
      %v3277 = vpack.c.b16 %v3263, %v3262
      %v3278 = vpack.c.b16 %v3265, %v3264
      %v3279 = vpack.c.b16 %v3267, %v3266
      %v3280 = vpack.c.b16 %v3269, %v3268
      %v3281 = vpack.c.b16 %v3271, %v3270
      %v3282 = vpack.c.b16 %v3273, %v3272
      %v3283 = vpack.c.b16 %v3275, %v3274
      %3292 = vrot.lane.b32.xlu0 %v2824, 32
      %v3293 = vpop.permute.xlu0 %3292
      %3294 = vrot.lane.b32.xlu0 %v2825, 32
      %v3295 = vpop.permute.xlu0 %3294
      %3296 = vrot.lane.b32.xlu0 %v2826, 32
      %v3297 = vpop.permute.xlu0 %3296
      %3298 = vrot.lane.b32.xlu0 %v2827, 32
      %v3299 = vpop.permute.xlu0 %3298
      %3300 = vrot.lane.b32.xlu0 %v2828, 32
      %v3301 = vpop.permute.xlu0 %3300
      %3302 = vrot.lane.b32.xlu0 %v2829, 32
      %v3303 = vpop.permute.xlu0 %3302
      %3304 = vrot.lane.b32.xlu0 %v2830, 32
      %v3305 = vpop.permute.xlu0 %3304
      %3306 = vrot.lane.b32.xlu0 %v2831, 32
      %v3307 = vpop.permute.xlu0 %3306
      %3316 = vmatprep.subr.bf16.mxu0 0
      %3317 = vmatpush1.bf16.msra.mxu0 %v3307
      %3318 = vmatprep.subr.bf16.mxu0 0
      %3319 = vmatpush1.bf16.msra.mxu0 %v3305
      %3320 = vmatprep.subr.bf16.mxu0 0
      %3321 = vmatpush1.bf16.msra.mxu0 %v3303
      %3322 = vmatprep.subr.bf16.mxu0 0
      %3323 = vmatpush1.bf16.msra.mxu0 %v3301
      %3324 = vmatprep.subr.bf16.mxu0 0
      %3325 = vmatpush1.bf16.msra.mxu0 %v3299
      %3326 = vmatprep.subr.bf16.mxu0 0
      %3327 = vmatpush1.bf16.msra.mxu0 %v3297
      %3328 = vmatprep.subr.bf16.mxu0 0
      %3329 = vmatpush1.bf16.msra.mxu0 %v3295
      %3330 = vmatprep.subr.bf16.mxu0 0
      %3331 = vmatpush1.bf16.msra.mxu0 %v3293
      %3332 = vmatprep.subr.bf16.mxu0 0
      %3333 = vmatpush2.bf16.msra.mxu0 0
      %3334 = vmatprep.subr.bf16.mxu0 0
      %3335 = vmatpush2.bf16.msra.mxu0 0
      %3336 = vmatprep.subr.bf16.mxu0 0
      %3337 = vmatpush2.bf16.msra.mxu0 0
      %3338 = vmatprep.subr.bf16.mxu0 0
      %3339 = vmatpush2.bf16.msra.mxu0 0
      %3340 = vmatprep.subr.bf16.mxu0 0
      %3341 = vmatpush2.bf16.msra.mxu0 0
      %3342 = vmatprep.subr.bf16.mxu0 0
      %3343 = vmatpush2.bf16.msra.mxu0 0
      %3344 = vmatprep.subr.bf16.mxu0 0
      %3345 = vmatpush2.bf16.msra.mxu0 0
      %3346 = vmatprep.subr.bf16.mxu0 0
      %3347 = vmatpush2.bf16.msra.mxu0 0
      %3348 = vmatprep.mubr.bf16.mxu0 0
      %3349 = vmatmul.mubr.bf16.gmra.mxu0 %v3276
      %v3350 = vpop.f32.mrf.mxu0
      %v3351 = vadd.f32 0.0, %v3350
      %v3352 = vpop.f32.mrf.mxu0
      %v3353 = vpop.f32.mrf.mxu0
      %v3354 = vadd.f32 0.0, %v3353
      %v3355 = vpop.f32.mrf.mxu0
      %3356 = vmatprep.mubr.bf16.mxu0 0
      %3357 = vmatmul.mubr.bf16.gmra.mxu0 %v3277
      %v3358 = vpop.f32.mrf.mxu0
      %v3359 = vadd.f32 0.0, %v3358
      %v3360 = vpop.f32.mrf.mxu0
      %v3361 = vpop.f32.mrf.mxu0
      %v3362 = vadd.f32 0.0, %v3361
      %v3363 = vpop.f32.mrf.mxu0
      %3364 = vmatprep.mubr.bf16.mxu0 0
      %3365 = vmatmul.mubr.bf16.gmra.mxu0 %v3278
      %v3366 = vpop.f32.mrf.mxu0
      %v3367 = vadd.f32 0.0, %v3366
      %v3368 = vpop.f32.mrf.mxu0
      %v3369 = vpop.f32.mrf.mxu0
      %v3370 = vadd.f32 0.0, %v3369
      %v3371 = vpop.f32.mrf.mxu0
      %3372 = vmatprep.mubr.bf16.mxu0 0
      %3373 = vmatmul.mubr.bf16.gmra.mxu0 %v3279
      %v3374 = vpop.f32.mrf.mxu0
      %v3375 = vadd.f32 0.0, %v3374
      %v3376 = vpop.f32.mrf.mxu0
      %v3377 = vpop.f32.mrf.mxu0
      %v3378 = vadd.f32 0.0, %v3377
      %v3379 = vpop.f32.mrf.mxu0
      %3380 = vmatprep.mubr.bf16.mxu0 0
      %3381 = vmatmul.mubr.bf16.gmra.mxu0 %v3280
      %v3382 = vpop.f32.mrf.mxu0
      %v3383 = vadd.f32 0.0, %v3382
      %v3384 = vpop.f32.mrf.mxu0
      %v3385 = vpop.f32.mrf.mxu0
      %v3386 = vadd.f32 0.0, %v3385
      %v3387 = vpop.f32.mrf.mxu0
      %3388 = vmatprep.mubr.bf16.mxu0 0
      %3389 = vmatmul.mubr.bf16.gmra.mxu0 %v3281
      %v3390 = vpop.f32.mrf.mxu0
      %v3391 = vadd.f32 0.0, %v3390
      %v3392 = vpop.f32.mrf.mxu0
      %v3393 = vpop.f32.mrf.mxu0
      %v3394 = vadd.f32 0.0, %v3393
      %v3395 = vpop.f32.mrf.mxu0
      %3396 = vmatprep.mubr.bf16.mxu0 0
      %3397 = vmatmul.mubr.bf16.gmra.mxu0 %v3282
      %v3398 = vpop.f32.mrf.mxu0
      %v3399 = vadd.f32 0.0, %v3398
      %v3400 = vpop.f32.mrf.mxu0
      %v3401 = vpop.f32.mrf.mxu0
      %v3402 = vadd.f32 0.0, %v3401
      %v3403 = vpop.f32.mrf.mxu0
      %3404 = vmatprep.mubr.bf16.mxu0 0
      %3405 = vmatmul.mubr.bf16.gmra.mxu0 %v3283
      %v3406 = vpop.f32.mrf.mxu0
      %v3407 = vadd.f32 0.0, %v3406
      %v3408 = vpop.f32.mrf.mxu0
      %v3409 = vpop.f32.mrf.mxu0
      %v3410 = vadd.f32 0.0, %v3409
      %v3411 = vpop.f32.mrf.mxu0
      %3412 = vdwg.mxu0
      %v3413 = vadd.f32 %v3211, %v3351
      %v3414 = vadd.f32 %v3212, %v3354
      %v3415 = vadd.f32 %v3213, %v3359
      %v3416 = vadd.f32 %v3214, %v3362
      %v3417 = vadd.f32 %v3215, %v3367
      %v3418 = vadd.f32 %v3216, %v3370
      %v3419 = vadd.f32 %v3217, %v3375
      %v3420 = vadd.f32 %v3218, %v3378
      %v3421 = vadd.f32 %v3219, %v3383
      %v3422 = vadd.f32 %v3220, %v3386
      %v3423 = vadd.f32 %v3221, %v3391
      %v3424 = vadd.f32 %v3222, %v3394
      %v3425 = vadd.f32 %v3223, %v3399
      %v3426 = vadd.f32 %v3224, %v3402
      %v3427 = vadd.f32 %v3225, %v3407
      %v3428 = vadd.f32 %v3226, %v3410
      %v3429 = vmax.f32 %v3413, 0.0
      %v3430 = vmax.f32 %v3414, 0.0
      %v3431 = vmax.f32 %v3415, 0.0
      %v3432 = vmax.f32 %v3416, 0.0
      %v3433 = vmax.f32 %v3417, 0.0
      %v3434 = vmax.f32 %v3418, 0.0
      %v3435 = vmax.f32 %v3419, 0.0
      %v3436 = vmax.f32 %v3420, 0.0
      %v3437 = vmax.f32 %v3421, 0.0
      %v3438 = vmax.f32 %v3422, 0.0
      %v3439 = vmax.f32 %v3423, 0.0
      %v3440 = vmax.f32 %v3424, 0.0
      %v3441 = vmax.f32 %v3425, 0.0
      %v3442 = vmax.f32 %v3426, 0.0
      %v3443 = vmax.f32 %v3427, 0.0
      %v3444 = vmax.f32 %v3428, 0.0
      %v3445 = vpack.c.bf16 %v3430, %v3429
      %v3446 = vpack.c.bf16 %v3432, %v3431
      %v3447 = vpack.c.bf16 %v3434, %v3433
      %v3448 = vpack.c.bf16 %v3436, %v3435
      %v3449 = vpack.c.bf16 %v3438, %v3437
      %v3450 = vpack.c.bf16 %v3440, %v3439
      %v3451 = vpack.c.bf16 %v3442, %v3441
      %v3452 = vpack.c.bf16 %v3444, %v3443
      %s3453 = scalar_lea.vmem %s327, 32
      %v3454 = vld [vmem:[%s3453] sm:$0xf]
      %v3455 = vld [vmem:[%s3453 + $0x4] sm:$0xf]
      %v3456 = vld [vmem:[%s3453 + $0x8] sm:$0xf]
      %v3457 = vld [vmem:[%s3453 + $0xc] sm:$0xf]
      %v3462 = vunpack.c.l.b16 %v3454
      %v3463 = vunpack.c.l.b16 %v3455
      %v3464 = vunpack.c.l.b16 %v3456
      %v3465 = vunpack.c.l.b16 %v3457
      %v3466 = vpack.c.b16 %v3463, %v3462
      %v3467 = vpack.c.b16 %v3465, %v3464
      %3470 = vmatprep.subr.bf16.mxu0 0
      %3471 = vmatpush1.bf16.msra.mxu0 %v3452
      %3472 = vmatprep.subr.bf16.mxu0 0
      %3473 = vmatpush1.bf16.msra.mxu0 %v3451
      %3474 = vmatprep.subr.bf16.mxu0 0
      %3475 = vmatpush1.bf16.msra.mxu0 %v3450
      %3476 = vmatprep.subr.bf16.mxu0 0
      %3477 = vmatpush1.bf16.msra.mxu0 %v3449
      %3478 = vmatprep.subr.bf16.mxu0 0
      %3479 = vmatpush1.bf16.msra.mxu0 %v3448
      %3480 = vmatprep.subr.bf16.mxu0 0
      %3481 = vmatpush1.bf16.msra.mxu0 %v3447
      %3482 = vmatprep.subr.bf16.mxu0 0
      %3483 = vmatpush1.bf16.msra.mxu0 %v3446
      %3484 = vmatprep.subr.bf16.mxu0 0
      %3485 = vmatpush1.bf16.msra.mxu0 %v3445
      %3486 = vmatprep.subr.bf16.mxu0 0
      %3487 = vmatpush2.bf16.msra.mxu0 0
      %3488 = vmatprep.subr.bf16.mxu0 0
      %3489 = vmatpush2.bf16.msra.mxu0 0
      %3490 = vmatprep.subr.bf16.mxu0 0
      %3491 = vmatpush2.bf16.msra.mxu0 0
      %3492 = vmatprep.subr.bf16.mxu0 0
      %3493 = vmatpush2.bf16.msra.mxu0 0
      %3494 = vmatprep.subr.bf16.mxu0 0
      %3495 = vmatpush2.bf16.msra.mxu0 0
      %3496 = vmatprep.subr.bf16.mxu0 0
      %3497 = vmatpush2.bf16.msra.mxu0 0
      %3498 = vmatprep.subr.bf16.mxu0 0
      %3499 = vmatpush2.bf16.msra.mxu0 0
      %3500 = vmatprep.subr.bf16.mxu0 0
      %3501 = vmatpush2.bf16.msra.mxu0 0
      %3502 = vmatprep.mubr.bf16.mxu0 0
      %3503 = vmatmul.mubr.bf16.gmra.mxu0 %v3466
      %v3504 = vpop.f32.mrf.mxu0
      %v3505 = vadd.f32 0.0, %v3504
      %v3506 = vpop.f32.mrf.mxu0
      %v3507 = vpop.f32.mrf.mxu0
      %v3508 = vadd.f32 0.0, %v3507
      %v3509 = vpop.f32.mrf.mxu0
      %3510 = vmatprep.mubr.bf16.mxu0 0
      %3511 = vmatmul.mubr.bf16.gmra.mxu0 %v3467
      %v3512 = vpop.f32.mrf.mxu0
      %v3513 = vadd.f32 0.0, %v3512
      %v3514 = vpop.f32.mrf.mxu0
      %v3515 = vpop.f32.mrf.mxu0
      %v3516 = vadd.f32 0.0, %v3515
      %v3517 = vpop.f32.mrf.mxu0
      %3518 = vdwg.mxu0
      %v3519 = vpack.c.bf16 %v3505, %v3505
      %v3521 = vsel %vm1288, %v3519, 0
      %3523 = vmatprep.subr.bf16.mxu0 0
      %3524 = vmatpush1.bf16.msra.mxu0 0
      %3525 = vmatprep.subr.bf16.mxu0 0
      %3526 = vmatpush1.bf16.msra.mxu0 0
      %3527 = vmatprep.subr.bf16.mxu0 0
      %3528 = vmatpush1.bf16.msra.mxu0 0
      %3529 = vmatprep.subr.bf16.mxu0 0
      %3530 = vmatpush1.bf16.msra.mxu0 0
      %3531 = vmatprep.subr.bf16.mxu0 0
      %3532 = vmatpush1.bf16.msra.mxu0 0
      %3533 = vmatprep.subr.bf16.mxu0 0
      %3534 = vmatpush1.bf16.msra.mxu0 0
      %3535 = vmatprep.subr.bf16.mxu0 0
      %3536 = vmatpush1.bf16.msra.mxu0 %v1285
      %3537 = vmatprep.subr.bf16.mxu0 0
      %3538 = vmatpush1.bf16.msra.mxu0 %v1284
      %3539 = vmatprep.subr.bf16.mxu0 0
      %3540 = vmatpush2.bf16.msra.mxu0 0
      %3541 = vmatprep.subr.bf16.mxu0 0
      %3542 = vmatpush2.bf16.msra.mxu0 0
      %3543 = vmatprep.subr.bf16.mxu0 0
      %3544 = vmatpush2.bf16.msra.mxu0 0
      %3545 = vmatprep.subr.bf16.mxu0 0
      %3546 = vmatpush2.bf16.msra.mxu0 0
      %3547 = vmatprep.subr.bf16.mxu0 0
      %3548 = vmatpush2.bf16.msra.mxu0 0
      %3549 = vmatprep.subr.bf16.mxu0 0
      %3550 = vmatpush2.bf16.msra.mxu0 0
      %3551 = vmatprep.subr.bf16.mxu0 0
      %3552 = vmatpush2.bf16.msra.mxu0 0
      %3553 = vmatprep.subr.bf16.mxu0 0
      %3554 = vmatpush2.bf16.msra.mxu0 0
      %3555 = vmatprep.mubr.bf16.mxu0 0
      %3556 = vmatmul.mubr.bf16.gmra.mxu0 %v3521
      %v3557 = vpop.f32.mrf.mxu0
      %v3558 = vadd.f32 0.0, %v3557
      %v3559 = vpop.f32.mrf.mxu0
      %v3560 = vpop.f32.mrf.mxu0
      %v3561 = vpop.f32.mrf.mxu0
      %3562 = vdwg.mxu0
      %v3563 = vadd.f32 %v1273, %v3558
      %v3564 = vpack.c.bf16 %v3508, %v3508
      %v3566 = vsel %vm1288, %v3564, 0
      %3568 = vmatprep.subr.bf16.mxu0 0
      %3569 = vmatpush1.bf16.msra.mxu0 0
      %3570 = vmatprep.subr.bf16.mxu0 0
      %3571 = vmatpush1.bf16.msra.mxu0 0
      %3572 = vmatprep.subr.bf16.mxu0 0
      %3573 = vmatpush1.bf16.msra.mxu0 0
      %3574 = vmatprep.subr.bf16.mxu0 0
      %3575 = vmatpush1.bf16.msra.mxu0 0
      %3576 = vmatprep.subr.bf16.mxu0 0
      %3577 = vmatpush1.bf16.msra.mxu0 0
      %3578 = vmatprep.subr.bf16.mxu0 0
      %3579 = vmatpush1.bf16.msra.mxu0 0
      %3580 = vmatprep.subr.bf16.mxu0 0
      %3581 = vmatpush1.bf16.msra.mxu0 %v1343
      %3582 = vmatprep.subr.bf16.mxu0 0
      %3583 = vmatpush1.bf16.msra.mxu0 %v1342
      %3584 = vmatprep.subr.bf16.mxu0 0
      %3585 = vmatpush2.bf16.msra.mxu0 0
      %3586 = vmatprep.subr.bf16.mxu0 0
      %3587 = vmatpush2.bf16.msra.mxu0 0
      %3588 = vmatprep.subr.bf16.mxu0 0
      %3589 = vmatpush2.bf16.msra.mxu0 0
      %3590 = vmatprep.subr.bf16.mxu0 0
      %3591 = vmatpush2.bf16.msra.mxu0 0
      %3592 = vmatprep.subr.bf16.mxu0 0
      %3593 = vmatpush2.bf16.msra.mxu0 0
      %3594 = vmatprep.subr.bf16.mxu0 0
      %3595 = vmatpush2.bf16.msra.mxu0 0
      %3596 = vmatprep.subr.bf16.mxu0 0
      %3597 = vmatpush2.bf16.msra.mxu0 0
      %3598 = vmatprep.subr.bf16.mxu0 0
      %3599 = vmatpush2.bf16.msra.mxu0 0
      %3600 = vmatprep.mubr.bf16.mxu0 0
      %3601 = vmatmul.mubr.bf16.gmra.mxu0 %v3566
      %v3602 = vpop.f32.mrf.mxu0
      %v3603 = vadd.f32 0.0, %v3602
      %v3604 = vpop.f32.mrf.mxu0
      %v3605 = vpop.f32.mrf.mxu0
      %v3606 = vpop.f32.mrf.mxu0
      %3607 = vdwg.mxu0
      %v3608 = vadd.f32 %v3563, %v3603
      %v3609 = vpack.c.bf16 %v3513, %v3513
      %v3611 = vsel %vm1288, %v3609, 0
      %3613 = vmatprep.subr.bf16.mxu0 0
      %3614 = vmatpush1.bf16.msra.mxu0 0
      %3615 = vmatprep.subr.bf16.mxu0 0
      %3616 = vmatpush1.bf16.msra.mxu0 0
      %3617 = vmatprep.subr.bf16.mxu0 0
      %3618 = vmatpush1.bf16.msra.mxu0 0
      %3619 = vmatprep.subr.bf16.mxu0 0
      %3620 = vmatpush1.bf16.msra.mxu0 0
      %3621 = vmatprep.subr.bf16.mxu0 0
      %3622 = vmatpush1.bf16.msra.mxu0 0
      %3623 = vmatprep.subr.bf16.mxu0 0
      %3624 = vmatpush1.bf16.msra.mxu0 0
      %3625 = vmatprep.subr.bf16.mxu0 0
      %3626 = vmatpush1.bf16.msra.mxu0 %v1400
      %3627 = vmatprep.subr.bf16.mxu0 0
      %3628 = vmatpush1.bf16.msra.mxu0 %v1399
      %3629 = vmatprep.subr.bf16.mxu0 0
      %3630 = vmatpush2.bf16.msra.mxu0 0
      %3631 = vmatprep.subr.bf16.mxu0 0
      %3632 = vmatpush2.bf16.msra.mxu0 0
      %3633 = vmatprep.subr.bf16.mxu0 0
      %3634 = vmatpush2.bf16.msra.mxu0 0
      %3635 = vmatprep.subr.bf16.mxu0 0
      %3636 = vmatpush2.bf16.msra.mxu0 0
      %3637 = vmatprep.subr.bf16.mxu0 0
      %3638 = vmatpush2.bf16.msra.mxu0 0
      %3639 = vmatprep.subr.bf16.mxu0 0
      %3640 = vmatpush2.bf16.msra.mxu0 0
      %3641 = vmatprep.subr.bf16.mxu0 0
      %3642 = vmatpush2.bf16.msra.mxu0 0
      %3643 = vmatprep.subr.bf16.mxu0 0
      %3644 = vmatpush2.bf16.msra.mxu0 0
      %3645 = vmatprep.mubr.bf16.mxu0 0
      %3646 = vmatmul.mubr.bf16.gmra.mxu0 %v3611
      %v3647 = vpop.f32.mrf.mxu0
      %v3648 = vadd.f32 0.0, %v3647
      %v3649 = vpop.f32.mrf.mxu0
      %v3650 = vpop.f32.mrf.mxu0
      %v3651 = vpop.f32.mrf.mxu0
      %3652 = vdwg.mxu0
      %v3653 = vadd.f32 %v3608, %v3648
      %v3654 = vpack.c.bf16 %v3516, %v3516
      %v3656 = vsel %vm1288, %v3654, 0
      %3658 = vmatprep.subr.bf16.mxu0 0
      %3659 = vmatpush1.bf16.msra.mxu0 0
      %3660 = vmatprep.subr.bf16.mxu0 0
      %3661 = vmatpush1.bf16.msra.mxu0 0
      %3662 = vmatprep.subr.bf16.mxu0 0
      %3663 = vmatpush1.bf16.msra.mxu0 0
      %3664 = vmatprep.subr.bf16.mxu0 0
      %3665 = vmatpush1.bf16.msra.mxu0 0
      %3666 = vmatprep.subr.bf16.mxu0 0
      %3667 = vmatpush1.bf16.msra.mxu0 0
      %3668 = vmatprep.subr.bf16.mxu0 0
      %3669 = vmatpush1.bf16.msra.mxu0 0
      %3670 = vmatprep.subr.bf16.mxu0 0
      %3671 = vmatpush1.bf16.msra.mxu0 %v1457
      %3672 = vmatprep.subr.bf16.mxu0 0
      %3673 = vmatpush1.bf16.msra.mxu0 %v1456
      %3674 = vmatprep.subr.bf16.mxu0 0
      %3675 = vmatpush2.bf16.msra.mxu0 0
      %3676 = vmatprep.subr.bf16.mxu0 0
      %3677 = vmatpush2.bf16.msra.mxu0 0
      %3678 = vmatprep.subr.bf16.mxu0 0
      %3679 = vmatpush2.bf16.msra.mxu0 0
      %3680 = vmatprep.subr.bf16.mxu0 0
      %3681 = vmatpush2.bf16.msra.mxu0 0
      %3682 = vmatprep.subr.bf16.mxu0 0
      %3683 = vmatpush2.bf16.msra.mxu0 0
      %3684 = vmatprep.subr.bf16.mxu0 0
      %3685 = vmatpush2.bf16.msra.mxu0 0
      %3686 = vmatprep.subr.bf16.mxu0 0
      %3687 = vmatpush2.bf16.msra.mxu0 0
      %3688 = vmatprep.subr.bf16.mxu0 0
      %3689 = vmatpush2.bf16.msra.mxu0 0
      %3690 = vmatprep.mubr.bf16.mxu0 0
      %3691 = vmatmul.mubr.bf16.gmra.mxu0 %v3656
      %v3692 = vpop.f32.mrf.mxu0
      %v3693 = vadd.f32 0.0, %v3692
      %v3694 = vpop.f32.mrf.mxu0
      %v3695 = vpop.f32.mrf.mxu0
      %v3696 = vpop.f32.mrf.mxu0
      %3697 = vdwg.mxu0
      %v3698 = vadd.f32 %v3653, %v3693
      %3699 = vmax.xlane.f32.xlu0 %v3698
      %v3700 = vpop.xlane.xlu0 %3699
      %v3701 = vsub.f32 %v3698, %v3700
      %v3702 = vmul.f32 %v3701, 1.442695
      %v3703 = vpow.pop %v3702
      %3704 = vadd.xlane.f32.xlu0 %v3703
      %v3705 = vpop.xlane.xlu0 %3704
      %v3706 = vlog2.pop %v3705
      %v3707 = vmul.f32 %v3706, 0.6931472
      %v3708 = vsub.f32 %v3701, %v3707
      %s3709 = scalar_lea.vmem %s333, 16
      %3710 = vst [vmem:[%s3709] sm:$0xff] %v3708
      %s3711 = scalar_lea.vmem %s313, 192
      %v3712 = vld [vmem:[%s3711] sm:$0xf]
      %v3713 = vld [vmem:[%s3711 + $0x4] sm:$0xf]
      %v3714 = vld [vmem:[%s3711 + $0x8] sm:$0xf]
      %v3715 = vld [vmem:[%s3711 + $0xc] sm:$0xf]
      %v3716 = vld [vmem:[%s3711 + $0x10] sm:$0xf]
      %v3717 = vld [vmem:[%s3711 + $0x14] sm:$0xf]
      %v3718 = vld [vmem:[%s3711 + $0x18] sm:$0xf]
      %v3719 = vld [vmem:[%s3711 + $0x1c] sm:$0xf]
      %v3720 = vld [vmem:[%s3711 + $0x20] sm:$0xf]
      %v3721 = vld [vmem:[%s3711 + $0x24] sm:$0xf]
      %v3722 = vld [vmem:[%s3711 + $0x28] sm:$0xf]
      %v3723 = vld [vmem:[%s3711 + $0x2c] sm:$0xf]
      %v3724 = vld [vmem:[%s3711 + $0x30] sm:$0xf]
      %v3725 = vld [vmem:[%s3711 + $0x34] sm:$0xf]
      %v3726 = vld [vmem:[%s3711 + $0x38] sm:$0xf]
      %v3727 = vld [vmem:[%s3711 + $0x3c] sm:$0xf]
      %v3744 = vunpack.c.l.b16 %v3712
      %v3745 = vunpack.c.l.b16 %v3713
      %v3746 = vunpack.c.l.b16 %v3714
      %v3747 = vunpack.c.l.b16 %v3715
      %v3748 = vunpack.c.l.b16 %v3716
      %v3749 = vunpack.c.l.b16 %v3717
      %v3750 = vunpack.c.l.b16 %v3718
      %v3751 = vunpack.c.l.b16 %v3719
      %v3752 = vunpack.c.l.b16 %v3720
      %v3753 = vunpack.c.l.b16 %v3721
      %v3754 = vunpack.c.l.b16 %v3722
      %v3755 = vunpack.c.l.b16 %v3723
      %v3756 = vunpack.c.l.b16 %v3724
      %v3757 = vunpack.c.l.b16 %v3725
      %v3758 = vunpack.c.l.b16 %v3726
      %v3759 = vunpack.c.l.b16 %v3727
      %v3760 = vpack.c.b16 %v3745, %v3744
      %v3761 = vpack.c.b16 %v3747, %v3746
      %v3762 = vpack.c.b16 %v3749, %v3748
      %v3763 = vpack.c.b16 %v3751, %v3750
      %v3764 = vpack.c.b16 %v3753, %v3752
      %v3765 = vpack.c.b16 %v3755, %v3754
      %v3766 = vpack.c.b16 %v3757, %v3756
      %v3767 = vpack.c.b16 %v3759, %v3758
      %v3769 = vsel %vm411, %v3760, 0
      %v3772 = vsel %vm411, %v3761, 0
      %v3775 = vsel %vm411, %v3762, 0
      %v3778 = vsel %vm411, %v3763, 0
      %v3781 = vsel %vm411, %v3764, 0
      %v3784 = vsel %vm411, %v3765, 0
      %v3787 = vsel %vm411, %v3766, 0
      %v3790 = vsel %vm411, %v3767, 0
      %3792 = vmatprep.subr.bf16.mxu0 0
      %3793 = vmatpush1.bf16.msra.mxu0 0
      %3794 = vmatprep.subr.bf16.mxu0 0
      %3795 = vmatpush1.bf16.msra.mxu0 0
      %3796 = vmatprep.subr.bf16.mxu0 0
      %3797 = vmatpush1.bf16.msra.mxu0 0
      %3798 = vmatprep.subr.bf16.mxu0 0
      %3799 = vmatpush1.bf16.msra.mxu0 0
      %3800 = vmatprep.subr.bf16.mxu0 0
      %3801 = vmatpush1.bf16.msra.mxu0 0
      %3802 = vmatprep.subr.bf16.mxu0 0
      %3803 = vmatpush1.bf16.msra.mxu0 0
      %3804 = vmatprep.subr.bf16.mxu0 0
      %3805 = vmatpush1.bf16.msra.mxu0 0
      %3806 = vmatprep.subr.bf16.mxu0 0
      %3807 = vmatpush1.bf16.msra.mxu0 %v438
      %3808 = vmatprep.subr.bf16.mxu0 0
      %3809 = vmatpush2.bf16.msra.mxu0 0
      %3810 = vmatprep.subr.bf16.mxu0 0
      %3811 = vmatpush2.bf16.msra.mxu0 0
      %3812 = vmatprep.subr.bf16.mxu0 0
      %3813 = vmatpush2.bf16.msra.mxu0 0
      %3814 = vmatprep.subr.bf16.mxu0 0
      %3815 = vmatpush2.bf16.msra.mxu0 0
      %3816 = vmatprep.subr.bf16.mxu0 0
      %3817 = vmatpush2.bf16.msra.mxu0 0
      %3818 = vmatprep.subr.bf16.mxu0 0
      %3819 = vmatpush2.bf16.msra.mxu0 0
      %3820 = vmatprep.subr.bf16.mxu0 0
      %3821 = vmatpush2.bf16.msra.mxu0 0
      %3822 = vmatprep.subr.bf16.mxu0 0
      %3823 = vmatpush2.bf16.msra.mxu0 0
      %3824 = vmatprep.mubr.bf16.mxu0 0
      %3825 = vmatmul.mubr.bf16.gmra.mxu0 %v3769
      %v3826 = vpop.f32.mrf.mxu0
      %v3827 = vadd.f32 0.0, %v3826
      %v3828 = vpop.f32.mrf.mxu0
      %v3829 = vpop.f32.mrf.mxu0
      %v3830 = vadd.f32 0.0, %v3829
      %v3831 = vpop.f32.mrf.mxu0
      %3832 = vmatprep.mubr.bf16.mxu0 0
      %3833 = vmatmul.mubr.bf16.gmra.mxu0 %v3772
      %v3834 = vpop.f32.mrf.mxu0
      %v3835 = vadd.f32 0.0, %v3834
      %v3836 = vpop.f32.mrf.mxu0
      %v3837 = vpop.f32.mrf.mxu0
      %v3838 = vadd.f32 0.0, %v3837
      %v3839 = vpop.f32.mrf.mxu0
      %3840 = vmatprep.mubr.bf16.mxu0 0
      %3841 = vmatmul.mubr.bf16.gmra.mxu0 %v3775
      %v3842 = vpop.f32.mrf.mxu0
      %v3843 = vadd.f32 0.0, %v3842
      %v3844 = vpop.f32.mrf.mxu0
      %v3845 = vpop.f32.mrf.mxu0
      %v3846 = vadd.f32 0.0, %v3845
      %v3847 = vpop.f32.mrf.mxu0
      %3848 = vmatprep.mubr.bf16.mxu0 0
      %3849 = vmatmul.mubr.bf16.gmra.mxu0 %v3778
      %v3850 = vpop.f32.mrf.mxu0
      %v3851 = vadd.f32 0.0, %v3850
      %v3852 = vpop.f32.mrf.mxu0
      %v3853 = vpop.f32.mrf.mxu0
      %v3854 = vadd.f32 0.0, %v3853
      %v3855 = vpop.f32.mrf.mxu0
      %3856 = vmatprep.mubr.bf16.mxu0 0
      %3857 = vmatmul.mubr.bf16.gmra.mxu0 %v3781
      %v3858 = vpop.f32.mrf.mxu0
      %v3859 = vadd.f32 0.0, %v3858
      %v3860 = vpop.f32.mrf.mxu0
      %v3861 = vpop.f32.mrf.mxu0
      %v3862 = vadd.f32 0.0, %v3861
      %v3863 = vpop.f32.mrf.mxu0
      %3864 = vmatprep.mubr.bf16.mxu0 0
      %3865 = vmatmul.mubr.bf16.gmra.mxu0 %v3784
      %v3866 = vpop.f32.mrf.mxu0
      %v3867 = vadd.f32 0.0, %v3866
      %v3868 = vpop.f32.mrf.mxu0
      %v3869 = vpop.f32.mrf.mxu0
      %v3870 = vadd.f32 0.0, %v3869
      %v3871 = vpop.f32.mrf.mxu0
      %3872 = vmatprep.mubr.bf16.mxu0 0
      %3873 = vmatmul.mubr.bf16.gmra.mxu0 %v3787
      %v3874 = vpop.f32.mrf.mxu0
      %v3875 = vadd.f32 0.0, %v3874
      %v3876 = vpop.f32.mrf.mxu0
      %v3877 = vpop.f32.mrf.mxu0
      %v3878 = vadd.f32 0.0, %v3877
      %v3879 = vpop.f32.mrf.mxu0
      %3880 = vmatprep.mubr.bf16.mxu0 0
      %3881 = vmatmul.mubr.bf16.gmra.mxu0 %v3790
      %v3882 = vpop.f32.mrf.mxu0
      %v3883 = vadd.f32 0.0, %v3882
      %v3884 = vpop.f32.mrf.mxu0
      %v3885 = vpop.f32.mrf.mxu0
      %v3886 = vadd.f32 0.0, %v3885
      %v3887 = vpop.f32.mrf.mxu0
      %3888 = vdwg.mxu0
      %v3889 = vadd.f32 %v3827, %v541
      %v3890 = vadd.f32 %v3830, %v541
      %v3891 = vadd.f32 %v3835, %v541
      %v3892 = vadd.f32 %v3838, %v541
      %v3893 = vadd.f32 %v3843, %v541
      %v3894 = vadd.f32 %v3846, %v541
      %v3895 = vadd.f32 %v3851, %v541
      %v3896 = vadd.f32 %v3854, %v541
      %v3897 = vadd.f32 %v3859, %v541
      %v3898 = vadd.f32 %v3862, %v541
      %v3899 = vadd.f32 %v3867, %v541
      %v3900 = vadd.f32 %v3870, %v541
      %v3901 = vadd.f32 %v3875, %v541
      %v3902 = vadd.f32 %v3878, %v541
      %v3903 = vadd.f32 %v3883, %v541
      %v3904 = vadd.f32 %v3886, %v541
      %s3905 = scalar_lea.vmem %s320, 576
      %v3906 = vld [vmem:[%s3905] sm:$0xf]
      %v3907 = vld [vmem:[%s3905 + $0x4] sm:$0xf]
      %v3908 = vld [vmem:[%s3905 + $0x8] sm:$0xf]
      %v3909 = vld [vmem:[%s3905 + $0xc] sm:$0xf]
      %v3910 = vld [vmem:[%s3905 + $0x10] sm:$0xf]
      %v3911 = vld [vmem:[%s3905 + $0x14] sm:$0xf]
      %v3912 = vld [vmem:[%s3905 + $0x18] sm:$0xf]
      %v3913 = vld [vmem:[%s3905 + $0x1c] sm:$0xf]
      %v3914 = vld [vmem:[%s3905 + $0x20] sm:$0xf]
      %v3915 = vld [vmem:[%s3905 + $0x24] sm:$0xf]
      %v3916 = vld [vmem:[%s3905 + $0x28] sm:$0xf]
      %v3917 = vld [vmem:[%s3905 + $0x2c] sm:$0xf]
      %v3918 = vld [vmem:[%s3905 + $0x30] sm:$0xf]
      %v3919 = vld [vmem:[%s3905 + $0x34] sm:$0xf]
      %v3920 = vld [vmem:[%s3905 + $0x38] sm:$0xf]
      %v3921 = vld [vmem:[%s3905 + $0x3c] sm:$0xf]
      %v3922 = vpack.c.bf16 %v3830, %v3827
      %v3923 = vpack.c.bf16 %v3838, %v3835
      %v3924 = vpack.c.bf16 %v3846, %v3843
      %v3925 = vpack.c.bf16 %v3854, %v3851
      %v3926 = vpack.c.bf16 %v3862, %v3859
      %v3927 = vpack.c.bf16 %v3870, %v3867
      %v3928 = vpack.c.bf16 %v3878, %v3875
      %v3929 = vpack.c.bf16 %v3886, %v3883
      %v3946 = vunpack.c.l.b16 %v3906
      %v3947 = vunpack.c.l.b16 %v3907
      %v3948 = vunpack.c.l.b16 %v3908
      %v3949 = vunpack.c.l.b16 %v3909
      %v3950 = vunpack.c.l.b16 %v3910
      %v3951 = vunpack.c.l.b16 %v3911
      %v3952 = vunpack.c.l.b16 %v3912
      %v3953 = vunpack.c.l.b16 %v3913
      %v3954 = vunpack.c.l.b16 %v3914
      %v3955 = vunpack.c.l.b16 %v3915
      %v3956 = vunpack.c.l.b16 %v3916
      %v3957 = vunpack.c.l.b16 %v3917
      %v3958 = vunpack.c.l.b16 %v3918
      %v3959 = vunpack.c.l.b16 %v3919
      %v3960 = vunpack.c.l.b16 %v3920
      %v3961 = vunpack.c.l.b16 %v3921
      %v3962 = vpack.c.b16 %v3947, %v3946
      %v3963 = vpack.c.b16 %v3949, %v3948
      %v3964 = vpack.c.b16 %v3951, %v3950
      %v3965 = vpack.c.b16 %v3953, %v3952
      %v3966 = vpack.c.b16 %v3955, %v3954
      %v3967 = vpack.c.b16 %v3957, %v3956
      %v3968 = vpack.c.b16 %v3959, %v3958
      %v3969 = vpack.c.b16 %v3961, %v3960
      %3986 = vrot.lane.b32.xlu0 %v3922, 96
      %v3987 = vpop.permute.xlu0 %3986
      %3988 = vrot.lane.b32.xlu0 %v3923, 96
      %v3989 = vpop.permute.xlu0 %3988
      %3990 = vrot.lane.b32.xlu0 %v3924, 96
      %v3991 = vpop.permute.xlu0 %3990
      %3992 = vrot.lane.b32.xlu0 %v3925, 96
      %v3993 = vpop.permute.xlu0 %3992
      %3994 = vrot.lane.b32.xlu0 %v3926, 96
      %v3995 = vpop.permute.xlu0 %3994
      %3996 = vrot.lane.b32.xlu0 %v3927, 96
      %v3997 = vpop.permute.xlu0 %3996
      %3998 = vrot.lane.b32.xlu0 %v3928, 96
      %v3999 = vpop.permute.xlu0 %3998
      %4000 = vrot.lane.b32.xlu0 %v3929, 96
      %v4001 = vpop.permute.xlu0 %4000
      %4010 = vmatprep.subr.bf16.mxu0 0
      %4011 = vmatpush1.bf16.msra.mxu0 %v4001
      %4012 = vmatprep.subr.bf16.mxu0 0
      %4013 = vmatpush1.bf16.msra.mxu0 %v3999
      %4014 = vmatprep.subr.bf16.mxu0 0
      %4015 = vmatpush1.bf16.msra.mxu0 %v3997
      %4016 = vmatprep.subr.bf16.mxu0 0
      %4017 = vmatpush1.bf16.msra.mxu0 %v3995
      %4018 = vmatprep.subr.bf16.mxu0 0
      %4019 = vmatpush1.bf16.msra.mxu0 %v3993
      %4020 = vmatprep.subr.bf16.mxu0 0
      %4021 = vmatpush1.bf16.msra.mxu0 %v3991
      %4022 = vmatprep.subr.bf16.mxu0 0
      %4023 = vmatpush1.bf16.msra.mxu0 %v3989
      %4024 = vmatprep.subr.bf16.mxu0 0
      %4025 = vmatpush1.bf16.msra.mxu0 %v3987
      %4026 = vmatprep.subr.bf16.mxu0 0
      %4027 = vmatpush2.bf16.msra.mxu0 0
      %4028 = vmatprep.subr.bf16.mxu0 0
      %4029 = vmatpush2.bf16.msra.mxu0 0
      %4030 = vmatprep.subr.bf16.mxu0 0
      %4031 = vmatpush2.bf16.msra.mxu0 0
      %4032 = vmatprep.subr.bf16.mxu0 0
      %4033 = vmatpush2.bf16.msra.mxu0 0
      %4034 = vmatprep.subr.bf16.mxu0 0
      %4035 = vmatpush2.bf16.msra.mxu0 0
      %4036 = vmatprep.subr.bf16.mxu0 0
      %4037 = vmatpush2.bf16.msra.mxu0 0
      %4038 = vmatprep.subr.bf16.mxu0 0
      %4039 = vmatpush2.bf16.msra.mxu0 0
      %4040 = vmatprep.subr.bf16.mxu0 0
      %4041 = vmatpush2.bf16.msra.mxu0 0
      %4042 = vmatprep.mubr.bf16.mxu0 0
      %4043 = vmatmul.mubr.bf16.gmra.mxu0 %v3962
      %v4044 = vpop.f32.mrf.mxu0
      %v4045 = vadd.f32 0.0, %v4044
      %v4046 = vpop.f32.mrf.mxu0
      %v4047 = vpop.f32.mrf.mxu0
      %v4048 = vadd.f32 0.0, %v4047
      %v4049 = vpop.f32.mrf.mxu0
      %4050 = vmatprep.mubr.bf16.mxu0 0
      %4051 = vmatmul.mubr.bf16.gmra.mxu0 %v3963
      %v4052 = vpop.f32.mrf.mxu0
      %v4053 = vadd.f32 0.0, %v4052
      %v4054 = vpop.f32.mrf.mxu0
      %v4055 = vpop.f32.mrf.mxu0
      %v4056 = vadd.f32 0.0, %v4055
      %v4057 = vpop.f32.mrf.mxu0
      %4058 = vmatprep.mubr.bf16.mxu0 0
      %4059 = vmatmul.mubr.bf16.gmra.mxu0 %v3964
      %v4060 = vpop.f32.mrf.mxu0
      %v4061 = vadd.f32 0.0, %v4060
      %v4062 = vpop.f32.mrf.mxu0
      %v4063 = vpop.f32.mrf.mxu0
      %v4064 = vadd.f32 0.0, %v4063
      %v4065 = vpop.f32.mrf.mxu0
      %4066 = vmatprep.mubr.bf16.mxu0 0
      %4067 = vmatmul.mubr.bf16.gmra.mxu0 %v3965
      %v4068 = vpop.f32.mrf.mxu0
      %v4069 = vadd.f32 0.0, %v4068
      %v4070 = vpop.f32.mrf.mxu0
      %v4071 = vpop.f32.mrf.mxu0
      %v4072 = vadd.f32 0.0, %v4071
      %v4073 = vpop.f32.mrf.mxu0
      %4074 = vmatprep.mubr.bf16.mxu0 0
      %4075 = vmatmul.mubr.bf16.gmra.mxu0 %v3966
      %v4076 = vpop.f32.mrf.mxu0
      %v4077 = vadd.f32 0.0, %v4076
      %v4078 = vpop.f32.mrf.mxu0
      %v4079 = vpop.f32.mrf.mxu0
      %v4080 = vadd.f32 0.0, %v4079
      %v4081 = vpop.f32.mrf.mxu0
      %4082 = vmatprep.mubr.bf16.mxu0 0
      %4083 = vmatmul.mubr.bf16.gmra.mxu0 %v3967
      %v4084 = vpop.f32.mrf.mxu0
      %v4085 = vadd.f32 0.0, %v4084
      %v4086 = vpop.f32.mrf.mxu0
      %v4087 = vpop.f32.mrf.mxu0
      %v4088 = vadd.f32 0.0, %v4087
      %v4089 = vpop.f32.mrf.mxu0
      %4090 = vmatprep.mubr.bf16.mxu0 0
      %4091 = vmatmul.mubr.bf16.gmra.mxu0 %v3968
      %v4092 = vpop.f32.mrf.mxu0
      %v4093 = vadd.f32 0.0, %v4092
      %v4094 = vpop.f32.mrf.mxu0
      %v4095 = vpop.f32.mrf.mxu0
      %v4096 = vadd.f32 0.0, %v4095
      %v4097 = vpop.f32.mrf.mxu0
      %4098 = vmatprep.mubr.bf16.mxu0 0
      %4099 = vmatmul.mubr.bf16.gmra.mxu0 %v3969
      %v4100 = vpop.f32.mrf.mxu0
      %v4101 = vadd.f32 0.0, %v4100
      %v4102 = vpop.f32.mrf.mxu0
      %v4103 = vpop.f32.mrf.mxu0
      %v4104 = vadd.f32 0.0, %v4103
      %v4105 = vpop.f32.mrf.mxu0
      %4106 = vdwg.mxu0
      %v4107 = vadd.f32 %v3889, %v4045
      %v4108 = vadd.f32 %v3890, %v4048
      %v4109 = vadd.f32 %v3891, %v4053
      %v4110 = vadd.f32 %v3892, %v4056
      %v4111 = vadd.f32 %v3893, %v4061
      %v4112 = vadd.f32 %v3894, %v4064
      %v4113 = vadd.f32 %v3895, %v4069
      %v4114 = vadd.f32 %v3896, %v4072
      %v4115 = vadd.f32 %v3897, %v4077
      %v4116 = vadd.f32 %v3898, %v4080
      %v4117 = vadd.f32 %v3899, %v4085
      %v4118 = vadd.f32 %v3900, %v4088
      %v4119 = vadd.f32 %v3901, %v4093
      %v4120 = vadd.f32 %v3902, %v4096
      %v4121 = vadd.f32 %v3903, %v4101
      %v4122 = vadd.f32 %v3904, %v4104
      %s4123 = scalar_lea.vmem %s320, 640
      %v4124 = vld [vmem:[%s4123] sm:$0xf]
      %v4125 = vld [vmem:[%s4123 + $0x4] sm:$0xf]
      %v4126 = vld [vmem:[%s4123 + $0x8] sm:$0xf]
      %v4127 = vld [vmem:[%s4123 + $0xc] sm:$0xf]
      %v4128 = vld [vmem:[%s4123 + $0x10] sm:$0xf]
      %v4129 = vld [vmem:[%s4123 + $0x14] sm:$0xf]
      %v4130 = vld [vmem:[%s4123 + $0x18] sm:$0xf]
      %v4131 = vld [vmem:[%s4123 + $0x1c] sm:$0xf]
      %v4132 = vld [vmem:[%s4123 + $0x20] sm:$0xf]
      %v4133 = vld [vmem:[%s4123 + $0x24] sm:$0xf]
      %v4134 = vld [vmem:[%s4123 + $0x28] sm:$0xf]
      %v4135 = vld [vmem:[%s4123 + $0x2c] sm:$0xf]
      %v4136 = vld [vmem:[%s4123 + $0x30] sm:$0xf]
      %v4137 = vld [vmem:[%s4123 + $0x34] sm:$0xf]
      %v4138 = vld [vmem:[%s4123 + $0x38] sm:$0xf]
      %v4139 = vld [vmem:[%s4123 + $0x3c] sm:$0xf]
      %v4156 = vunpack.c.l.b16 %v4124
      %v4157 = vunpack.c.l.b16 %v4125
      %v4158 = vunpack.c.l.b16 %v4126
      %v4159 = vunpack.c.l.b16 %v4127
      %v4160 = vunpack.c.l.b16 %v4128
      %v4161 = vunpack.c.l.b16 %v4129
      %v4162 = vunpack.c.l.b16 %v4130
      %v4163 = vunpack.c.l.b16 %v4131
      %v4164 = vunpack.c.l.b16 %v4132
      %v4165 = vunpack.c.l.b16 %v4133
      %v4166 = vunpack.c.l.b16 %v4134
      %v4167 = vunpack.c.l.b16 %v4135
      %v4168 = vunpack.c.l.b16 %v4136
      %v4169 = vunpack.c.l.b16 %v4137
      %v4170 = vunpack.c.l.b16 %v4138
      %v4171 = vunpack.c.l.b16 %v4139
      %v4172 = vpack.c.b16 %v4157, %v4156
      %v4173 = vpack.c.b16 %v4159, %v4158
      %v4174 = vpack.c.b16 %v4161, %v4160
      %v4175 = vpack.c.b16 %v4163, %v4162
      %v4176 = vpack.c.b16 %v4165, %v4164
      %v4177 = vpack.c.b16 %v4167, %v4166
      %v4178 = vpack.c.b16 %v4169, %v4168
      %v4179 = vpack.c.b16 %v4171, %v4170
      %4188 = vrot.lane.b32.xlu0 %v3922, 64
      %v4189 = vpop.permute.xlu0 %4188
      %4190 = vrot.lane.b32.xlu0 %v3923, 64
      %v4191 = vpop.permute.xlu0 %4190
      %4192 = vrot.lane.b32.xlu0 %v3924, 64
      %v4193 = vpop.permute.xlu0 %4192
      %4194 = vrot.lane.b32.xlu0 %v3925, 64
      %v4195 = vpop.permute.xlu0 %4194
      %4196 = vrot.lane.b32.xlu0 %v3926, 64
      %v4197 = vpop.permute.xlu0 %4196
      %4198 = vrot.lane.b32.xlu0 %v3927, 64
      %v4199 = vpop.permute.xlu0 %4198
      %4200 = vrot.lane.b32.xlu0 %v3928, 64
      %v4201 = vpop.permute.xlu0 %4200
      %4202 = vrot.lane.b32.xlu0 %v3929, 64
      %v4203 = vpop.permute.xlu0 %4202
      %4212 = vmatprep.subr.bf16.mxu0 0
      %4213 = vmatpush1.bf16.msra.mxu0 %v4203
      %4214 = vmatprep.subr.bf16.mxu0 0
      %4215 = vmatpush1.bf16.msra.mxu0 %v4201
      %4216 = vmatprep.subr.bf16.mxu0 0
      %4217 = vmatpush1.bf16.msra.mxu0 %v4199
      %4218 = vmatprep.subr.bf16.mxu0 0
      %4219 = vmatpush1.bf16.msra.mxu0 %v4197
      %4220 = vmatprep.subr.bf16.mxu0 0
      %4221 = vmatpush1.bf16.msra.mxu0 %v4195
      %4222 = vmatprep.subr.bf16.mxu0 0
      %4223 = vmatpush1.bf16.msra.mxu0 %v4193
      %4224 = vmatprep.subr.bf16.mxu0 0
      %4225 = vmatpush1.bf16.msra.mxu0 %v4191
      %4226 = vmatprep.subr.bf16.mxu0 0
      %4227 = vmatpush1.bf16.msra.mxu0 %v4189
      %4228 = vmatprep.subr.bf16.mxu0 0
      %4229 = vmatpush2.bf16.msra.mxu0 0
      %4230 = vmatprep.subr.bf16.mxu0 0
      %4231 = vmatpush2.bf16.msra.mxu0 0
      %4232 = vmatprep.subr.bf16.mxu0 0
      %4233 = vmatpush2.bf16.msra.mxu0 0
      %4234 = vmatprep.subr.bf16.mxu0 0
      %4235 = vmatpush2.bf16.msra.mxu0 0
      %4236 = vmatprep.subr.bf16.mxu0 0
      %4237 = vmatpush2.bf16.msra.mxu0 0
      %4238 = vmatprep.subr.bf16.mxu0 0
      %4239 = vmatpush2.bf16.msra.mxu0 0
      %4240 = vmatprep.subr.bf16.mxu0 0
      %4241 = vmatpush2.bf16.msra.mxu0 0
      %4242 = vmatprep.subr.bf16.mxu0 0
      %4243 = vmatpush2.bf16.msra.mxu0 0
      %4244 = vmatprep.mubr.bf16.mxu0 0
      %4245 = vmatmul.mubr.bf16.gmra.mxu0 %v4172
      %v4246 = vpop.f32.mrf.mxu0
      %v4247 = vadd.f32 0.0, %v4246
      %v4248 = vpop.f32.mrf.mxu0
      %v4249 = vpop.f32.mrf.mxu0
      %v4250 = vadd.f32 0.0, %v4249
      %v4251 = vpop.f32.mrf.mxu0
      %4252 = vmatprep.mubr.bf16.mxu0 0
      %4253 = vmatmul.mubr.bf16.gmra.mxu0 %v4173
      %v4254 = vpop.f32.mrf.mxu0
      %v4255 = vadd.f32 0.0, %v4254
      %v4256 = vpop.f32.mrf.mxu0
      %v4257 = vpop.f32.mrf.mxu0
      %v4258 = vadd.f32 0.0, %v4257
      %v4259 = vpop.f32.mrf.mxu0
      %4260 = vmatprep.mubr.bf16.mxu0 0
      %4261 = vmatmul.mubr.bf16.gmra.mxu0 %v4174
      %v4262 = vpop.f32.mrf.mxu0
      %v4263 = vadd.f32 0.0, %v4262
      %v4264 = vpop.f32.mrf.mxu0
      %v4265 = vpop.f32.mrf.mxu0
      %v4266 = vadd.f32 0.0, %v4265
      %v4267 = vpop.f32.mrf.mxu0
      %4268 = vmatprep.mubr.bf16.mxu0 0
      %4269 = vmatmul.mubr.bf16.gmra.mxu0 %v4175
      %v4270 = vpop.f32.mrf.mxu0
      %v4271 = vadd.f32 0.0, %v4270
      %v4272 = vpop.f32.mrf.mxu0
      %v4273 = vpop.f32.mrf.mxu0
      %v4274 = vadd.f32 0.0, %v4273
      %v4275 = vpop.f32.mrf.mxu0
      %4276 = vmatprep.mubr.bf16.mxu0 0
      %4277 = vmatmul.mubr.bf16.gmra.mxu0 %v4176
      %v4278 = vpop.f32.mrf.mxu0
      %v4279 = vadd.f32 0.0, %v4278
      %v4280 = vpop.f32.mrf.mxu0
      %v4281 = vpop.f32.mrf.mxu0
      %v4282 = vadd.f32 0.0, %v4281
      %v4283 = vpop.f32.mrf.mxu0
      %4284 = vmatprep.mubr.bf16.mxu0 0
      %4285 = vmatmul.mubr.bf16.gmra.mxu0 %v4177
      %v4286 = vpop.f32.mrf.mxu0
      %v4287 = vadd.f32 0.0, %v4286
      %v4288 = vpop.f32.mrf.mxu0
      %v4289 = vpop.f32.mrf.mxu0
      %v4290 = vadd.f32 0.0, %v4289
      %v4291 = vpop.f32.mrf.mxu0
      %4292 = vmatprep.mubr.bf16.mxu0 0
      %4293 = vmatmul.mubr.bf16.gmra.mxu0 %v4178
      %v4294 = vpop.f32.mrf.mxu0
      %v4295 = vadd.f32 0.0, %v4294
      %v4296 = vpop.f32.mrf.mxu0
      %v4297 = vpop.f32.mrf.mxu0
      %v4298 = vadd.f32 0.0, %v4297
      %v4299 = vpop.f32.mrf.mxu0
      %4300 = vmatprep.mubr.bf16.mxu0 0
      %4301 = vmatmul.mubr.bf16.gmra.mxu0 %v4179
      %v4302 = vpop.f32.mrf.mxu0
      %v4303 = vadd.f32 0.0, %v4302
      %v4304 = vpop.f32.mrf.mxu0
      %v4305 = vpop.f32.mrf.mxu0
      %v4306 = vadd.f32 0.0, %v4305
      %v4307 = vpop.f32.mrf.mxu0
      %4308 = vdwg.mxu0
      %v4309 = vadd.f32 %v4107, %v4247
      %v4310 = vadd.f32 %v4108, %v4250
      %v4311 = vadd.f32 %v4109, %v4255
      %v4312 = vadd.f32 %v4110, %v4258
      %v4313 = vadd.f32 %v4111, %v4263
      %v4314 = vadd.f32 %v4112, %v4266
      %v4315 = vadd.f32 %v4113, %v4271
      %v4316 = vadd.f32 %v4114, %v4274
      %v4317 = vadd.f32 %v4115, %v4279
      %v4318 = vadd.f32 %v4116, %v4282
      %v4319 = vadd.f32 %v4117, %v4287
      %v4320 = vadd.f32 %v4118, %v4290
      %v4321 = vadd.f32 %v4119, %v4295
      %v4322 = vadd.f32 %v4120, %v4298
      %v4323 = vadd.f32 %v4121, %v4303
      %v4324 = vadd.f32 %v4122, %v4306
      %s4325 = scalar_lea.vmem %s320, 704
      %v4326 = vld [vmem:[%s4325] sm:$0xf]
      %v4327 = vld [vmem:[%s4325 + $0x4] sm:$0xf]
      %v4328 = vld [vmem:[%s4325 + $0x8] sm:$0xf]
      %v4329 = vld [vmem:[%s4325 + $0xc] sm:$0xf]
      %v4330 = vld [vmem:[%s4325 + $0x10] sm:$0xf]
      %v4331 = vld [vmem:[%s4325 + $0x14] sm:$0xf]
      %v4332 = vld [vmem:[%s4325 + $0x18] sm:$0xf]
      %v4333 = vld [vmem:[%s4325 + $0x1c] sm:$0xf]
      %v4334 = vld [vmem:[%s4325 + $0x20] sm:$0xf]
      %v4335 = vld [vmem:[%s4325 + $0x24] sm:$0xf]
      %v4336 = vld [vmem:[%s4325 + $0x28] sm:$0xf]
      %v4337 = vld [vmem:[%s4325 + $0x2c] sm:$0xf]
      %v4338 = vld [vmem:[%s4325 + $0x30] sm:$0xf]
      %v4339 = vld [vmem:[%s4325 + $0x34] sm:$0xf]
      %v4340 = vld [vmem:[%s4325 + $0x38] sm:$0xf]
      %v4341 = vld [vmem:[%s4325 + $0x3c] sm:$0xf]
      %v4358 = vunpack.c.l.b16 %v4326
      %v4359 = vunpack.c.l.b16 %v4327
      %v4360 = vunpack.c.l.b16 %v4328
      %v4361 = vunpack.c.l.b16 %v4329
      %v4362 = vunpack.c.l.b16 %v4330
      %v4363 = vunpack.c.l.b16 %v4331
      %v4364 = vunpack.c.l.b16 %v4332
      %v4365 = vunpack.c.l.b16 %v4333
      %v4366 = vunpack.c.l.b16 %v4334
      %v4367 = vunpack.c.l.b16 %v4335
      %v4368 = vunpack.c.l.b16 %v4336
      %v4369 = vunpack.c.l.b16 %v4337
      %v4370 = vunpack.c.l.b16 %v4338
      %v4371 = vunpack.c.l.b16 %v4339
      %v4372 = vunpack.c.l.b16 %v4340
      %v4373 = vunpack.c.l.b16 %v4341
      %v4374 = vpack.c.b16 %v4359, %v4358
      %v4375 = vpack.c.b16 %v4361, %v4360
      %v4376 = vpack.c.b16 %v4363, %v4362
      %v4377 = vpack.c.b16 %v4365, %v4364
      %v4378 = vpack.c.b16 %v4367, %v4366
      %v4379 = vpack.c.b16 %v4369, %v4368
      %v4380 = vpack.c.b16 %v4371, %v4370
      %v4381 = vpack.c.b16 %v4373, %v4372
      %4390 = vrot.lane.b32.xlu0 %v3922, 32
      %v4391 = vpop.permute.xlu0 %4390
      %4392 = vrot.lane.b32.xlu0 %v3923, 32
      %v4393 = vpop.permute.xlu0 %4392
      %4394 = vrot.lane.b32.xlu0 %v3924, 32
      %v4395 = vpop.permute.xlu0 %4394
      %4396 = vrot.lane.b32.xlu0 %v3925, 32
      %v4397 = vpop.permute.xlu0 %4396
      %4398 = vrot.lane.b32.xlu0 %v3926, 32
      %v4399 = vpop.permute.xlu0 %4398
      %4400 = vrot.lane.b32.xlu0 %v3927, 32
      %v4401 = vpop.permute.xlu0 %4400
      %4402 = vrot.lane.b32.xlu0 %v3928, 32
      %v4403 = vpop.permute.xlu0 %4402
      %4404 = vrot.lane.b32.xlu0 %v3929, 32
      %v4405 = vpop.permute.xlu0 %4404
      %4414 = vmatprep.subr.bf16.mxu0 0
      %4415 = vmatpush1.bf16.msra.mxu0 %v4405
      %4416 = vmatprep.subr.bf16.mxu0 0
      %4417 = vmatpush1.bf16.msra.mxu0 %v4403
      %4418 = vmatprep.subr.bf16.mxu0 0
      %4419 = vmatpush1.bf16.msra.mxu0 %v4401
      %4420 = vmatprep.subr.bf16.mxu0 0
      %4421 = vmatpush1.bf16.msra.mxu0 %v4399
      %4422 = vmatprep.subr.bf16.mxu0 0
      %4423 = vmatpush1.bf16.msra.mxu0 %v4397
      %4424 = vmatprep.subr.bf16.mxu0 0
      %4425 = vmatpush1.bf16.msra.mxu0 %v4395
      %4426 = vmatprep.subr.bf16.mxu0 0
      %4427 = vmatpush1.bf16.msra.mxu0 %v4393
      %4428 = vmatprep.subr.bf16.mxu0 0
      %4429 = vmatpush1.bf16.msra.mxu0 %v4391
      %4430 = vmatprep.subr.bf16.mxu0 0
      %4431 = vmatpush2.bf16.msra.mxu0 0
      %4432 = vmatprep.subr.bf16.mxu0 0
      %4433 = vmatpush2.bf16.msra.mxu0 0
      %4434 = vmatprep.subr.bf16.mxu0 0
      %4435 = vmatpush2.bf16.msra.mxu0 0
      %4436 = vmatprep.subr.bf16.mxu0 0
      %4437 = vmatpush2.bf16.msra.mxu0 0
      %4438 = vmatprep.subr.bf16.mxu0 0
      %4439 = vmatpush2.bf16.msra.mxu0 0
      %4440 = vmatprep.subr.bf16.mxu0 0
      %4441 = vmatpush2.bf16.msra.mxu0 0
      %4442 = vmatprep.subr.bf16.mxu0 0
      %4443 = vmatpush2.bf16.msra.mxu0 0
      %4444 = vmatprep.subr.bf16.mxu0 0
      %4445 = vmatpush2.bf16.msra.mxu0 0
      %4446 = vmatprep.mubr.bf16.mxu0 0
      %4447 = vmatmul.mubr.bf16.gmra.mxu0 %v4374
      %v4448 = vpop.f32.mrf.mxu0
      %v4449 = vadd.f32 0.0, %v4448
      %v4450 = vpop.f32.mrf.mxu0
      %v4451 = vpop.f32.mrf.mxu0
      %v4452 = vadd.f32 0.0, %v4451
      %v4453 = vpop.f32.mrf.mxu0
      %4454 = vmatprep.mubr.bf16.mxu0 0
      %4455 = vmatmul.mubr.bf16.gmra.mxu0 %v4375
      %v4456 = vpop.f32.mrf.mxu0
      %v4457 = vadd.f32 0.0, %v4456
      %v4458 = vpop.f32.mrf.mxu0
      %v4459 = vpop.f32.mrf.mxu0
      %v4460 = vadd.f32 0.0, %v4459
      %v4461 = vpop.f32.mrf.mxu0
      %4462 = vmatprep.mubr.bf16.mxu0 0
      %4463 = vmatmul.mubr.bf16.gmra.mxu0 %v4376
      %v4464 = vpop.f32.mrf.mxu0
      %v4465 = vadd.f32 0.0, %v4464
      %v4466 = vpop.f32.mrf.mxu0
      %v4467 = vpop.f32.mrf.mxu0
      %v4468 = vadd.f32 0.0, %v4467
      %v4469 = vpop.f32.mrf.mxu0
      %4470 = vmatprep.mubr.bf16.mxu0 0
      %4471 = vmatmul.mubr.bf16.gmra.mxu0 %v4377
      %v4472 = vpop.f32.mrf.mxu0
      %v4473 = vadd.f32 0.0, %v4472
      %v4474 = vpop.f32.mrf.mxu0
      %v4475 = vpop.f32.mrf.mxu0
      %v4476 = vadd.f32 0.0, %v4475
      %v4477 = vpop.f32.mrf.mxu0
      %4478 = vmatprep.mubr.bf16.mxu0 0
      %4479 = vmatmul.mubr.bf16.gmra.mxu0 %v4378
      %v4480 = vpop.f32.mrf.mxu0
      %v4481 = vadd.f32 0.0, %v4480
      %v4482 = vpop.f32.mrf.mxu0
      %v4483 = vpop.f32.mrf.mxu0
      %v4484 = vadd.f32 0.0, %v4483
      %v4485 = vpop.f32.mrf.mxu0
      %4486 = vmatprep.mubr.bf16.mxu0 0
      %4487 = vmatmul.mubr.bf16.gmra.mxu0 %v4379
      %v4488 = vpop.f32.mrf.mxu0
      %v4489 = vadd.f32 0.0, %v4488
      %v4490 = vpop.f32.mrf.mxu0
      %v4491 = vpop.f32.mrf.mxu0
      %v4492 = vadd.f32 0.0, %v4491
      %v4493 = vpop.f32.mrf.mxu0
      %4494 = vmatprep.mubr.bf16.mxu0 0
      %4495 = vmatmul.mubr.bf16.gmra.mxu0 %v4380
      %v4496 = vpop.f32.mrf.mxu0
      %v4497 = vadd.f32 0.0, %v4496
      %v4498 = vpop.f32.mrf.mxu0
      %v4499 = vpop.f32.mrf.mxu0
      %v4500 = vadd.f32 0.0, %v4499
      %v4501 = vpop.f32.mrf.mxu0
      %4502 = vmatprep.mubr.bf16.mxu0 0
      %4503 = vmatmul.mubr.bf16.gmra.mxu0 %v4381
      %v4504 = vpop.f32.mrf.mxu0
      %v4505 = vadd.f32 0.0, %v4504
      %v4506 = vpop.f32.mrf.mxu0
      %v4507 = vpop.f32.mrf.mxu0
      %v4508 = vadd.f32 0.0, %v4507
      %v4509 = vpop.f32.mrf.mxu0
      %4510 = vdwg.mxu0
      %v4511 = vadd.f32 %v4309, %v4449
      %v4512 = vadd.f32 %v4310, %v4452
      %v4513 = vadd.f32 %v4311, %v4457
      %v4514 = vadd.f32 %v4312, %v4460
      %v4515 = vadd.f32 %v4313, %v4465
      %v4516 = vadd.f32 %v4314, %v4468
      %v4517 = vadd.f32 %v4315, %v4473
      %v4518 = vadd.f32 %v4316, %v4476
      %v4519 = vadd.f32 %v4317, %v4481
      %v4520 = vadd.f32 %v4318, %v4484
      %v4521 = vadd.f32 %v4319, %v4489
      %v4522 = vadd.f32 %v4320, %v4492
      %v4523 = vadd.f32 %v4321, %v4497
      %v4524 = vadd.f32 %v4322, %v4500
      %v4525 = vadd.f32 %v4323, %v4505
      %v4526 = vadd.f32 %v4324, %v4508
      %v4527 = vmax.f32 %v4511, 0.0
      %v4528 = vmax.f32 %v4512, 0.0
      %v4529 = vmax.f32 %v4513, 0.0
      %v4530 = vmax.f32 %v4514, 0.0
      %v4531 = vmax.f32 %v4515, 0.0
      %v4532 = vmax.f32 %v4516, 0.0
      %v4533 = vmax.f32 %v4517, 0.0
      %v4534 = vmax.f32 %v4518, 0.0
      %v4535 = vmax.f32 %v4519, 0.0
      %v4536 = vmax.f32 %v4520, 0.0
      %v4537 = vmax.f32 %v4521, 0.0
      %v4538 = vmax.f32 %v4522, 0.0
      %v4539 = vmax.f32 %v4523, 0.0
      %v4540 = vmax.f32 %v4524, 0.0
      %v4541 = vmax.f32 %v4525, 0.0
      %v4542 = vmax.f32 %v4526, 0.0
      %v4543 = vpack.c.bf16 %v4528, %v4527
      %v4544 = vpack.c.bf16 %v4530, %v4529
      %v4545 = vpack.c.bf16 %v4532, %v4531
      %v4546 = vpack.c.bf16 %v4534, %v4533
      %v4547 = vpack.c.bf16 %v4536, %v4535
      %v4548 = vpack.c.bf16 %v4538, %v4537
      %v4549 = vpack.c.bf16 %v4540, %v4539
      %v4550 = vpack.c.bf16 %v4542, %v4541
      %s4551 = scalar_lea.vmem %s327, 48
      %v4552 = vld [vmem:[%s4551] sm:$0xf]
      %v4553 = vld [vmem:[%s4551 + $0x4] sm:$0xf]
      %v4554 = vld [vmem:[%s4551 + $0x8] sm:$0xf]
      %v4555 = vld [vmem:[%s4551 + $0xc] sm:$0xf]
      %v4560 = vunpack.c.l.b16 %v4552
      %v4561 = vunpack.c.l.b16 %v4553
      %v4562 = vunpack.c.l.b16 %v4554
      %v4563 = vunpack.c.l.b16 %v4555
      %v4564 = vpack.c.b16 %v4561, %v4560
      %v4565 = vpack.c.b16 %v4563, %v4562
      %4568 = vmatprep.subr.bf16.mxu0 0
      %4569 = vmatpush1.bf16.msra.mxu0 %v4550
      %4570 = vmatprep.subr.bf16.mxu0 0
      %4571 = vmatpush1.bf16.msra.mxu0 %v4549
      %4572 = vmatprep.subr.bf16.mxu0 0
      %4573 = vmatpush1.bf16.msra.mxu0 %v4548
      %4574 = vmatprep.subr.bf16.mxu0 0
      %4575 = vmatpush1.bf16.msra.mxu0 %v4547
      %4576 = vmatprep.subr.bf16.mxu0 0
      %4577 = vmatpush1.bf16.msra.mxu0 %v4546
      %4578 = vmatprep.subr.bf16.mxu0 0
      %4579 = vmatpush1.bf16.msra.mxu0 %v4545
      %4580 = vmatprep.subr.bf16.mxu0 0
      %4581 = vmatpush1.bf16.msra.mxu0 %v4544
      %4582 = vmatprep.subr.bf16.mxu0 0
      %4583 = vmatpush1.bf16.msra.mxu0 %v4543
      %4584 = vmatprep.subr.bf16.mxu0 0
      %4585 = vmatpush2.bf16.msra.mxu0 0
      %4586 = vmatprep.subr.bf16.mxu0 0
      %4587 = vmatpush2.bf16.msra.mxu0 0
      %4588 = vmatprep.subr.bf16.mxu0 0
      %4589 = vmatpush2.bf16.msra.mxu0 0
      %4590 = vmatprep.subr.bf16.mxu0 0
      %4591 = vmatpush2.bf16.msra.mxu0 0
      %4592 = vmatprep.subr.bf16.mxu0 0
      %4593 = vmatpush2.bf16.msra.mxu0 0
      %4594 = vmatprep.subr.bf16.mxu0 0
      %4595 = vmatpush2.bf16.msra.mxu0 0
      %4596 = vmatprep.subr.bf16.mxu0 0
      %4597 = vmatpush2.bf16.msra.mxu0 0
      %4598 = vmatprep.subr.bf16.mxu0 0
      %4599 = vmatpush2.bf16.msra.mxu0 0
      %4600 = vmatprep.mubr.bf16.mxu0 0
      %4601 = vmatmul.mubr.bf16.gmra.mxu0 %v4564
      %v4602 = vpop.f32.mrf.mxu0
      %v4603 = vadd.f32 0.0, %v4602
      %v4604 = vpop.f32.mrf.mxu0
      %v4605 = vpop.f32.mrf.mxu0
      %v4606 = vadd.f32 0.0, %v4605
      %v4607 = vpop.f32.mrf.mxu0
      %4608 = vmatprep.mubr.bf16.mxu0 0
      %4609 = vmatmul.mubr.bf16.gmra.mxu0 %v4565
      %v4610 = vpop.f32.mrf.mxu0
      %v4611 = vadd.f32 0.0, %v4610
      %v4612 = vpop.f32.mrf.mxu0
      %v4613 = vpop.f32.mrf.mxu0
      %v4614 = vadd.f32 0.0, %v4613
      %v4615 = vpop.f32.mrf.mxu0
      %4616 = vdwg.mxu0
      %v4617 = vpack.c.bf16 %v4603, %v4603
      %v4619 = vsel %vm1288, %v4617, 0
      %4621 = vmatprep.subr.bf16.mxu0 0
      %4622 = vmatpush1.bf16.msra.mxu0 0
      %4623 = vmatprep.subr.bf16.mxu0 0
      %4624 = vmatpush1.bf16.msra.mxu0 0
      %4625 = vmatprep.subr.bf16.mxu0 0
      %4626 = vmatpush1.bf16.msra.mxu0 0
      %4627 = vmatprep.subr.bf16.mxu0 0
      %4628 = vmatpush1.bf16.msra.mxu0 0
      %4629 = vmatprep.subr.bf16.mxu0 0
      %4630 = vmatpush1.bf16.msra.mxu0 0
      %4631 = vmatprep.subr.bf16.mxu0 0
      %4632 = vmatpush1.bf16.msra.mxu0 0
      %4633 = vmatprep.subr.bf16.mxu0 0
      %4634 = vmatpush1.bf16.msra.mxu0 %v1285
      %4635 = vmatprep.subr.bf16.mxu0 0
      %4636 = vmatpush1.bf16.msra.mxu0 %v1284
      %4637 = vmatprep.subr.bf16.mxu0 0
      %4638 = vmatpush2.bf16.msra.mxu0 0
      %4639 = vmatprep.subr.bf16.mxu0 0
      %4640 = vmatpush2.bf16.msra.mxu0 0
      %4641 = vmatprep.subr.bf16.mxu0 0
      %4642 = vmatpush2.bf16.msra.mxu0 0
      %4643 = vmatprep.subr.bf16.mxu0 0
      %4644 = vmatpush2.bf16.msra.mxu0 0
      %4645 = vmatprep.subr.bf16.mxu0 0
      %4646 = vmatpush2.bf16.msra.mxu0 0
      %4647 = vmatprep.subr.bf16.mxu0 0
      %4648 = vmatpush2.bf16.msra.mxu0 0
      %4649 = vmatprep.subr.bf16.mxu0 0
      %4650 = vmatpush2.bf16.msra.mxu0 0
      %4651 = vmatprep.subr.bf16.mxu0 0
      %4652 = vmatpush2.bf16.msra.mxu0 0
      %4653 = vmatprep.mubr.bf16.mxu0 0
      %4654 = vmatmul.mubr.bf16.gmra.mxu0 %v4619
      %v4655 = vpop.f32.mrf.mxu0
      %v4656 = vadd.f32 0.0, %v4655
      %v4657 = vpop.f32.mrf.mxu0
      %v4658 = vpop.f32.mrf.mxu0
      %v4659 = vpop.f32.mrf.mxu0
      %4660 = vdwg.mxu0
      %v4661 = vadd.f32 %v1273, %v4656
      %v4662 = vpack.c.bf16 %v4606, %v4606
      %v4664 = vsel %vm1288, %v4662, 0
      %4666 = vmatprep.subr.bf16.mxu0 0
      %4667 = vmatpush1.bf16.msra.mxu0 0
      %4668 = vmatprep.subr.bf16.mxu0 0
      %4669 = vmatpush1.bf16.msra.mxu0 0
      %4670 = vmatprep.subr.bf16.mxu0 0
      %4671 = vmatpush1.bf16.msra.mxu0 0
      %4672 = vmatprep.subr.bf16.mxu0 0
      %4673 = vmatpush1.bf16.msra.mxu0 0
      %4674 = vmatprep.subr.bf16.mxu0 0
      %4675 = vmatpush1.bf16.msra.mxu0 0
      %4676 = vmatprep.subr.bf16.mxu0 0
      %4677 = vmatpush1.bf16.msra.mxu0 0
      %4678 = vmatprep.subr.bf16.mxu0 0
      %4679 = vmatpush1.bf16.msra.mxu0 %v1343
      %4680 = vmatprep.subr.bf16.mxu0 0
      %4681 = vmatpush1.bf16.msra.mxu0 %v1342
      %4682 = vmatprep.subr.bf16.mxu0 0
      %4683 = vmatpush2.bf16.msra.mxu0 0
      %4684 = vmatprep.subr.bf16.mxu0 0
      %4685 = vmatpush2.bf16.msra.mxu0 0
      %4686 = vmatprep.subr.bf16.mxu0 0
      %4687 = vmatpush2.bf16.msra.mxu0 0
      %4688 = vmatprep.subr.bf16.mxu0 0
      %4689 = vmatpush2.bf16.msra.mxu0 0
      %4690 = vmatprep.subr.bf16.mxu0 0
      %4691 = vmatpush2.bf16.msra.mxu0 0
      %4692 = vmatprep.subr.bf16.mxu0 0
      %4693 = vmatpush2.bf16.msra.mxu0 0
      %4694 = vmatprep.subr.bf16.mxu0 0
      %4695 = vmatpush2.bf16.msra.mxu0 0
      %4696 = vmatprep.subr.bf16.mxu0 0
      %4697 = vmatpush2.bf16.msra.mxu0 0
      %4698 = vmatprep.mubr.bf16.mxu0 0
      %4699 = vmatmul.mubr.bf16.gmra.mxu0 %v4664
      %v4700 = vpop.f32.mrf.mxu0
      %v4701 = vadd.f32 0.0, %v4700
      %v4702 = vpop.f32.mrf.mxu0
      %v4703 = vpop.f32.mrf.mxu0
      %v4704 = vpop.f32.mrf.mxu0
      %4705 = vdwg.mxu0
      %v4706 = vadd.f32 %v4661, %v4701
      %v4707 = vpack.c.bf16 %v4611, %v4611
      %v4709 = vsel %vm1288, %v4707, 0
      %4711 = vmatprep.subr.bf16.mxu0 0
      %4712 = vmatpush1.bf16.msra.mxu0 0
      %4713 = vmatprep.subr.bf16.mxu0 0
      %4714 = vmatpush1.bf16.msra.mxu0 0
      %4715 = vmatprep.subr.bf16.mxu0 0
      %4716 = vmatpush1.bf16.msra.mxu0 0
      %4717 = vmatprep.subr.bf16.mxu0 0
      %4718 = vmatpush1.bf16.msra.mxu0 0
      %4719 = vmatprep.subr.bf16.mxu0 0
      %4720 = vmatpush1.bf16.msra.mxu0 0
      %4721 = vmatprep.subr.bf16.mxu0 0
      %4722 = vmatpush1.bf16.msra.mxu0 0
      %4723 = vmatprep.subr.bf16.mxu0 0
      %4724 = vmatpush1.bf16.msra.mxu0 %v1400
      %4725 = vmatprep.subr.bf16.mxu0 0
      %4726 = vmatpush1.bf16.msra.mxu0 %v1399
      %4727 = vmatprep.subr.bf16.mxu0 0
      %4728 = vmatpush2.bf16.msra.mxu0 0
      %4729 = vmatprep.subr.bf16.mxu0 0
      %4730 = vmatpush2.bf16.msra.mxu0 0
      %4731 = vmatprep.subr.bf16.mxu0 0
      %4732 = vmatpush2.bf16.msra.mxu0 0
      %4733 = vmatprep.subr.bf16.mxu0 0
      %4734 = vmatpush2.bf16.msra.mxu0 0
      %4735 = vmatprep.subr.bf16.mxu0 0
      %4736 = vmatpush2.bf16.msra.mxu0 0
      %4737 = vmatprep.subr.bf16.mxu0 0
      %4738 = vmatpush2.bf16.msra.mxu0 0
      %4739 = vmatprep.subr.bf16.mxu0 0
      %4740 = vmatpush2.bf16.msra.mxu0 0
      %4741 = vmatprep.subr.bf16.mxu0 0
      %4742 = vmatpush2.bf16.msra.mxu0 0
      %4743 = vmatprep.mubr.bf16.mxu0 0
      %4744 = vmatmul.mubr.bf16.gmra.mxu0 %v4709
      %v4745 = vpop.f32.mrf.mxu0
      %v4746 = vadd.f32 0.0, %v4745
      %v4747 = vpop.f32.mrf.mxu0
      %v4748 = vpop.f32.mrf.mxu0
      %v4749 = vpop.f32.mrf.mxu0
      %4750 = vdwg.mxu0
      %v4751 = vadd.f32 %v4706, %v4746
      %v4752 = vpack.c.bf16 %v4614, %v4614
      %v4754 = vsel %vm1288, %v4752, 0
      %4756 = vmatprep.subr.bf16.mxu0 0
      %4757 = vmatpush1.bf16.msra.mxu0 0
      %4758 = vmatprep.subr.bf16.mxu0 0
      %4759 = vmatpush1.bf16.msra.mxu0 0
      %4760 = vmatprep.subr.bf16.mxu0 0
      %4761 = vmatpush1.bf16.msra.mxu0 0
      %4762 = vmatprep.subr.bf16.mxu0 0
      %4763 = vmatpush1.bf16.msra.mxu0 0
      %4764 = vmatprep.subr.bf16.mxu0 0
      %4765 = vmatpush1.bf16.msra.mxu0 0
      %4766 = vmatprep.subr.bf16.mxu0 0
      %4767 = vmatpush1.bf16.msra.mxu0 0
      %4768 = vmatprep.subr.bf16.mxu0 0
      %4769 = vmatpush1.bf16.msra.mxu0 %v1457
      %4770 = vmatprep.subr.bf16.mxu0 0
      %4771 = vmatpush1.bf16.msra.mxu0 %v1456
      %4772 = vmatprep.subr.bf16.mxu0 0
      %4773 = vmatpush2.bf16.msra.mxu0 0
      %4774 = vmatprep.subr.bf16.mxu0 0
      %4775 = vmatpush2.bf16.msra.mxu0 0
      %4776 = vmatprep.subr.bf16.mxu0 0
      %4777 = vmatpush2.bf16.msra.mxu0 0
      %4778 = vmatprep.subr.bf16.mxu0 0
      %4779 = vmatpush2.bf16.msra.mxu0 0
      %4780 = vmatprep.subr.bf16.mxu0 0
      %4781 = vmatpush2.bf16.msra.mxu0 0
      %4782 = vmatprep.subr.bf16.mxu0 0
      %4783 = vmatpush2.bf16.msra.mxu0 0
      %4784 = vmatprep.subr.bf16.mxu0 0
      %4785 = vmatpush2.bf16.msra.mxu0 0
      %4786 = vmatprep.subr.bf16.mxu0 0
      %4787 = vmatpush2.bf16.msra.mxu0 0
      %4788 = vmatprep.mubr.bf16.mxu0 0
      %4789 = vmatmul.mubr.bf16.gmra.mxu0 %v4754
      %v4790 = vpop.f32.mrf.mxu0
      %v4791 = vadd.f32 0.0, %v4790
      %v4792 = vpop.f32.mrf.mxu0
      %v4793 = vpop.f32.mrf.mxu0
      %v4794 = vpop.f32.mrf.mxu0
      %4795 = vdwg.mxu0
      %v4796 = vadd.f32 %v4751, %v4791
      %4797 = vmax.xlane.f32.xlu0 %v4796
      %v4798 = vpop.xlane.xlu0 %4797
      %v4799 = vsub.f32 %v4796, %v4798
      %v4800 = vmul.f32 %v4799, 1.442695
      %v4801 = vpow.pop %v4800
      %4802 = vadd.xlane.f32.xlu0 %v4801
      %v4803 = vpop.xlane.xlu0 %4802
      %v4804 = vlog2.pop %v4803
      %v4805 = vmul.f32 %v4804, 0.6931472
      %v4806 = vsub.f32 %v4799, %v4805
      %s4807 = scalar_lea.vmem %s333, 24
      %4808 = vst [vmem:[%s4807] sm:$0xff] %v4806
      %s4809 = smul.u32 4, %s18
      %p4810 = scmp.lt.s32.totalorder %s4809, 7
      %s4811 = scalar_select %p4810, %s4809, 7
      %s4812 = smul.addr %s4811, 8
      %s4813 = scalar_lea.vmem %s7, %s4812
      // Predicated region
      $region49: #{rgcn_net_forward.1} parent=47 // pred_check
        %p4814 = pneg %p198
      $region50: #{rgcn_net_forward.1} parent=47 // pred_check_branch
        %4816 = sbr.rel (%p4814) target = $region52
      $region51: #{rgcn_net_forward.1} parent=47 // pred_region
        %s4817 = smul.u32 4, %s18
      $region52: #{rgcn_net_forward.1} parent=47 // pred_fallthru
        _
    $region48: #{rgcn_net_forward.1} parent=5 // pred_fallthru
      _
    %p4818 = scmp.le.s32.totalorder 2, %s13
    // Predicated region
    $region53: #{rgcn_net_forward.1} parent=5 // pred_check
      %p4819 = pneg %p4818
    $region54: #{rgcn_net_forward.1} parent=5 // pred_check_branch
      %4821 = sbr.rel (%p4819) target = $region56
    $region55: #{rgcn_net_forward.1} parent=5 // pred_region
      %s4822 = ssub.s32 %s13, 2
      // Predicated region
      $region57: #{rgcn_net_forward.1} parent=55 // pred_check
        %p4823 = pneg %p204
      $region58: #{rgcn_net_forward.1} parent=55 // pred_check_branch
        %4825 = sbr.rel (%p4823) target = $region60
      $region59: #{rgcn_net_forward.1} parent=55 // pred_region
        %s4826 = smul.u32 4, %s19
        %p4827 = scmp.lt.s32.totalorder %s4826, 7
        %s4828 = scalar_select %p4827, %s4826, 7
        %s4829 = smul.addr %s4828, 8
        %s4830 = scalar_lea.vmem %s7, %s4829
      $region60: #{rgcn_net_forward.1} parent=55 // pred_fallthru
        _
    $region56: #{rgcn_net_forward.1} parent=5 // pred_fallthru
      _
  $region6: #{rgcn_net_forward.1} parent=0 // loop_footer
    %s17 = sadd.s32 1, %s13
  $region7: #{rgcn_net_forward.1} parent=0 // loop_footer_branch
    %12 = sbr.rel target = $region3
  $region8: #{rgcn_net_forward.1} parent=0 // loop_exit
    _

</llo_original>
